<compile_context>
chip_gen: v5e
topology: v5e:2x2
jax: 0.10.0
libtpu: 0.0.40
codegen_flags: <defaults>
</compile_context>

<pallas_src>
import math
from functools import partial

import jax
import jax.numpy as jnp
from jax.experimental import pallas as pl
from jax.experimental.pallas import tpu as pltpu


# --------------------------------------------------------------------------
# Fused Pallas kernel: whole CSAB forward for one batch tile.
# --------------------------------------------------------------------------
def csab_kernel(x_ref, y_ref,
                wq_ref, bq_ref, wk_ref, bk_ref, wv_ref, bv_ref, wo_ref, bo_ref,
                wf1_ref, bf1_ref, wf2_ref, bf2_ref,
                wm_ref, bm_ref,
                xo_ref, yo_ref,
                *, bt, n, m, nh):
    L = x_ref.shape[-1]
    ds = L // nh
    scale = 1.0 / math.sqrt(L)          # torch divides by sqrt(latent_size)

    x = x_ref[...]                      # (bt*n, L) flattened batch-tile slab
    y = y_ref[...]                      # (bt*m, L)

    def _dot(a, b):
        return jnp.dot(a, b, preferred_element_type=jnp.float32)

    def mha(j, q, nq, k, nk):
        # projections on the flattened slab (bigger MXU tiles)
        Q = _dot(q, wq_ref[j]) + bq_ref[j]          # (bt*nq, L)
        K = _dot(k, wk_ref[j]) + bk_ref[j]          # (bt*nk, L)
        V = _dot(k, wv_ref[j]) + bv_ref[j]          # (bt*nk, L)
        rows = []
        for b in range(bt):                         # pairwise part stays per-b
            Qb = Q[b * nq:(b + 1) * nq]
            Kb = K[b * nk:(b + 1) * nk]
            Vb = V[b * nk:(b + 1) * nk]
            heads = []
            for h in range(nh):
                qh = Qb[:, h * ds:(h + 1) * ds]
                kh = Kb[:, h * ds:(h + 1) * ds]
                vh = Vb[:, h * ds:(h + 1) * ds]
                e = _dot(qh, kh.T) * scale          # (nq, nk)
                e = e - jnp.max(e, axis=-1, keepdims=True)
                p = jnp.exp(e)
                a = p / jnp.sum(p, axis=-1, keepdims=True)
                heads.append(_dot(a, vh))           # (nq, ds)
            rows.append(jnp.concatenate(heads, axis=-1))   # (nq, L)
        o = rows[0] if bt == 1 else jnp.concatenate(rows, axis=0)  # (bt*nq, L)
        return _dot(o, wo_ref[j]) + bo_ref[j]

    def mab(j, q, nq, k, nk):
        # dropout = identity (inference), ln = False, alpha = 1
        h1 = q + mha(j, q, nq, k, nk)
        f = jnp.maximum(_dot(h1, wf1_ref[j]) + bf1_ref[j], 0.0)
        return h1 + _dot(f, wf2_ref[j]) + bf2_ref[j]

    xx = mab(0, x, n, x, n)
    xy = mab(1, x, n, y, m)
    yx = mab(2, y, m, x, n)
    yy = mab(3, y, m, y, m)

    # merge='concat' with only fc_XX/.../fc_YY defined -> sum-of-linears branch
    x_merge = (_dot(xx, wm_ref[0]) + bm_ref[0]) + (_dot(xy, wm_ref[1]) + bm_ref[1])
    y_merge = (_dot(yx, wm_ref[2]) + bm_ref[2]) + (_dot(yy, wm_ref[3]) + bm_ref[3])

    xo_ref[...] = x + x_merge           # residual='base' -> alpha = 1
    yo_ref[...] = y + y_merge


# --------------------------------------------------------------------------
# Wrapper
# --------------------------------------------------------------------------
def _pick_batch_tile(B, N, M):
    """Largest batch tile that keeps >=2 grid steps (v7x 2 TCs) and legal sublane blocks."""
    for bt in range(B, 0, -1):
        if B % bt:
            continue
        if bt != B and ((bt * N) % 8 or (bt * M) % 8):
            continue                      # (8,128) sublane rule unless full-array block
        if bt * max(N, M) > 1024:
            continue                      # keep the VMEM slab modest
        if B >= 2 and B // bt < 2:
            continue
        return bt
    return B


def csab_forward(x, y, params, num_heads, batch_tile=None):
    B, N, L = x.shape
    _, M, _ = y.shape
    H = params["wf1"].shape[-1]
    bt = batch_tile if batch_tile is not None else _pick_batch_tile(B, N, M)
    assert B % bt == 0

    # lane-layout-preserving flatten so the kernel works on (Bt*N, L) row slabs
    x2 = x.reshape(B * N, L)
    y2 = y.reshape(B * M, L)

    def wspec(shape):
        nd = len(shape)
        return pl.BlockSpec(shape, lambda i, _nd=nd: (0,) * _nd)  # constant block -> DMA once

    kernel = partial(csab_kernel, bt=bt, n=N, m=M, nh=num_heads)

    out_x, out_y = pl.pallas_call(
        kernel,
        out_shape=(jax.ShapeDtypeStruct((B * N, L), jnp.float32),
                   jax.ShapeDtypeStruct((B * M, L), jnp.float32)),
        grid=(B // bt,),
        in_specs=[
            pl.BlockSpec((bt * N, L), lambda i: (i, 0)),
            pl.BlockSpec((bt * M, L), lambda i: (i, 0)),
            wspec((4, L, L)), wspec((4, 1, L)),     # wq, bq
            wspec((4, L, L)), wspec((4, 1, L)),     # wk, bk
            wspec((4, L, L)), wspec((4, 1, L)),     # wv, bv
            wspec((4, L, L)), wspec((4, 1, L)),     # wo, bo
            wspec((4, L, H)), wspec((4, 1, H)),     # wf1, bf1
            wspec((4, H, L)), wspec((4, 1, L)),     # wf2, bf2
            wspec((4, L, L)), wspec((4, 1, L)),     # wm, bm  (fc_XX, fc_XY, fc_YX, fc_YY)
        ],
        out_specs=(pl.BlockSpec((bt * N, L), lambda i: (i, 0)),
                   pl.BlockSpec((bt * M, L), lambda i: (i, 0))),
        compiler_params=pltpu.CompilerParams(
            dimension_semantics=("parallel",)),
    )(x2, y2,
      params["wq"], params["bq"], params["wk"], params["bk"],
      params["wv"], params["bv"], params["wo"], params["bo"],
      params["wf1"], params["bf1"], params["wf2"], params["bf2"],
      params["wm"], params["bm"])

    return out_x.reshape(B, N, L), out_y.reshape(B, M, L)


# --------------------------------------------------------------------------
# Deterministic parameter init (mimics torch.nn.Linear uniform init)
# Weights are stored transposed vs torch (in_features, out_features).
# --------------------------------------------------------------------------
def linear_params(key, fan_in, fan_out):
    kw, kb = jax.random.split(key)
    bound = 1.0 / math.sqrt(fan_in)
    w = jax.random.uniform(kw, (fan_in, fan_out), jnp.float32, -bound, bound)
    b = jax.random.uniform(kb, (1, fan_out), jnp.float32, -bound, bound)
    return w, b


def init_params(key, latent_size, hidden_size):
    L, H = latent_size, hidden_size
    keys = jax.random.split(key, 4 * 6 + 4)
    ki = iter(keys)
    wq, bq, wk, bk, wv, bv, wo, bo = ([] for _ in range(8))
    wf1, bf1, wf2, bf2 = ([] for _ in range(4))
    wm, bm = [], []
    for _ in range(4):                      # MAB order: XX, XY, YX, YY
        w, b = linear_params(next(ki), L, L); wq.append(w); bq.append(b)
        w, b = linear_params(next(ki), L, L); wk.append(w); bk.append(b)
        w, b = linear_params(next(ki), L, L); wv.append(w); bv.append(b)
        w, b = linear_params(next(ki), L, L); wo.append(w); bo.append(b)
        w, b = linear_params(next(ki), L, H); wf1.append(w); bf1.append(b)
        w, b = linear_params(next(ki), H, L); wf2.append(w); bf2.append(b)
    for _ in range(4):                      # merge order: fc_XX, fc_XY, fc_YX, fc_YY
        w, b = linear_params(next(ki), L, L); wm.append(w); bm.append(b)
    st = lambda xs: jnp.stack(xs, axis=0)
    return dict(wq=st(wq), bq=st(bq), wk=st(wk), bk=st(bk), wv=st(wv), bv=st(bv),
                wo=st(wo), bo=st(bo), wf1=st(wf1), bf1=st(bf1),
                wf2=st(wf2), bf2=st(bf2), wm=st(wm), bm=st(bm))


# --------------------------------------------------------------------------
# Pure-JAX reference (for correctness check)
# --------------------------------------------------------------------------
_HP = jax.lax.Precision.HIGHEST


def _mm(a, b):
    return jnp.matmul(a, b, precision=_HP)


def _mha_ref(q, k, p, j, nh):
    L = p["wq"].shape[-1]
    ds = L // nh
    Q = _mm(q, p["wq"][j]) + p["bq"][j]
    K = _mm(k, p["wk"][j]) + p["bk"][j]
    V = _mm(k, p["wv"][j]) + p["bv"][j]
    B, N = Q.shape[0], Q.shape[1]
    M = K.shape[1]
    Qh = Q.reshape(B, N, nh, ds).transpose(2, 0, 1, 3)   # torch.stack(split, 0)
    Kh = K.reshape(B, M, nh, ds).transpose(2, 0, 1, 3)
    Vh = V.reshape(B, M, nh, ds).transpose(2, 0, 1, 3)
    E = jnp.einsum("hbnd,hbmd->hbnm", Qh, Kh, precision=_HP) / math.sqrt(L)
    A = jax.nn.softmax(E, axis=-1)
    O = jnp.einsum("hbnm,hbmd->hbnd", A, Vh, precision=_HP)
    O = O.transpose(1, 2, 0, 3).reshape(B, N, L)         # concat heads on dim -1
    return _mm(O, p["wo"][j]) + p["bo"][j]


def _mab_ref(q, k, p, j, nh):
    h1 = q + _mha_ref(q, k, p, j, nh)
    f = jnp.maximum(_mm(h1, p["wf1"][j]) + p["bf1"][j], 0.0)
    return h1 + _mm(f, p["wf2"][j]) + p["bf2"][j]


def ref_forward(x, y, params, nh):
    xx = _mab_ref(x, x, params, 0, nh)
    xy = _mab_ref(x, y, params, 1, nh)
    yx = _mab_ref(y, x, params, 2, nh)
    yy = _mab_ref(y, y, params, 3, nh)
    x_merge = (_mm(xx, params["wm"][0]) + params["bm"][0]
               + _mm(xy, params["wm"][1]) + params["bm"][1])
    y_merge = (_mm(yx, params["wm"][2]) + params["bm"][2]
               + _mm(yy, params["wm"][3]) + params["bm"][3])
    return x + x_merge, y + y_merge


# --------------------------------------------------------------------------
if __name__ == "__main__":
    B, N, M = 2, 8, 8                       # batch, |X| set size, |Y| set size
    latent_size, hidden_size, num_heads = 32, 32, 4   # input_size == latent_size

    key = jax.random.PRNGKey(0)
    kx, ky, kp = jax.random.split(key, 3)
    x = jax.random.normal(kx, (B, N, latent_size), jnp.float32)
    y = jax.random.normal(ky, (B, M, latent_size), jnp.float32)
    params = init_params(kp, latent_size, hidden_size)

    xo, yo = csab_forward(x, y, params, num_heads)
    xo, yo = jax.block_until_ready((xo, yo))

    xr, yr = ref_forward(x, y, params, num_heads)
    xr, yr = jax.block_until_ready((xr, yr))

    assert xo.shape == (B, N, latent_size), xo.shape
    assert yo.shape == (B, M, latent_size), yo.shape
    assert jnp.allclose(xo, xr, rtol=1e-4, atol=1e-4), (jnp.abs(xo - xr).max())
    assert jnp.allclose(yo, yr, rtol=1e-4, atol=1e-4), (jnp.abs(yo - yr).max())
    print("KERNEL_OK")
</pallas_src>

<mosaic_0001>
module attributes {stable_mosaic.version = 11 : i64} {
  func.func @csab_kernel(%arg0: i32, %arg1: memref<8x32xf32, #tpu.memory_space<vmem>>, %arg2: memref<8x32xf32, #tpu.memory_space<vmem>>, %arg3: memref<4x32x32xf32, #tpu.memory_space<vmem>>, %arg4: memref<4x1x32xf32, #tpu.memory_space<vmem>>, %arg5: memref<4x32x32xf32, #tpu.memory_space<vmem>>, %arg6: memref<4x1x32xf32, #tpu.memory_space<vmem>>, %arg7: memref<4x32x32xf32, #tpu.memory_space<vmem>>, %arg8: memref<4x1x32xf32, #tpu.memory_space<vmem>>, %arg9: memref<4x32x32xf32, #tpu.memory_space<vmem>>, %arg10: memref<4x1x32xf32, #tpu.memory_space<vmem>>, %arg11: memref<4x32x32xf32, #tpu.memory_space<vmem>>, %arg12: memref<4x1x32xf32, #tpu.memory_space<vmem>>, %arg13: memref<4x32x32xf32, #tpu.memory_space<vmem>>, %arg14: memref<4x1x32xf32, #tpu.memory_space<vmem>>, %arg15: memref<4x32x32xf32, #tpu.memory_space<vmem>>, %arg16: memref<4x1x32xf32, #tpu.memory_space<vmem>>, %arg17: memref<8x32xf32, #tpu.memory_space<vmem>>, %arg18: memref<8x32xf32, #tpu.memory_space<vmem>>) attributes {dimension_semantics = [#tpu.dimension_semantics<parallel>], iteration_bounds = array<i64: 2>, scalar_prefetch = 0 : i64, scratch_operands = 0 : i64, tpu.core_type = #tpu.core_type<tc>, window_params = [{transform_indices = @transform_0, window_bounds = array<i64: 8, 32>}, {transform_indices = @transform_1, window_bounds = array<i64: 8, 32>}, {pipeline_mode = #tpu.pipeline_mode<synchronous>, transform_indices = @transform_2, window_bounds = array<i64: 4, 32, 32>}, {pipeline_mode = #tpu.pipeline_mode<synchronous>, transform_indices = @transform_3, window_bounds = array<i64: 4, 1, 32>}, {pipeline_mode = #tpu.pipeline_mode<synchronous>, transform_indices = @transform_4, window_bounds = array<i64: 4, 32, 32>}, {pipeline_mode = #tpu.pipeline_mode<synchronous>, transform_indices = @transform_5, window_bounds = array<i64: 4, 1, 32>}, {pipeline_mode = #tpu.pipeline_mode<synchronous>, transform_indices = @transform_6, window_bounds = array<i64: 4, 32, 32>}, {pipeline_mode = #tpu.pipeline_mode<synchronous>, transform_indices = @transform_7, window_bounds = array<i64: 4, 1, 32>}, {pipeline_mode = #tpu.pipeline_mode<synchronous>, transform_indices = @transform_8, window_bounds = array<i64: 4, 32, 32>}, {pipeline_mode = #tpu.pipeline_mode<synchronous>, transform_indices = @transform_9, window_bounds = array<i64: 4, 1, 32>}, {pipeline_mode = #tpu.pipeline_mode<synchronous>, transform_indices = @transform_10, window_bounds = array<i64: 4, 32, 32>}, {pipeline_mode = #tpu.pipeline_mode<synchronous>, transform_indices = @transform_11, window_bounds = array<i64: 4, 1, 32>}, {pipeline_mode = #tpu.pipeline_mode<synchronous>, transform_indices = @transform_12, window_bounds = array<i64: 4, 32, 32>}, {pipeline_mode = #tpu.pipeline_mode<synchronous>, transform_indices = @transform_13, window_bounds = array<i64: 4, 1, 32>}, {pipeline_mode = #tpu.pipeline_mode<synchronous>, transform_indices = @transform_14, window_bounds = array<i64: 4, 32, 32>}, {pipeline_mode = #tpu.pipeline_mode<synchronous>, transform_indices = @transform_15, window_bounds = array<i64: 4, 1, 32>}, {transform_indices = @transform_16, window_bounds = array<i64: 8, 32>}, {transform_indices = @transform_17, window_bounds = array<i64: 8, 32>}]} {
    %c0 = arith.constant 0 : index
    %c0_0 = arith.constant 0 : index
    %0 = vector.load %arg1[%c0, %c0_0] : memref<8x32xf32, #tpu.memory_space<vmem>>, vector<8x32xf32>
    %c0_1 = arith.constant 0 : index
    %c0_2 = arith.constant 0 : index
    %1 = vector.load %arg2[%c0_1, %c0_2] : memref<8x32xf32, #tpu.memory_space<vmem>>, vector<8x32xf32>
    %c0_3 = arith.constant 0 : index
    %c0_4 = arith.constant 0 : index
    %c0_5 = arith.constant 0 : index
    %2 = vector.load %arg3[%c0_3, %c0_4, %c0_5] : memref<4x32x32xf32, #tpu.memory_space<vmem>>, vector<1x32x32xf32>
    %3 = vector.shape_cast %2 : vector<1x32x32xf32> to vector<32x32xf32>
    %cst = arith.constant dense<0.000000e+00> : vector<8x32xf32>
    %4 = tpu.matmul %0, %3, %cst {dimension_numbers = #tpu.dot_dimension_numbers<[1], [0], [0], [1], [0, 0, 1, 1], [], []>} : vector<8x32xf32>, vector<32x32xf32>, vector<8x32xf32> -> vector<8x32xf32>
    %c0_6 = arith.constant 0 : index
    %c0_7 = arith.constant 0 : index
    %c0_8 = arith.constant 0 : index
    %5 = vector.load %arg4[%c0_6, %c0_7, %c0_8] : memref<4x1x32xf32, #tpu.memory_space<vmem>>, vector<1x1x32xf32>
    %6 = vector.shape_cast %5 : vector<1x1x32xf32> to vector<1x32xf32>
    %7 = vector.broadcast %6 : vector<1x32xf32> to vector<8x32xf32>
    %8 = arith.addf %4, %7 : vector<8x32xf32>
    %c0_9 = arith.constant 0 : index
    %c0_10 = arith.constant 0 : index
    %c0_11 = arith.constant 0 : index
    %9 = vector.load %arg5[%c0_9, %c0_10, %c0_11] : memref<4x32x32xf32, #tpu.memory_space<vmem>>, vector<1x32x32xf32>
    %10 = vector.shape_cast %9 : vector<1x32x32xf32> to vector<32x32xf32>
    %cst_12 = arith.constant dense<0.000000e+00> : vector<8x32xf32>
    %11 = tpu.matmul %0, %10, %cst_12 {dimension_numbers = #tpu.dot_dimension_numbers<[1], [0], [0], [1], [0, 0, 1, 1], [], []>} : vector<8x32xf32>, vector<32x32xf32>, vector<8x32xf32> -> vector<8x32xf32>
    %c0_13 = arith.constant 0 : index
    %c0_14 = arith.constant 0 : index
    %c0_15 = arith.constant 0 : index
    %12 = vector.load %arg6[%c0_13, %c0_14, %c0_15] : memref<4x1x32xf32, #tpu.memory_space<vmem>>, vector<1x1x32xf32>
    %13 = vector.shape_cast %12 : vector<1x1x32xf32> to vector<1x32xf32>
    %14 = vector.broadcast %13 : vector<1x32xf32> to vector<8x32xf32>
    %15 = arith.addf %11, %14 : vector<8x32xf32>
    %c0_16 = arith.constant 0 : index
    %c0_17 = arith.constant 0 : index
    %c0_18 = arith.constant 0 : index
    %16 = vector.load %arg7[%c0_16, %c0_17, %c0_18] : memref<4x32x32xf32, #tpu.memory_space<vmem>>, vector<1x32x32xf32>
    %17 = vector.shape_cast %16 : vector<1x32x32xf32> to vector<32x32xf32>
    %cst_19 = arith.constant dense<0.000000e+00> : vector<8x32xf32>
    %18 = tpu.matmul %0, %17, %cst_19 {dimension_numbers = #tpu.dot_dimension_numbers<[1], [0], [0], [1], [0, 0, 1, 1], [], []>} : vector<8x32xf32>, vector<32x32xf32>, vector<8x32xf32> -> vector<8x32xf32>
    %c0_20 = arith.constant 0 : index
    %c0_21 = arith.constant 0 : index
    %c0_22 = arith.constant 0 : index
    %19 = vector.load %arg8[%c0_20, %c0_21, %c0_22] : memref<4x1x32xf32, #tpu.memory_space<vmem>>, vector<1x1x32xf32>
    %20 = vector.shape_cast %19 : vector<1x1x32xf32> to vector<1x32xf32>
    %21 = vector.broadcast %20 : vector<1x32xf32> to vector<8x32xf32>
    %22 = arith.addf %18, %21 : vector<8x32xf32>
    %23 = vector.extract_strided_slice %8 {offsets = [0, 0], sizes = [8, 8], strides = [1, 1]} : vector<8x32xf32> to vector<8x8xf32>
    %24 = vector.extract_strided_slice %15 {offsets = [0, 0], sizes = [8, 8], strides = [1, 1]} : vector<8x32xf32> to vector<8x8xf32>
    %25 = vector.extract_strided_slice %22 {offsets = [0, 0], sizes = [8, 8], strides = [1, 1]} : vector<8x32xf32> to vector<8x8xf32>
    %26 = tpu.transpose %24, [1, 0] : vector<8x8xf32> -> vector<8x8xf32>
    %cst_23 = arith.constant dense<0.000000e+00> : vector<8x8xf32>
    %27 = tpu.matmul %23, %26, %cst_23 {dimension_numbers = #tpu.dot_dimension_numbers<[1], [0], [0], [1], [0, 0, 1, 1], [], []>} : vector<8x8xf32>, vector<8x8xf32>, vector<8x8xf32> -> vector<8x8xf32>
    %cst_24 = arith.constant 0.176776692 : f32
    %28 = vector.broadcast %cst_24 : f32 to vector<8x8xf32>
    %29 = arith.mulf %27, %28 : vector<8x8xf32>
    %cst_25 = arith.constant dense<0xFF800000> : vector<8xf32>
    %30 = vector.multi_reduction <maximumf>, %29, %cst_25 [1] : vector<8x8xf32> to vector<8xf32>
    %31 = vector.shape_cast %30 : vector<8xf32> to vector<8x1xf32>
    %32 = vector.broadcast %31 : vector<8x1xf32> to vector<8x8xf32>
    %33 = arith.subf %29, %32 : vector<8x8xf32>
    %34 = math.exp %33 : vector<8x8xf32>
    %cst_26 = arith.constant dense<0.000000e+00> : vector<8xf32>
    %35 = vector.multi_reduction <add>, %34, %cst_26 [1] : vector<8x8xf32> to vector<8xf32>
    %36 = vector.shape_cast %35 : vector<8xf32> to vector<8x1xf32>
    %37 = vector.broadcast %36 : vector<8x1xf32> to vector<8x8xf32>
    %38 = arith.divf %34, %37 : vector<8x8xf32>
    %cst_27 = arith.constant dense<0.000000e+00> : vector<8x8xf32>
    %39 = tpu.matmul %38, %25, %cst_27 {dimension_numbers = #tpu.dot_dimension_numbers<[1], [0], [0], [1], [0, 0, 1, 1], [], []>} : vector<8x8xf32>, vector<8x8xf32>, vector<8x8xf32> -> vector<8x8xf32>
    %40 = vector.extract_strided_slice %8 {offsets = [0, 8], sizes = [8, 8], strides = [1, 1]} : vector<8x32xf32> to vector<8x8xf32>
    %41 = vector.extract_strided_slice %15 {offsets = [0, 8], sizes = [8, 8], strides = [1, 1]} : vector<8x32xf32> to vector<8x8xf32>
    %42 = vector.extract_strided_slice %22 {offsets = [0, 8], sizes = [8, 8], strides = [1, 1]} : vector<8x32xf32> to vector<8x8xf32>
    %43 = tpu.transpose %41, [1, 0] : vector<8x8xf32> -> vector<8x8xf32>
    %cst_28 = arith.constant dense<0.000000e+00> : vector<8x8xf32>
    %44 = tpu.matmul %40, %43, %cst_28 {dimension_numbers = #tpu.dot_dimension_numbers<[1], [0], [0], [1], [0, 0, 1, 1], [], []>} : vector<8x8xf32>, vector<8x8xf32>, vector<8x8xf32> -> vector<8x8xf32>
    %cst_29 = arith.constant 0.176776692 : f32
    %45 = vector.broadcast %cst_29 : f32 to vector<8x8xf32>
    %46 = arith.mulf %44, %45 : vector<8x8xf32>
    %cst_30 = arith.constant dense<0xFF800000> : vector<8xf32>
    %47 = vector.multi_reduction <maximumf>, %46, %cst_30 [1] : vector<8x8xf32> to vector<8xf32>
    %48 = vector.shape_cast %47 : vector<8xf32> to vector<8x1xf32>
    %49 = vector.broadcast %48 : vector<8x1xf32> to vector<8x8xf32>
    %50 = arith.subf %46, %49 : vector<8x8xf32>
    %51 = math.exp %50 : vector<8x8xf32>
    %cst_31 = arith.constant dense<0.000000e+00> : vector<8xf32>
    %52 = vector.multi_reduction <add>, %51, %cst_31 [1] : vector<8x8xf32> to vector<8xf32>
    %53 = vector.shape_cast %52 : vector<8xf32> to vector<8x1xf32>
    %54 = vector.broadcast %53 : vector<8x1xf32> to vector<8x8xf32>
    %55 = arith.divf %51, %54 : vector<8x8xf32>
    %cst_32 = arith.constant dense<0.000000e+00> : vector<8x8xf32>
    %56 = tpu.matmul %55, %42, %cst_32 {dimension_numbers = #tpu.dot_dimension_numbers<[1], [0], [0], [1], [0, 0, 1, 1], [], []>} : vector<8x8xf32>, vector<8x8xf32>, vector<8x8xf32> -> vector<8x8xf32>
    %57 = vector.extract_strided_slice %8 {offsets = [0, 16], sizes = [8, 8], strides = [1, 1]} : vector<8x32xf32> to vector<8x8xf32>
    %58 = vector.extract_strided_slice %15 {offsets = [0, 16], sizes = [8, 8], strides = [1, 1]} : vector<8x32xf32> to vector<8x8xf32>
    %59 = vector.extract_strided_slice %22 {offsets = [0, 16], sizes = [8, 8], strides = [1, 1]} : vector<8x32xf32> to vector<8x8xf32>
    %60 = tpu.transpose %58, [1, 0] : vector<8x8xf32> -> vector<8x8xf32>
    %cst_33 = arith.constant dense<0.000000e+00> : vector<8x8xf32>
    %61 = tpu.matmul %57, %60, %cst_33 {dimension_numbers = #tpu.dot_dimension_numbers<[1], [0], [0], [1], [0, 0, 1, 1], [], []>} : vector<8x8xf32>, vector<8x8xf32>, vector<8x8xf32> -> vector<8x8xf32>
    %cst_34 = arith.constant 0.176776692 : f32
    %62 = vector.broadcast %cst_34 : f32 to vector<8x8xf32>
    %63 = arith.mulf %61, %62 : vector<8x8xf32>
    %cst_35 = arith.constant dense<0xFF800000> : vector<8xf32>
    %64 = vector.multi_reduction <maximumf>, %63, %cst_35 [1] : vector<8x8xf32> to vector<8xf32>
    %65 = vector.shape_cast %64 : vector<8xf32> to vector<8x1xf32>
    %66 = vector.broadcast %65 : vector<8x1xf32> to vector<8x8xf32>
    %67 = arith.subf %63, %66 : vector<8x8xf32>
    %68 = math.exp %67 : vector<8x8xf32>
    %cst_36 = arith.constant dense<0.000000e+00> : vector<8xf32>
    %69 = vector.multi_reduction <add>, %68, %cst_36 [1] : vector<8x8xf32> to vector<8xf32>
    %70 = vector.shape_cast %69 : vector<8xf32> to vector<8x1xf32>
    %71 = vector.broadcast %70 : vector<8x1xf32> to vector<8x8xf32>
    %72 = arith.divf %68, %71 : vector<8x8xf32>
    %cst_37 = arith.constant dense<0.000000e+00> : vector<8x8xf32>
    %73 = tpu.matmul %72, %59, %cst_37 {dimension_numbers = #tpu.dot_dimension_numbers<[1], [0], [0], [1], [0, 0, 1, 1], [], []>} : vector<8x8xf32>, vector<8x8xf32>, vector<8x8xf32> -> vector<8x8xf32>
    %74 = vector.extract_strided_slice %8 {offsets = [0, 24], sizes = [8, 8], strides = [1, 1]} : vector<8x32xf32> to vector<8x8xf32>
    %75 = vector.extract_strided_slice %15 {offsets = [0, 24], sizes = [8, 8], strides = [1, 1]} : vector<8x32xf32> to vector<8x8xf32>
    %76 = vector.extract_strided_slice %22 {offsets = [0, 24], sizes = [8, 8], strides = [1, 1]} : vector<8x32xf32> to vector<8x8xf32>
    %77 = tpu.transpose %75, [1, 0] : vector<8x8xf32> -> vector<8x8xf32>
    %cst_38 = arith.constant dense<0.000000e+00> : vector<8x8xf32>
    %78 = tpu.matmul %74, %77, %cst_38 {dimension_numbers = #tpu.dot_dimension_numbers<[1], [0], [0], [1], [0, 0, 1, 1], [], []>} : vector<8x8xf32>, vector<8x8xf32>, vector<8x8xf32> -> vector<8x8xf32>
    %cst_39 = arith.constant 0.176776692 : f32
    %79 = vector.broadcast %cst_39 : f32 to vector<8x8xf32>
    %80 = arith.mulf %78, %79 : vector<8x8xf32>
    %cst_40 = arith.constant dense<0xFF800000> : vector<8xf32>
    %81 = vector.multi_reduction <maximumf>, %80, %cst_40 [1] : vector<8x8xf32> to vector<8xf32>
    %82 = vector.shape_cast %81 : vector<8xf32> to vector<8x1xf32>
    %83 = vector.broadcast %82 : vector<8x1xf32> to vector<8x8xf32>
    %84 = arith.subf %80, %83 : vector<8x8xf32>
    %85 = math.exp %84 : vector<8x8xf32>
    %cst_41 = arith.constant dense<0.000000e+00> : vector<8xf32>
    %86 = vector.multi_reduction <add>, %85, %cst_41 [1] : vector<8x8xf32> to vector<8xf32>
    %87 = vector.shape_cast %86 : vector<8xf32> to vector<8x1xf32>
    %88 = vector.broadcast %87 : vector<8x1xf32> to vector<8x8xf32>
    %89 = arith.divf %85, %88 : vector<8x8xf32>
    %cst_42 = arith.constant dense<0.000000e+00> : vector<8x8xf32>
    %90 = tpu.matmul %89, %76, %cst_42 {dimension_numbers = #tpu.dot_dimension_numbers<[1], [0], [0], [1], [0, 0, 1, 1], [], []>} : vector<8x8xf32>, vector<8x8xf32>, vector<8x8xf32> -> vector<8x8xf32>
    %91 = tpu.concatenate %39, %56, %73, %90 in 1 : vector<8x8xf32>, vector<8x8xf32>, vector<8x8xf32>, vector<8x8xf32> -> vector<8x32xf32>
    %c0_43 = arith.constant 0 : index
    %c0_44 = arith.constant 0 : index
    %c0_45 = arith.constant 0 : index
    %92 = vector.load %arg9[%c0_43, %c0_44, %c0_45] : memref<4x32x32xf32, #tpu.memory_space<vmem>>, vector<1x32x32xf32>
    %93 = vector.shape_cast %92 : vector<1x32x32xf32> to vector<32x32xf32>
    %cst_46 = arith.constant dense<0.000000e+00> : vector<8x32xf32>
    %94 = tpu.matmul %91, %93, %cst_46 {dimension_numbers = #tpu.dot_dimension_numbers<[1], [0], [0], [1], [0, 0, 1, 1], [], []>} : vector<8x32xf32>, vector<32x32xf32>, vector<8x32xf32> -> vector<8x32xf32>
    %c0_47 = arith.constant 0 : index
    %c0_48 = arith.constant 0 : index
    %c0_49 = arith.constant 0 : index
    %95 = vector.load %arg10[%c0_47, %c0_48, %c0_49] : memref<4x1x32xf32, #tpu.memory_space<vmem>>, vector<1x1x32xf32>
    %96 = vector.shape_cast %95 : vector<1x1x32xf32> to vector<1x32xf32>
    %97 = vector.broadcast %96 : vector<1x32xf32> to vector<8x32xf32>
    %98 = arith.addf %94, %97 : vector<8x32xf32>
    %99 = arith.addf %0, %98 : vector<8x32xf32>
    %c0_50 = arith.constant 0 : index
    %c0_51 = arith.constant 0 : index
    %c0_52 = arith.constant 0 : index
    %100 = vector.load %arg11[%c0_50, %c0_51, %c0_52] : memref<4x32x32xf32, #tpu.memory_space<vmem>>, vector<1x32x32xf32>
    %101 = vector.shape_cast %100 : vector<1x32x32xf32> to vector<32x32xf32>
    %cst_53 = arith.constant dense<0.000000e+00> : vector<8x32xf32>
    %102 = tpu.matmul %99, %101, %cst_53 {dimension_numbers = #tpu.dot_dimension_numbers<[1], [0], [0], [1], [0, 0, 1, 1], [], []>} : vector<8x32xf32>, vector<32x32xf32>, vector<8x32xf32> -> vector<8x32xf32>
    %c0_54 = arith.constant 0 : index
    %c0_55 = arith.constant 0 : index
    %c0_56 = arith.constant 0 : index
    %103 = vector.load %arg12[%c0_54, %c0_55, %c0_56] : memref<4x1x32xf32, #tpu.memory_space<vmem>>, vector<1x1x32xf32>
    %104 = vector.shape_cast %103 : vector<1x1x32xf32> to vector<1x32xf32>
    %105 = vector.broadcast %104 : vector<1x32xf32> to vector<8x32xf32>
    %106 = arith.addf %102, %105 : vector<8x32xf32>
    %cst_57 = arith.constant 0.000000e+00 : f32
    %107 = vector.broadcast %cst_57 : f32 to vector<8x32xf32>
    %108 = arith.maximumf %106, %107 : vector<8x32xf32>
    %c0_58 = arith.constant 0 : index
    %c0_59 = arith.constant 0 : index
    %c0_60 = arith.constant 0 : index
    %109 = vector.load %arg13[%c0_58, %c0_59, %c0_60] : memref<4x32x32xf32, #tpu.memory_space<vmem>>, vector<1x32x32xf32>
    %110 = vector.shape_cast %109 : vector<1x32x32xf32> to vector<32x32xf32>
    %cst_61 = arith.constant dense<0.000000e+00> : vector<8x32xf32>
    %111 = tpu.matmul %108, %110, %cst_61 {dimension_numbers = #tpu.dot_dimension_numbers<[1], [0], [0], [1], [0, 0, 1, 1], [], []>} : vector<8x32xf32>, vector<32x32xf32>, vector<8x32xf32> -> vector<8x32xf32>
    %112 = arith.addf %99, %111 : vector<8x32xf32>
    %c0_62 = arith.constant 0 : index
    %c0_63 = arith.constant 0 : index
    %c0_64 = arith.constant 0 : index
    %113 = vector.load %arg14[%c0_62, %c0_63, %c0_64] : memref<4x1x32xf32, #tpu.memory_space<vmem>>, vector<1x1x32xf32>
    %114 = vector.shape_cast %113 : vector<1x1x32xf32> to vector<1x32xf32>
    %115 = vector.broadcast %114 : vector<1x32xf32> to vector<8x32xf32>
    %116 = arith.addf %112, %115 : vector<8x32xf32>
    %c1 = arith.constant 1 : index
    %c0_65 = arith.constant 0 : index
    %c0_66 = arith.constant 0 : index
    %117 = vector.load %arg3[%c1, %c0_65, %c0_66] : memref<4x32x32xf32, #tpu.memory_space<vmem>>, vector<1x32x32xf32>
    %118 = vector.shape_cast %117 : vector<1x32x32xf32> to vector<32x32xf32>
    %cst_67 = arith.constant dense<0.000000e+00> : vector<8x32xf32>
    %119 = tpu.matmul %0, %118, %cst_67 {dimension_numbers = #tpu.dot_dimension_numbers<[1], [0], [0], [1], [0, 0, 1, 1], [], []>} : vector<8x32xf32>, vector<32x32xf32>, vector<8x32xf32> -> vector<8x32xf32>
    %c1_68 = arith.constant 1 : index
    %c0_69 = arith.constant 0 : index
    %c0_70 = arith.constant 0 : index
    %120 = vector.load %arg4[%c1_68, %c0_69, %c0_70] : memref<4x1x32xf32, #tpu.memory_space<vmem>>, vector<1x1x32xf32>
    %121 = vector.shape_cast %120 : vector<1x1x32xf32> to vector<1x32xf32>
    %122 = vector.broadcast %121 : vector<1x32xf32> to vector<8x32xf32>
    %123 = arith.addf %119, %122 : vector<8x32xf32>
    %c1_71 = arith.constant 1 : index
    %c0_72 = arith.constant 0 : index
    %c0_73 = arith.constant 0 : index
    %124 = vector.load %arg5[%c1_71, %c0_72, %c0_73] : memref<4x32x32xf32, #tpu.memory_space<vmem>>, vector<1x32x32xf32>
    %125 = vector.shape_cast %124 : vector<1x32x32xf32> to vector<32x32xf32>
    %cst_74 = arith.constant dense<0.000000e+00> : vector<8x32xf32>
    %126 = tpu.matmul %1, %125, %cst_74 {dimension_numbers = #tpu.dot_dimension_numbers<[1], [0], [0], [1], [0, 0, 1, 1], [], []>} : vector<8x32xf32>, vector<32x32xf32>, vector<8x32xf32> -> vector<8x32xf32>
    %c1_75 = arith.constant 1 : index
    %c0_76 = arith.constant 0 : index
    %c0_77 = arith.constant 0 : index
    %127 = vector.load %arg6[%c1_75, %c0_76, %c0_77] : memref<4x1x32xf32, #tpu.memory_space<vmem>>, vector<1x1x32xf32>
    %128 = vector.shape_cast %127 : vector<1x1x32xf32> to vector<1x32xf32>
    %129 = vector.broadcast %128 : vector<1x32xf32> to vector<8x32xf32>
    %130 = arith.addf %126, %129 : vector<8x32xf32>
    %c1_78 = arith.constant 1 : index
    %c0_79 = arith.constant 0 : index
    %c0_80 = arith.constant 0 : index
    %131 = vector.load %arg7[%c1_78, %c0_79, %c0_80] : memref<4x32x32xf32, #tpu.memory_space<vmem>>, vector<1x32x32xf32>
    %132 = vector.shape_cast %131 : vector<1x32x32xf32> to vector<32x32xf32>
    %cst_81 = arith.constant dense<0.000000e+00> : vector<8x32xf32>
    %133 = tpu.matmul %1, %132, %cst_81 {dimension_numbers = #tpu.dot_dimension_numbers<[1], [0], [0], [1], [0, 0, 1, 1], [], []>} : vector<8x32xf32>, vector<32x32xf32>, vector<8x32xf32> -> vector<8x32xf32>
    %c1_82 = arith.constant 1 : index
    %c0_83 = arith.constant 0 : index
    %c0_84 = arith.constant 0 : index
    %134 = vector.load %arg8[%c1_82, %c0_83, %c0_84] : memref<4x1x32xf32, #tpu.memory_space<vmem>>, vector<1x1x32xf32>
    %135 = vector.shape_cast %134 : vector<1x1x32xf32> to vector<1x32xf32>
    %136 = vector.broadcast %135 : vector<1x32xf32> to vector<8x32xf32>
    %137 = arith.addf %133, %136 : vector<8x32xf32>
    %138 = vector.extract_strided_slice %123 {offsets = [0, 0], sizes = [8, 8], strides = [1, 1]} : vector<8x32xf32> to vector<8x8xf32>
    %139 = vector.extract_strided_slice %130 {offsets = [0, 0], sizes = [8, 8], strides = [1, 1]} : vector<8x32xf32> to vector<8x8xf32>
    %140 = vector.extract_strided_slice %137 {offsets = [0, 0], sizes = [8, 8], strides = [1, 1]} : vector<8x32xf32> to vector<8x8xf32>
    %141 = tpu.transpose %139, [1, 0] : vector<8x8xf32> -> vector<8x8xf32>
    %cst_85 = arith.constant dense<0.000000e+00> : vector<8x8xf32>
    %142 = tpu.matmul %138, %141, %cst_85 {dimension_numbers = #tpu.dot_dimension_numbers<[1], [0], [0], [1], [0, 0, 1, 1], [], []>} : vector<8x8xf32>, vector<8x8xf32>, vector<8x8xf32> -> vector<8x8xf32>
    %cst_86 = arith.constant 0.176776692 : f32
    %143 = vector.broadcast %cst_86 : f32 to vector<8x8xf32>
    %144 = arith.mulf %142, %143 : vector<8x8xf32>
    %cst_87 = arith.constant dense<0xFF800000> : vector<8xf32>
    %145 = vector.multi_reduction <maximumf>, %144, %cst_87 [1] : vector<8x8xf32> to vector<8xf32>
    %146 = vector.shape_cast %145 : vector<8xf32> to vector<8x1xf32>
    %147 = vector.broadcast %146 : vector<8x1xf32> to vector<8x8xf32>
    %148 = arith.subf %144, %147 : vector<8x8xf32>
    %149 = math.exp %148 : vector<8x8xf32>
    %cst_88 = arith.constant dense<0.000000e+00> : vector<8xf32>
    %150 = vector.multi_reduction <add>, %149, %cst_88 [1] : vector<8x8xf32> to vector<8xf32>
    %151 = vector.shape_cast %150 : vector<8xf32> to vector<8x1xf32>
    %152 = vector.broadcast %151 : vector<8x1xf32> to vector<8x8xf32>
    %153 = arith.divf %149, %152 : vector<8x8xf32>
    %cst_89 = arith.constant dense<0.000000e+00> : vector<8x8xf32>
    %154 = tpu.matmul %153, %140, %cst_89 {dimension_numbers = #tpu.dot_dimension_numbers<[1], [0], [0], [1], [0, 0, 1, 1], [], []>} : vector<8x8xf32>, vector<8x8xf32>, vector<8x8xf32> -> vector<8x8xf32>
    %155 = vector.extract_strided_slice %123 {offsets = [0, 8], sizes = [8, 8], strides = [1, 1]} : vector<8x32xf32> to vector<8x8xf32>
    %156 = vector.extract_strided_slice %130 {offsets = [0, 8], sizes = [8, 8], strides = [1, 1]} : vector<8x32xf32> to vector<8x8xf32>
    %157 = vector.extract_strided_slice %137 {offsets = [0, 8], sizes = [8, 8], strides = [1, 1]} : vector<8x32xf32> to vector<8x8xf32>
    %158 = tpu.transpose %156, [1, 0] : vector<8x8xf32> -> vector<8x8xf32>
    %cst_90 = arith.constant dense<0.000000e+00> : vector<8x8xf32>
    %159 = tpu.matmul %155, %158, %cst_90 {dimension_numbers = #tpu.dot_dimension_numbers<[1], [0], [0], [1], [0, 0, 1, 1], [], []>} : vector<8x8xf32>, vector<8x8xf32>, vector<8x8xf32> -> vector<8x8xf32>
    %cst_91 = arith.constant 0.176776692 : f32
    %160 = vector.broadcast %cst_91 : f32 to vector<8x8xf32>
    %161 = arith.mulf %159, %160 : vector<8x8xf32>
    %cst_92 = arith.constant dense<0xFF800000> : vector<8xf32>
    %162 = vector.multi_reduction <maximumf>, %161, %cst_92 [1] : vector<8x8xf32> to vector<8xf32>
    %163 = vector.shape_cast %162 : vector<8xf32> to vector<8x1xf32>
    %164 = vector.broadcast %163 : vector<8x1xf32> to vector<8x8xf32>
    %165 = arith.subf %161, %164 : vector<8x8xf32>
    %166 = math.exp %165 : vector<8x8xf32>
    %cst_93 = arith.constant dense<0.000000e+00> : vector<8xf32>
    %167 = vector.multi_reduction <add>, %166, %cst_93 [1] : vector<8x8xf32> to vector<8xf32>
    %168 = vector.shape_cast %167 : vector<8xf32> to vector<8x1xf32>
    %169 = vector.broadcast %168 : vector<8x1xf32> to vector<8x8xf32>
    %170 = arith.divf %166, %169 : vector<8x8xf32>
    %cst_94 = arith.constant dense<0.000000e+00> : vector<8x8xf32>
    %171 = tpu.matmul %170, %157, %cst_94 {dimension_numbers = #tpu.dot_dimension_numbers<[1], [0], [0], [1], [0, 0, 1, 1], [], []>} : vector<8x8xf32>, vector<8x8xf32>, vector<8x8xf32> -> vector<8x8xf32>
    %172 = vector.extract_strided_slice %123 {offsets = [0, 16], sizes = [8, 8], strides = [1, 1]} : vector<8x32xf32> to vector<8x8xf32>
    %173 = vector.extract_strided_slice %130 {offsets = [0, 16], sizes = [8, 8], strides = [1, 1]} : vector<8x32xf32> to vector<8x8xf32>
    %174 = vector.extract_strided_slice %137 {offsets = [0, 16], sizes = [8, 8], strides = [1, 1]} : vector<8x32xf32> to vector<8x8xf32>
    %175 = tpu.transpose %173, [1, 0] : vector<8x8xf32> -> vector<8x8xf32>
    %cst_95 = arith.constant dense<0.000000e+00> : vector<8x8xf32>
    %176 = tpu.matmul %172, %175, %cst_95 {dimension_numbers = #tpu.dot_dimension_numbers<[1], [0], [0], [1], [0, 0, 1, 1], [], []>} : vector<8x8xf32>, vector<8x8xf32>, vector<8x8xf32> -> vector<8x8xf32>
    %cst_96 = arith.constant 0.176776692 : f32
    %177 = vector.broadcast %cst_96 : f32 to vector<8x8xf32>
    %178 = arith.mulf %176, %177 : vector<8x8xf32>
    %cst_97 = arith.constant dense<0xFF800000> : vector<8xf32>
    %179 = vector.multi_reduction <maximumf>, %178, %cst_97 [1] : vector<8x8xf32> to vector<8xf32>
    %180 = vector.shape_cast %179 : vector<8xf32> to vector<8x1xf32>
    %181 = vector.broadcast %180 : vector<8x1xf32> to vector<8x8xf32>
    %182 = arith.subf %178, %181 : vector<8x8xf32>
    %183 = math.exp %182 : vector<8x8xf32>
    %cst_98 = arith.constant dense<0.000000e+00> : vector<8xf32>
    %184 = vector.multi_reduction <add>, %183, %cst_98 [1] : vector<8x8xf32> to vector<8xf32>
    %185 = vector.shape_cast %184 : vector<8xf32> to vector<8x1xf32>
    %186 = vector.broadcast %185 : vector<8x1xf32> to vector<8x8xf32>
    %187 = arith.divf %183, %186 : vector<8x8xf32>
    %cst_99 = arith.constant dense<0.000000e+00> : vector<8x8xf32>
    %188 = tpu.matmul %187, %174, %cst_99 {dimension_numbers = #tpu.dot_dimension_numbers<[1], [0], [0], [1], [0, 0, 1, 1], [], []>} : vector<8x8xf32>, vector<8x8xf32>, vector<8x8xf32> -> vector<8x8xf32>
    %189 = vector.extract_strided_slice %123 {offsets = [0, 24], sizes = [8, 8], strides = [1, 1]} : vector<8x32xf32> to vector<8x8xf32>
    %190 = vector.extract_strided_slice %130 {offsets = [0, 24], sizes = [8, 8], strides = [1, 1]} : vector<8x32xf32> to vector<8x8xf32>
    %191 = vector.extract_strided_slice %137 {offsets = [0, 24], sizes = [8, 8], strides = [1, 1]} : vector<8x32xf32> to vector<8x8xf32>
    %192 = tpu.transpose %190, [1, 0] : vector<8x8xf32> -> vector<8x8xf32>
    %cst_100 = arith.constant dense<0.000000e+00> : vector<8x8xf32>
    %193 = tpu.matmul %189, %192, %cst_100 {dimension_numbers = #tpu.dot_dimension_numbers<[1], [0], [0], [1], [0, 0, 1, 1], [], []>} : vector<8x8xf32>, vector<8x8xf32>, vector<8x8xf32> -> vector<8x8xf32>
    %cst_101 = arith.constant 0.176776692 : f32
    %194 = vector.broadcast %cst_101 : f32 to vector<8x8xf32>
    %195 = arith.mulf %193, %194 : vector<8x8xf32>
    %cst_102 = arith.constant dense<0xFF800000> : vector<8xf32>
    %196 = vector.multi_reduction <maximumf>, %195, %cst_102 [1] : vector<8x8xf32> to vector<8xf32>
    %197 = vector.shape_cast %196 : vector<8xf32> to vector<8x1xf32>
    %198 = vector.broadcast %197 : vector<8x1xf32> to vector<8x8xf32>
    %199 = arith.subf %195, %198 : vector<8x8xf32>
    %200 = math.exp %199 : vector<8x8xf32>
    %cst_103 = arith.constant dense<0.000000e+00> : vector<8xf32>
    %201 = vector.multi_reduction <add>, %200, %cst_103 [1] : vector<8x8xf32> to vector<8xf32>
    %202 = vector.shape_cast %201 : vector<8xf32> to vector<8x1xf32>
    %203 = vector.broadcast %202 : vector<8x1xf32> to vector<8x8xf32>
    %204 = arith.divf %200, %203 : vector<8x8xf32>
    %cst_104 = arith.constant dense<0.000000e+00> : vector<8x8xf32>
    %205 = tpu.matmul %204, %191, %cst_104 {dimension_numbers = #tpu.dot_dimension_numbers<[1], [0], [0], [1], [0, 0, 1, 1], [], []>} : vector<8x8xf32>, vector<8x8xf32>, vector<8x8xf32> -> vector<8x8xf32>
    %206 = tpu.concatenate %154, %171, %188, %205 in 1 : vector<8x8xf32>, vector<8x8xf32>, vector<8x8xf32>, vector<8x8xf32> -> vector<8x32xf32>
    %c1_105 = arith.constant 1 : index
    %c0_106 = arith.constant 0 : index
    %c0_107 = arith.constant 0 : index
    %207 = vector.load %arg9[%c1_105, %c0_106, %c0_107] : memref<4x32x32xf32, #tpu.memory_space<vmem>>, vector<1x32x32xf32>
    %208 = vector.shape_cast %207 : vector<1x32x32xf32> to vector<32x32xf32>
    %cst_108 = arith.constant dense<0.000000e+00> : vector<8x32xf32>
    %209 = tpu.matmul %206, %208, %cst_108 {dimension_numbers = #tpu.dot_dimension_numbers<[1], [0], [0], [1], [0, 0, 1, 1], [], []>} : vector<8x32xf32>, vector<32x32xf32>, vector<8x32xf32> -> vector<8x32xf32>
    %c1_109 = arith.constant 1 : index
    %c0_110 = arith.constant 0 : index
    %c0_111 = arith.constant 0 : index
    %210 = vector.load %arg10[%c1_109, %c0_110, %c0_111] : memref<4x1x32xf32, #tpu.memory_space<vmem>>, vector<1x1x32xf32>
    %211 = vector.shape_cast %210 : vector<1x1x32xf32> to vector<1x32xf32>
    %212 = vector.broadcast %211 : vector<1x32xf32> to vector<8x32xf32>
    %213 = arith.addf %209, %212 : vector<8x32xf32>
    %214 = arith.addf %0, %213 : vector<8x32xf32>
    %c1_112 = arith.constant 1 : index
    %c0_113 = arith.constant 0 : index
    %c0_114 = arith.constant 0 : index
    %215 = vector.load %arg11[%c1_112, %c0_113, %c0_114] : memref<4x32x32xf32, #tpu.memory_space<vmem>>, vector<1x32x32xf32>
    %216 = vector.shape_cast %215 : vector<1x32x32xf32> to vector<32x32xf32>
    %cst_115 = arith.constant dense<0.000000e+00> : vector<8x32xf32>
    %217 = tpu.matmul %214, %216, %cst_115 {dimension_numbers = #tpu.dot_dimension_numbers<[1], [0], [0], [1], [0, 0, 1, 1], [], []>} : vector<8x32xf32>, vector<32x32xf32>, vector<8x32xf32> -> vector<8x32xf32>
    %c1_116 = arith.constant 1 : index
    %c0_117 = arith.constant 0 : index
    %c0_118 = arith.constant 0 : index
    %218 = vector.load %arg12[%c1_116, %c0_117, %c0_118] : memref<4x1x32xf32, #tpu.memory_space<vmem>>, vector<1x1x32xf32>
    %219 = vector.shape_cast %218 : vector<1x1x32xf32> to vector<1x32xf32>
    %220 = vector.broadcast %219 : vector<1x32xf32> to vector<8x32xf32>
    %221 = arith.addf %217, %220 : vector<8x32xf32>
    %cst_119 = arith.constant 0.000000e+00 : f32
    %222 = vector.broadcast %cst_119 : f32 to vector<8x32xf32>
    %223 = arith.maximumf %221, %222 : vector<8x32xf32>
    %c1_120 = arith.constant 1 : index
    %c0_121 = arith.constant 0 : index
    %c0_122 = arith.constant 0 : index
    %224 = vector.load %arg13[%c1_120, %c0_121, %c0_122] : memref<4x32x32xf32, #tpu.memory_space<vmem>>, vector<1x32x32xf32>
    %225 = vector.shape_cast %224 : vector<1x32x32xf32> to vector<32x32xf32>
    %cst_123 = arith.constant dense<0.000000e+00> : vector<8x32xf32>
    %226 = tpu.matmul %223, %225, %cst_123 {dimension_numbers = #tpu.dot_dimension_numbers<[1], [0], [0], [1], [0, 0, 1, 1], [], []>} : vector<8x32xf32>, vector<32x32xf32>, vector<8x32xf32> -> vector<8x32xf32>
    %227 = arith.addf %214, %226 : vector<8x32xf32>
    %c1_124 = arith.constant 1 : index
    %c0_125 = arith.constant 0 : index
    %c0_126 = arith.constant 0 : index
    %228 = vector.load %arg14[%c1_124, %c0_125, %c0_126] : memref<4x1x32xf32, #tpu.memory_space<vmem>>, vector<1x1x32xf32>
    %229 = vector.shape_cast %228 : vector<1x1x32xf32> to vector<1x32xf32>
    %230 = vector.broadcast %229 : vector<1x32xf32> to vector<8x32xf32>
    %231 = arith.addf %227, %230 : vector<8x32xf32>
    %c2 = arith.constant 2 : index
    %c0_127 = arith.constant 0 : index
    %c0_128 = arith.constant 0 : index
    %232 = vector.load %arg3[%c2, %c0_127, %c0_128] : memref<4x32x32xf32, #tpu.memory_space<vmem>>, vector<1x32x32xf32>
    %233 = vector.shape_cast %232 : vector<1x32x32xf32> to vector<32x32xf32>
    %cst_129 = arith.constant dense<0.000000e+00> : vector<8x32xf32>
    %234 = tpu.matmul %1, %233, %cst_129 {dimension_numbers = #tpu.dot_dimension_numbers<[1], [0], [0], [1], [0, 0, 1, 1], [], []>} : vector<8x32xf32>, vector<32x32xf32>, vector<8x32xf32> -> vector<8x32xf32>
    %c2_130 = arith.constant 2 : index
    %c0_131 = arith.constant 0 : index
    %c0_132 = arith.constant 0 : index
    %235 = vector.load %arg4[%c2_130, %c0_131, %c0_132] : memref<4x1x32xf32, #tpu.memory_space<vmem>>, vector<1x1x32xf32>
    %236 = vector.shape_cast %235 : vector<1x1x32xf32> to vector<1x32xf32>
    %237 = vector.broadcast %236 : vector<1x32xf32> to vector<8x32xf32>
    %238 = arith.addf %234, %237 : vector<8x32xf32>
    %c2_133 = arith.constant 2 : index
    %c0_134 = arith.constant 0 : index
    %c0_135 = arith.constant 0 : index
    %239 = vector.load %arg5[%c2_133, %c0_134, %c0_135] : memref<4x32x32xf32, #tpu.memory_space<vmem>>, vector<1x32x32xf32>
    %240 = vector.shape_cast %239 : vector<1x32x32xf32> to vector<32x32xf32>
    %cst_136 = arith.constant dense<0.000000e+00> : vector<8x32xf32>
    %241 = tpu.matmul %0, %240, %cst_136 {dimension_numbers = #tpu.dot_dimension_numbers<[1], [0], [0], [1], [0, 0, 1, 1], [], []>} : vector<8x32xf32>, vector<32x32xf32>, vector<8x32xf32> -> vector<8x32xf32>
    %c2_137 = arith.constant 2 : index
    %c0_138 = arith.constant 0 : index
    %c0_139 = arith.constant 0 : index
    %242 = vector.load %arg6[%c2_137, %c0_138, %c0_139] : memref<4x1x32xf32, #tpu.memory_space<vmem>>, vector<1x1x32xf32>
    %243 = vector.shape_cast %242 : vector<1x1x32xf32> to vector<1x32xf32>
    %244 = vector.broadcast %243 : vector<1x32xf32> to vector<8x32xf32>
    %245 = arith.addf %241, %244 : vector<8x32xf32>
    %c2_140 = arith.constant 2 : index
    %c0_141 = arith.constant 0 : index
    %c0_142 = arith.constant 0 : index
    %246 = vector.load %arg7[%c2_140, %c0_141, %c0_142] : memref<4x32x32xf32, #tpu.memory_space<vmem>>, vector<1x32x32xf32>
    %247 = vector.shape_cast %246 : vector<1x32x32xf32> to vector<32x32xf32>
    %cst_143 = arith.constant dense<0.000000e+00> : vector<8x32xf32>
    %248 = tpu.matmul %0, %247, %cst_143 {dimension_numbers = #tpu.dot_dimension_numbers<[1], [0], [0], [1], [0, 0, 1, 1], [], []>} : vector<8x32xf32>, vector<32x32xf32>, vector<8x32xf32> -> vector<8x32xf32>
    %c2_144 = arith.constant 2 : index
    %c0_145 = arith.constant 0 : index
    %c0_146 = arith.constant 0 : index
    %249 = vector.load %arg8[%c2_144, %c0_145, %c0_146] : memref<4x1x32xf32, #tpu.memory_space<vmem>>, vector<1x1x32xf32>
    %250 = vector.shape_cast %249 : vector<1x1x32xf32> to vector<1x32xf32>
    %251 = vector.broadcast %250 : vector<1x32xf32> to vector<8x32xf32>
    %252 = arith.addf %248, %251 : vector<8x32xf32>
    %253 = vector.extract_strided_slice %238 {offsets = [0, 0], sizes = [8, 8], strides = [1, 1]} : vector<8x32xf32> to vector<8x8xf32>
    %254 = vector.extract_strided_slice %245 {offsets = [0, 0], sizes = [8, 8], strides = [1, 1]} : vector<8x32xf32> to vector<8x8xf32>
    %255 = vector.extract_strided_slice %252 {offsets = [0, 0], sizes = [8, 8], strides = [1, 1]} : vector<8x32xf32> to vector<8x8xf32>
    %256 = tpu.transpose %254, [1, 0] : vector<8x8xf32> -> vector<8x8xf32>
    %cst_147 = arith.constant dense<0.000000e+00> : vector<8x8xf32>
    %257 = tpu.matmul %253, %256, %cst_147 {dimension_numbers = #tpu.dot_dimension_numbers<[1], [0], [0], [1], [0, 0, 1, 1], [], []>} : vector<8x8xf32>, vector<8x8xf32>, vector<8x8xf32> -> vector<8x8xf32>
    %cst_148 = arith.constant 0.176776692 : f32
    %258 = vector.broadcast %cst_148 : f32 to vector<8x8xf32>
    %259 = arith.mulf %257, %258 : vector<8x8xf32>
    %cst_149 = arith.constant dense<0xFF800000> : vector<8xf32>
    %260 = vector.multi_reduction <maximumf>, %259, %cst_149 [1] : vector<8x8xf32> to vector<8xf32>
    %261 = vector.shape_cast %260 : vector<8xf32> to vector<8x1xf32>
    %262 = vector.broadcast %261 : vector<8x1xf32> to vector<8x8xf32>
    %263 = arith.subf %259, %262 : vector<8x8xf32>
    %264 = math.exp %263 : vector<8x8xf32>
    %cst_150 = arith.constant dense<0.000000e+00> : vector<8xf32>
    %265 = vector.multi_reduction <add>, %264, %cst_150 [1] : vector<8x8xf32> to vector<8xf32>
    %266 = vector.shape_cast %265 : vector<8xf32> to vector<8x1xf32>
    %267 = vector.broadcast %266 : vector<8x1xf32> to vector<8x8xf32>
    %268 = arith.divf %264, %267 : vector<8x8xf32>
    %cst_151 = arith.constant dense<0.000000e+00> : vector<8x8xf32>
    %269 = tpu.matmul %268, %255, %cst_151 {dimension_numbers = #tpu.dot_dimension_numbers<[1], [0], [0], [1], [0, 0, 1, 1], [], []>} : vector<8x8xf32>, vector<8x8xf32>, vector<8x8xf32> -> vector<8x8xf32>
    %270 = vector.extract_strided_slice %238 {offsets = [0, 8], sizes = [8, 8], strides = [1, 1]} : vector<8x32xf32> to vector<8x8xf32>
    %271 = vector.extract_strided_slice %245 {offsets = [0, 8], sizes = [8, 8], strides = [1, 1]} : vector<8x32xf32> to vector<8x8xf32>
    %272 = vector.extract_strided_slice %252 {offsets = [0, 8], sizes = [8, 8], strides = [1, 1]} : vector<8x32xf32> to vector<8x8xf32>
    %273 = tpu.transpose %271, [1, 0] : vector<8x8xf32> -> vector<8x8xf32>
    %cst_152 = arith.constant dense<0.000000e+00> : vector<8x8xf32>
    %274 = tpu.matmul %270, %273, %cst_152 {dimension_numbers = #tpu.dot_dimension_numbers<[1], [0], [0], [1], [0, 0, 1, 1], [], []>} : vector<8x8xf32>, vector<8x8xf32>, vector<8x8xf32> -> vector<8x8xf32>
    %cst_153 = arith.constant 0.176776692 : f32
    %275 = vector.broadcast %cst_153 : f32 to vector<8x8xf32>
    %276 = arith.mulf %274, %275 : vector<8x8xf32>
    %cst_154 = arith.constant dense<0xFF800000> : vector<8xf32>
    %277 = vector.multi_reduction <maximumf>, %276, %cst_154 [1] : vector<8x8xf32> to vector<8xf32>
    %278 = vector.shape_cast %277 : vector<8xf32> to vector<8x1xf32>
    %279 = vector.broadcast %278 : vector<8x1xf32> to vector<8x8xf32>
    %280 = arith.subf %276, %279 : vector<8x8xf32>
    %281 = math.exp %280 : vector<8x8xf32>
    %cst_155 = arith.constant dense<0.000000e+00> : vector<8xf32>
    %282 = vector.multi_reduction <add>, %281, %cst_155 [1] : vector<8x8xf32> to vector<8xf32>
    %283 = vector.shape_cast %282 : vector<8xf32> to vector<8x1xf32>
    %284 = vector.broadcast %283 : vector<8x1xf32> to vector<8x8xf32>
    %285 = arith.divf %281, %284 : vector<8x8xf32>
    %cst_156 = arith.constant dense<0.000000e+00> : vector<8x8xf32>
    %286 = tpu.matmul %285, %272, %cst_156 {dimension_numbers = #tpu.dot_dimension_numbers<[1], [0], [0], [1], [0, 0, 1, 1], [], []>} : vector<8x8xf32>, vector<8x8xf32>, vector<8x8xf32> -> vector<8x8xf32>
    %287 = vector.extract_strided_slice %238 {offsets = [0, 16], sizes = [8, 8], strides = [1, 1]} : vector<8x32xf32> to vector<8x8xf32>
    %288 = vector.extract_strided_slice %245 {offsets = [0, 16], sizes = [8, 8], strides = [1, 1]} : vector<8x32xf32> to vector<8x8xf32>
    %289 = vector.extract_strided_slice %252 {offsets = [0, 16], sizes = [8, 8], strides = [1, 1]} : vector<8x32xf32> to vector<8x8xf32>
    %290 = tpu.transpose %288, [1, 0] : vector<8x8xf32> -> vector<8x8xf32>
    %cst_157 = arith.constant dense<0.000000e+00> : vector<8x8xf32>
    %291 = tpu.matmul %287, %290, %cst_157 {dimension_numbers = #tpu.dot_dimension_numbers<[1], [0], [0], [1], [0, 0, 1, 1], [], []>} : vector<8x8xf32>, vector<8x8xf32>, vector<8x8xf32> -> vector<8x8xf32>
    %cst_158 = arith.constant 0.176776692 : f32
    %292 = vector.broadcast %cst_158 : f32 to vector<8x8xf32>
    %293 = arith.mulf %291, %292 : vector<8x8xf32>
    %cst_159 = arith.constant dense<0xFF800000> : vector<8xf32>
    %294 = vector.multi_reduction <maximumf>, %293, %cst_159 [1] : vector<8x8xf32> to vector<8xf32>
    %295 = vector.shape_cast %294 : vector<8xf32> to vector<8x1xf32>
    %296 = vector.broadcast %295 : vector<8x1xf32> to vector<8x8xf32>
    %297 = arith.subf %293, %296 : vector<8x8xf32>
    %298 = math.exp %297 : vector<8x8xf32>
    %cst_160 = arith.constant dense<0.000000e+00> : vector<8xf32>
    %299 = vector.multi_reduction <add>, %298, %cst_160 [1] : vector<8x8xf32> to vector<8xf32>
    %300 = vector.shape_cast %299 : vector<8xf32> to vector<8x1xf32>
    %301 = vector.broadcast %300 : vector<8x1xf32> to vector<8x8xf32>
    %302 = arith.divf %298, %301 : vector<8x8xf32>
    %cst_161 = arith.constant dense<0.000000e+00> : vector<8x8xf32>
    %303 = tpu.matmul %302, %289, %cst_161 {dimension_numbers = #tpu.dot_dimension_numbers<[1], [0], [0], [1], [0, 0, 1, 1], [], []>} : vector<8x8xf32>, vector<8x8xf32>, vector<8x8xf32> -> vector<8x8xf32>
    %304 = vector.extract_strided_slice %238 {offsets = [0, 24], sizes = [8, 8], strides = [1, 1]} : vector<8x32xf32> to vector<8x8xf32>
    %305 = vector.extract_strided_slice %245 {offsets = [0, 24], sizes = [8, 8], strides = [1, 1]} : vector<8x32xf32> to vector<8x8xf32>
    %306 = vector.extract_strided_slice %252 {offsets = [0, 24], sizes = [8, 8], strides = [1, 1]} : vector<8x32xf32> to vector<8x8xf32>
    %307 = tpu.transpose %305, [1, 0] : vector<8x8xf32> -> vector<8x8xf32>
    %cst_162 = arith.constant dense<0.000000e+00> : vector<8x8xf32>
    %308 = tpu.matmul %304, %307, %cst_162 {dimension_numbers = #tpu.dot_dimension_numbers<[1], [0], [0], [1], [0, 0, 1, 1], [], []>} : vector<8x8xf32>, vector<8x8xf32>, vector<8x8xf32> -> vector<8x8xf32>
    %cst_163 = arith.constant 0.176776692 : f32
    %309 = vector.broadcast %cst_163 : f32 to vector<8x8xf32>
    %310 = arith.mulf %308, %309 : vector<8x8xf32>
    %cst_164 = arith.constant dense<0xFF800000> : vector<8xf32>
    %311 = vector.multi_reduction <maximumf>, %310, %cst_164 [1] : vector<8x8xf32> to vector<8xf32>
    %312 = vector.shape_cast %311 : vector<8xf32> to vector<8x1xf32>
    %313 = vector.broadcast %312 : vector<8x1xf32> to vector<8x8xf32>
    %314 = arith.subf %310, %313 : vector<8x8xf32>
    %315 = math.exp %314 : vector<8x8xf32>
    %cst_165 = arith.constant dense<0.000000e+00> : vector<8xf32>
    %316 = vector.multi_reduction <add>, %315, %cst_165 [1] : vector<8x8xf32> to vector<8xf32>
    %317 = vector.shape_cast %316 : vector<8xf32> to vector<8x1xf32>
    %318 = vector.broadcast %317 : vector<8x1xf32> to vector<8x8xf32>
    %319 = arith.divf %315, %318 : vector<8x8xf32>
    %cst_166 = arith.constant dense<0.000000e+00> : vector<8x8xf32>
    %320 = tpu.matmul %319, %306, %cst_166 {dimension_numbers = #tpu.dot_dimension_numbers<[1], [0], [0], [1], [0, 0, 1, 1], [], []>} : vector<8x8xf32>, vector<8x8xf32>, vector<8x8xf32> -> vector<8x8xf32>
    %321 = tpu.concatenate %269, %286, %303, %320 in 1 : vector<8x8xf32>, vector<8x8xf32>, vector<8x8xf32>, vector<8x8xf32> -> vector<8x32xf32>
    %c2_167 = arith.constant 2 : index
    %c0_168 = arith.constant 0 : index
    %c0_169 = arith.constant 0 : index
    %322 = vector.load %arg9[%c2_167, %c0_168, %c0_169] : memref<4x32x32xf32, #tpu.memory_space<vmem>>, vector<1x32x32xf32>
    %323 = vector.shape_cast %322 : vector<1x32x32xf32> to vector<32x32xf32>
    %cst_170 = arith.constant dense<0.000000e+00> : vector<8x32xf32>
    %324 = tpu.matmul %321, %323, %cst_170 {dimension_numbers = #tpu.dot_dimension_numbers<[1], [0], [0], [1], [0, 0, 1, 1], [], []>} : vector<8x32xf32>, vector<32x32xf32>, vector<8x32xf32> -> vector<8x32xf32>
    %c2_171 = arith.constant 2 : index
    %c0_172 = arith.constant 0 : index
    %c0_173 = arith.constant 0 : index
    %325 = vector.load %arg10[%c2_171, %c0_172, %c0_173] : memref<4x1x32xf32, #tpu.memory_space<vmem>>, vector<1x1x32xf32>
    %326 = vector.shape_cast %325 : vector<1x1x32xf32> to vector<1x32xf32>
    %327 = vector.broadcast %326 : vector<1x32xf32> to vector<8x32xf32>
    %328 = arith.addf %324, %327 : vector<8x32xf32>
    %329 = arith.addf %1, %328 : vector<8x32xf32>
    %c2_174 = arith.constant 2 : index
    %c0_175 = arith.constant 0 : index
    %c0_176 = arith.constant 0 : index
    %330 = vector.load %arg11[%c2_174, %c0_175, %c0_176] : memref<4x32x32xf32, #tpu.memory_space<vmem>>, vector<1x32x32xf32>
    %331 = vector.shape_cast %330 : vector<1x32x32xf32> to vector<32x32xf32>
    %cst_177 = arith.constant dense<0.000000e+00> : vector<8x32xf32>
    %332 = tpu.matmul %329, %331, %cst_177 {dimension_numbers = #tpu.dot_dimension_numbers<[1], [0], [0], [1], [0, 0, 1, 1], [], []>} : vector<8x32xf32>, vector<32x32xf32>, vector<8x32xf32> -> vector<8x32xf32>
    %c2_178 = arith.constant 2 : index
    %c0_179 = arith.constant 0 : index
    %c0_180 = arith.constant 0 : index
    %333 = vector.load %arg12[%c2_178, %c0_179, %c0_180] : memref<4x1x32xf32, #tpu.memory_space<vmem>>, vector<1x1x32xf32>
    %334 = vector.shape_cast %333 : vector<1x1x32xf32> to vector<1x32xf32>
    %335 = vector.broadcast %334 : vector<1x32xf32> to vector<8x32xf32>
    %336 = arith.addf %332, %335 : vector<8x32xf32>
    %cst_181 = arith.constant 0.000000e+00 : f32
    %337 = vector.broadcast %cst_181 : f32 to vector<8x32xf32>
    %338 = arith.maximumf %336, %337 : vector<8x32xf32>
    %c2_182 = arith.constant 2 : index
    %c0_183 = arith.constant 0 : index
    %c0_184 = arith.constant 0 : index
    %339 = vector.load %arg13[%c2_182, %c0_183, %c0_184] : memref<4x32x32xf32, #tpu.memory_space<vmem>>, vector<1x32x32xf32>
    %340 = vector.shape_cast %339 : vector<1x32x32xf32> to vector<32x32xf32>
    %cst_185 = arith.constant dense<0.000000e+00> : vector<8x32xf32>
    %341 = tpu.matmul %338, %340, %cst_185 {dimension_numbers = #tpu.dot_dimension_numbers<[1], [0], [0], [1], [0, 0, 1, 1], [], []>} : vector<8x32xf32>, vector<32x32xf32>, vector<8x32xf32> -> vector<8x32xf32>
    %342 = arith.addf %329, %341 : vector<8x32xf32>
    %c2_186 = arith.constant 2 : index
    %c0_187 = arith.constant 0 : index
    %c0_188 = arith.constant 0 : index
    %343 = vector.load %arg14[%c2_186, %c0_187, %c0_188] : memref<4x1x32xf32, #tpu.memory_space<vmem>>, vector<1x1x32xf32>
    %344 = vector.shape_cast %343 : vector<1x1x32xf32> to vector<1x32xf32>
    %345 = vector.broadcast %344 : vector<1x32xf32> to vector<8x32xf32>
    %346 = arith.addf %342, %345 : vector<8x32xf32>
    %c3 = arith.constant 3 : index
    %c0_189 = arith.constant 0 : index
    %c0_190 = arith.constant 0 : index
    %347 = vector.load %arg3[%c3, %c0_189, %c0_190] : memref<4x32x32xf32, #tpu.memory_space<vmem>>, vector<1x32x32xf32>
    %348 = vector.shape_cast %347 : vector<1x32x32xf32> to vector<32x32xf32>
    %cst_191 = arith.constant dense<0.000000e+00> : vector<8x32xf32>
    %349 = tpu.matmul %1, %348, %cst_191 {dimension_numbers = #tpu.dot_dimension_numbers<[1], [0], [0], [1], [0, 0, 1, 1], [], []>} : vector<8x32xf32>, vector<32x32xf32>, vector<8x32xf32> -> vector<8x32xf32>
    %c3_192 = arith.constant 3 : index
    %c0_193 = arith.constant 0 : index
    %c0_194 = arith.constant 0 : index
    %350 = vector.load %arg4[%c3_192, %c0_193, %c0_194] : memref<4x1x32xf32, #tpu.memory_space<vmem>>, vector<1x1x32xf32>
    %351 = vector.shape_cast %350 : vector<1x1x32xf32> to vector<1x32xf32>
    %352 = vector.broadcast %351 : vector<1x32xf32> to vector<8x32xf32>
    %353 = arith.addf %349, %352 : vector<8x32xf32>
    %c3_195 = arith.constant 3 : index
    %c0_196 = arith.constant 0 : index
    %c0_197 = arith.constant 0 : index
    %354 = vector.load %arg5[%c3_195, %c0_196, %c0_197] : memref<4x32x32xf32, #tpu.memory_space<vmem>>, vector<1x32x32xf32>
    %355 = vector.shape_cast %354 : vector<1x32x32xf32> to vector<32x32xf32>
    %cst_198 = arith.constant dense<0.000000e+00> : vector<8x32xf32>
    %356 = tpu.matmul %1, %355, %cst_198 {dimension_numbers = #tpu.dot_dimension_numbers<[1], [0], [0], [1], [0, 0, 1, 1], [], []>} : vector<8x32xf32>, vector<32x32xf32>, vector<8x32xf32> -> vector<8x32xf32>
    %c3_199 = arith.constant 3 : index
    %c0_200 = arith.constant 0 : index
    %c0_201 = arith.constant 0 : index
    %357 = vector.load %arg6[%c3_199, %c0_200, %c0_201] : memref<4x1x32xf32, #tpu.memory_space<vmem>>, vector<1x1x32xf32>
    %358 = vector.shape_cast %357 : vector<1x1x32xf32> to vector<1x32xf32>
    %359 = vector.broadcast %358 : vector<1x32xf32> to vector<8x32xf32>
    %360 = arith.addf %356, %359 : vector<8x32xf32>
    %c3_202 = arith.constant 3 : index
    %c0_203 = arith.constant 0 : index
    %c0_204 = arith.constant 0 : index
    %361 = vector.load %arg7[%c3_202, %c0_203, %c0_204] : memref<4x32x32xf32, #tpu.memory_space<vmem>>, vector<1x32x32xf32>
    %362 = vector.shape_cast %361 : vector<1x32x32xf32> to vector<32x32xf32>
    %cst_205 = arith.constant dense<0.000000e+00> : vector<8x32xf32>
    %363 = tpu.matmul %1, %362, %cst_205 {dimension_numbers = #tpu.dot_dimension_numbers<[1], [0], [0], [1], [0, 0, 1, 1], [], []>} : vector<8x32xf32>, vector<32x32xf32>, vector<8x32xf32> -> vector<8x32xf32>
    %c3_206 = arith.constant 3 : index
    %c0_207 = arith.constant 0 : index
    %c0_208 = arith.constant 0 : index
    %364 = vector.load %arg8[%c3_206, %c0_207, %c0_208] : memref<4x1x32xf32, #tpu.memory_space<vmem>>, vector<1x1x32xf32>
    %365 = vector.shape_cast %364 : vector<1x1x32xf32> to vector<1x32xf32>
    %366 = vector.broadcast %365 : vector<1x32xf32> to vector<8x32xf32>
    %367 = arith.addf %363, %366 : vector<8x32xf32>
    %368 = vector.extract_strided_slice %353 {offsets = [0, 0], sizes = [8, 8], strides = [1, 1]} : vector<8x32xf32> to vector<8x8xf32>
    %369 = vector.extract_strided_slice %360 {offsets = [0, 0], sizes = [8, 8], strides = [1, 1]} : vector<8x32xf32> to vector<8x8xf32>
    %370 = vector.extract_strided_slice %367 {offsets = [0, 0], sizes = [8, 8], strides = [1, 1]} : vector<8x32xf32> to vector<8x8xf32>
    %371 = tpu.transpose %369, [1, 0] : vector<8x8xf32> -> vector<8x8xf32>
    %cst_209 = arith.constant dense<0.000000e+00> : vector<8x8xf32>
    %372 = tpu.matmul %368, %371, %cst_209 {dimension_numbers = #tpu.dot_dimension_numbers<[1], [0], [0], [1], [0, 0, 1, 1], [], []>} : vector<8x8xf32>, vector<8x8xf32>, vector<8x8xf32> -> vector<8x8xf32>
    %cst_210 = arith.constant 0.176776692 : f32
    %373 = vector.broadcast %cst_210 : f32 to vector<8x8xf32>
    %374 = arith.mulf %372, %373 : vector<8x8xf32>
    %cst_211 = arith.constant dense<0xFF800000> : vector<8xf32>
    %375 = vector.multi_reduction <maximumf>, %374, %cst_211 [1] : vector<8x8xf32> to vector<8xf32>
    %376 = vector.shape_cast %375 : vector<8xf32> to vector<8x1xf32>
    %377 = vector.broadcast %376 : vector<8x1xf32> to vector<8x8xf32>
    %378 = arith.subf %374, %377 : vector<8x8xf32>
    %379 = math.exp %378 : vector<8x8xf32>
    %cst_212 = arith.constant dense<0.000000e+00> : vector<8xf32>
    %380 = vector.multi_reduction <add>, %379, %cst_212 [1] : vector<8x8xf32> to vector<8xf32>
    %381 = vector.shape_cast %380 : vector<8xf32> to vector<8x1xf32>
    %382 = vector.broadcast %381 : vector<8x1xf32> to vector<8x8xf32>
    %383 = arith.divf %379, %382 : vector<8x8xf32>
    %cst_213 = arith.constant dense<0.000000e+00> : vector<8x8xf32>
    %384 = tpu.matmul %383, %370, %cst_213 {dimension_numbers = #tpu.dot_dimension_numbers<[1], [0], [0], [1], [0, 0, 1, 1], [], []>} : vector<8x8xf32>, vector<8x8xf32>, vector<8x8xf32> -> vector<8x8xf32>
    %385 = vector.extract_strided_slice %353 {offsets = [0, 8], sizes = [8, 8], strides = [1, 1]} : vector<8x32xf32> to vector<8x8xf32>
    %386 = vector.extract_strided_slice %360 {offsets = [0, 8], sizes = [8, 8], strides = [1, 1]} : vector<8x32xf32> to vector<8x8xf32>
    %387 = vector.extract_strided_slice %367 {offsets = [0, 8], sizes = [8, 8], strides = [1, 1]} : vector<8x32xf32> to vector<8x8xf32>
    %388 = tpu.transpose %386, [1, 0] : vector<8x8xf32> -> vector<8x8xf32>
    %cst_214 = arith.constant dense<0.000000e+00> : vector<8x8xf32>
    %389 = tpu.matmul %385, %388, %cst_214 {dimension_numbers = #tpu.dot_dimension_numbers<[1], [0], [0], [1], [0, 0, 1, 1], [], []>} : vector<8x8xf32>, vector<8x8xf32>, vector<8x8xf32> -> vector<8x8xf32>
    %cst_215 = arith.constant 0.176776692 : f32
    %390 = vector.broadcast %cst_215 : f32 to vector<8x8xf32>
    %391 = arith.mulf %389, %390 : vector<8x8xf32>
    %cst_216 = arith.constant dense<0xFF800000> : vector<8xf32>
    %392 = vector.multi_reduction <maximumf>, %391, %cst_216 [1] : vector<8x8xf32> to vector<8xf32>
    %393 = vector.shape_cast %392 : vector<8xf32> to vector<8x1xf32>
    %394 = vector.broadcast %393 : vector<8x1xf32> to vector<8x8xf32>
    %395 = arith.subf %391, %394 : vector<8x8xf32>
    %396 = math.exp %395 : vector<8x8xf32>
    %cst_217 = arith.constant dense<0.000000e+00> : vector<8xf32>
    %397 = vector.multi_reduction <add>, %396, %cst_217 [1] : vector<8x8xf32> to vector<8xf32>
    %398 = vector.shape_cast %397 : vector<8xf32> to vector<8x1xf32>
    %399 = vector.broadcast %398 : vector<8x1xf32> to vector<8x8xf32>
    %400 = arith.divf %396, %399 : vector<8x8xf32>
    %cst_218 = arith.constant dense<0.000000e+00> : vector<8x8xf32>
    %401 = tpu.matmul %400, %387, %cst_218 {dimension_numbers = #tpu.dot_dimension_numbers<[1], [0], [0], [1], [0, 0, 1, 1], [], []>} : vector<8x8xf32>, vector<8x8xf32>, vector<8x8xf32> -> vector<8x8xf32>
    %402 = vector.extract_strided_slice %353 {offsets = [0, 16], sizes = [8, 8], strides = [1, 1]} : vector<8x32xf32> to vector<8x8xf32>
    %403 = vector.extract_strided_slice %360 {offsets = [0, 16], sizes = [8, 8], strides = [1, 1]} : vector<8x32xf32> to vector<8x8xf32>
    %404 = vector.extract_strided_slice %367 {offsets = [0, 16], sizes = [8, 8], strides = [1, 1]} : vector<8x32xf32> to vector<8x8xf32>
    %405 = tpu.transpose %403, [1, 0] : vector<8x8xf32> -> vector<8x8xf32>
    %cst_219 = arith.constant dense<0.000000e+00> : vector<8x8xf32>
    %406 = tpu.matmul %402, %405, %cst_219 {dimension_numbers = #tpu.dot_dimension_numbers<[1], [0], [0], [1], [0, 0, 1, 1], [], []>} : vector<8x8xf32>, vector<8x8xf32>, vector<8x8xf32> -> vector<8x8xf32>
    %cst_220 = arith.constant 0.176776692 : f32
    %407 = vector.broadcast %cst_220 : f32 to vector<8x8xf32>
    %408 = arith.mulf %406, %407 : vector<8x8xf32>
    %cst_221 = arith.constant dense<0xFF800000> : vector<8xf32>
    %409 = vector.multi_reduction <maximumf>, %408, %cst_221 [1] : vector<8x8xf32> to vector<8xf32>
    %410 = vector.shape_cast %409 : vector<8xf32> to vector<8x1xf32>
    %411 = vector.broadcast %410 : vector<8x1xf32> to vector<8x8xf32>
    %412 = arith.subf %408, %411 : vector<8x8xf32>
    %413 = math.exp %412 : vector<8x8xf32>
    %cst_222 = arith.constant dense<0.000000e+00> : vector<8xf32>
    %414 = vector.multi_reduction <add>, %413, %cst_222 [1] : vector<8x8xf32> to vector<8xf32>
    %415 = vector.shape_cast %414 : vector<8xf32> to vector<8x1xf32>
    %416 = vector.broadcast %415 : vector<8x1xf32> to vector<8x8xf32>
    %417 = arith.divf %413, %416 : vector<8x8xf32>
    %cst_223 = arith.constant dense<0.000000e+00> : vector<8x8xf32>
    %418 = tpu.matmul %417, %404, %cst_223 {dimension_numbers = #tpu.dot_dimension_numbers<[1], [0], [0], [1], [0, 0, 1, 1], [], []>} : vector<8x8xf32>, vector<8x8xf32>, vector<8x8xf32> -> vector<8x8xf32>
    %419 = vector.extract_strided_slice %353 {offsets = [0, 24], sizes = [8, 8], strides = [1, 1]} : vector<8x32xf32> to vector<8x8xf32>
    %420 = vector.extract_strided_slice %360 {offsets = [0, 24], sizes = [8, 8], strides = [1, 1]} : vector<8x32xf32> to vector<8x8xf32>
    %421 = vector.extract_strided_slice %367 {offsets = [0, 24], sizes = [8, 8], strides = [1, 1]} : vector<8x32xf32> to vector<8x8xf32>
    %422 = tpu.transpose %420, [1, 0] : vector<8x8xf32> -> vector<8x8xf32>
    %cst_224 = arith.constant dense<0.000000e+00> : vector<8x8xf32>
    %423 = tpu.matmul %419, %422, %cst_224 {dimension_numbers = #tpu.dot_dimension_numbers<[1], [0], [0], [1], [0, 0, 1, 1], [], []>} : vector<8x8xf32>, vector<8x8xf32>, vector<8x8xf32> -> vector<8x8xf32>
    %cst_225 = arith.constant 0.176776692 : f32
    %424 = vector.broadcast %cst_225 : f32 to vector<8x8xf32>
    %425 = arith.mulf %423, %424 : vector<8x8xf32>
    %cst_226 = arith.constant dense<0xFF800000> : vector<8xf32>
    %426 = vector.multi_reduction <maximumf>, %425, %cst_226 [1] : vector<8x8xf32> to vector<8xf32>
    %427 = vector.shape_cast %426 : vector<8xf32> to vector<8x1xf32>
    %428 = vector.broadcast %427 : vector<8x1xf32> to vector<8x8xf32>
    %429 = arith.subf %425, %428 : vector<8x8xf32>
    %430 = math.exp %429 : vector<8x8xf32>
    %cst_227 = arith.constant dense<0.000000e+00> : vector<8xf32>
    %431 = vector.multi_reduction <add>, %430, %cst_227 [1] : vector<8x8xf32> to vector<8xf32>
    %432 = vector.shape_cast %431 : vector<8xf32> to vector<8x1xf32>
    %433 = vector.broadcast %432 : vector<8x1xf32> to vector<8x8xf32>
    %434 = arith.divf %430, %433 : vector<8x8xf32>
    %cst_228 = arith.constant dense<0.000000e+00> : vector<8x8xf32>
    %435 = tpu.matmul %434, %421, %cst_228 {dimension_numbers = #tpu.dot_dimension_numbers<[1], [0], [0], [1], [0, 0, 1, 1], [], []>} : vector<8x8xf32>, vector<8x8xf32>, vector<8x8xf32> -> vector<8x8xf32>
    %436 = tpu.concatenate %384, %401, %418, %435 in 1 : vector<8x8xf32>, vector<8x8xf32>, vector<8x8xf32>, vector<8x8xf32> -> vector<8x32xf32>
    %c3_229 = arith.constant 3 : index
    %c0_230 = arith.constant 0 : index
    %c0_231 = arith.constant 0 : index
    %437 = vector.load %arg9[%c3_229, %c0_230, %c0_231] : memref<4x32x32xf32, #tpu.memory_space<vmem>>, vector<1x32x32xf32>
    %438 = vector.shape_cast %437 : vector<1x32x32xf32> to vector<32x32xf32>
    %cst_232 = arith.constant dense<0.000000e+00> : vector<8x32xf32>
    %439 = tpu.matmul %436, %438, %cst_232 {dimension_numbers = #tpu.dot_dimension_numbers<[1], [0], [0], [1], [0, 0, 1, 1], [], []>} : vector<8x32xf32>, vector<32x32xf32>, vector<8x32xf32> -> vector<8x32xf32>
    %c3_233 = arith.constant 3 : index
    %c0_234 = arith.constant 0 : index
    %c0_235 = arith.constant 0 : index
    %440 = vector.load %arg10[%c3_233, %c0_234, %c0_235] : memref<4x1x32xf32, #tpu.memory_space<vmem>>, vector<1x1x32xf32>
    %441 = vector.shape_cast %440 : vector<1x1x32xf32> to vector<1x32xf32>
    %442 = vector.broadcast %441 : vector<1x32xf32> to vector<8x32xf32>
    %443 = arith.addf %439, %442 : vector<8x32xf32>
    %444 = arith.addf %1, %443 : vector<8x32xf32>
    %c3_236 = arith.constant 3 : index
    %c0_237 = arith.constant 0 : index
    %c0_238 = arith.constant 0 : index
    %445 = vector.load %arg11[%c3_236, %c0_237, %c0_238] : memref<4x32x32xf32, #tpu.memory_space<vmem>>, vector<1x32x32xf32>
    %446 = vector.shape_cast %445 : vector<1x32x32xf32> to vector<32x32xf32>
    %cst_239 = arith.constant dense<0.000000e+00> : vector<8x32xf32>
    %447 = tpu.matmul %444, %446, %cst_239 {dimension_numbers = #tpu.dot_dimension_numbers<[1], [0], [0], [1], [0, 0, 1, 1], [], []>} : vector<8x32xf32>, vector<32x32xf32>, vector<8x32xf32> -> vector<8x32xf32>
    %c3_240 = arith.constant 3 : index
    %c0_241 = arith.constant 0 : index
    %c0_242 = arith.constant 0 : index
    %448 = vector.load %arg12[%c3_240, %c0_241, %c0_242] : memref<4x1x32xf32, #tpu.memory_space<vmem>>, vector<1x1x32xf32>
    %449 = vector.shape_cast %448 : vector<1x1x32xf32> to vector<1x32xf32>
    %450 = vector.broadcast %449 : vector<1x32xf32> to vector<8x32xf32>
    %451 = arith.addf %447, %450 : vector<8x32xf32>
    %cst_243 = arith.constant 0.000000e+00 : f32
    %452 = vector.broadcast %cst_243 : f32 to vector<8x32xf32>
    %453 = arith.maximumf %451, %452 : vector<8x32xf32>
    %c3_244 = arith.constant 3 : index
    %c0_245 = arith.constant 0 : index
    %c0_246 = arith.constant 0 : index
    %454 = vector.load %arg13[%c3_244, %c0_245, %c0_246] : memref<4x32x32xf32, #tpu.memory_space<vmem>>, vector<1x32x32xf32>
    %455 = vector.shape_cast %454 : vector<1x32x32xf32> to vector<32x32xf32>
    %cst_247 = arith.constant dense<0.000000e+00> : vector<8x32xf32>
    %456 = tpu.matmul %453, %455, %cst_247 {dimension_numbers = #tpu.dot_dimension_numbers<[1], [0], [0], [1], [0, 0, 1, 1], [], []>} : vector<8x32xf32>, vector<32x32xf32>, vector<8x32xf32> -> vector<8x32xf32>
    %457 = arith.addf %444, %456 : vector<8x32xf32>
    %c3_248 = arith.constant 3 : index
    %c0_249 = arith.constant 0 : index
    %c0_250 = arith.constant 0 : index
    %458 = vector.load %arg14[%c3_248, %c0_249, %c0_250] : memref<4x1x32xf32, #tpu.memory_space<vmem>>, vector<1x1x32xf32>
    %459 = vector.shape_cast %458 : vector<1x1x32xf32> to vector<1x32xf32>
    %460 = vector.broadcast %459 : vector<1x32xf32> to vector<8x32xf32>
    %461 = arith.addf %457, %460 : vector<8x32xf32>
    %c0_251 = arith.constant 0 : index
    %c0_252 = arith.constant 0 : index
    %c0_253 = arith.constant 0 : index
    %462 = vector.load %arg15[%c0_251, %c0_252, %c0_253] : memref<4x32x32xf32, #tpu.memory_space<vmem>>, vector<1x32x32xf32>
    %463 = vector.shape_cast %462 : vector<1x32x32xf32> to vector<32x32xf32>
    %cst_254 = arith.constant dense<0.000000e+00> : vector<8x32xf32>
    %464 = tpu.matmul %116, %463, %cst_254 {dimension_numbers = #tpu.dot_dimension_numbers<[1], [0], [0], [1], [0, 0, 1, 1], [], []>} : vector<8x32xf32>, vector<32x32xf32>, vector<8x32xf32> -> vector<8x32xf32>
    %c0_255 = arith.constant 0 : index
    %c0_256 = arith.constant 0 : index
    %c0_257 = arith.constant 0 : index
    %465 = vector.load %arg16[%c0_255, %c0_256, %c0_257] : memref<4x1x32xf32, #tpu.memory_space<vmem>>, vector<1x1x32xf32>
    %466 = vector.shape_cast %465 : vector<1x1x32xf32> to vector<1x32xf32>
    %467 = vector.broadcast %466 : vector<1x32xf32> to vector<8x32xf32>
    %468 = arith.addf %464, %467 : vector<8x32xf32>
    %c1_258 = arith.constant 1 : index
    %c0_259 = arith.constant 0 : index
    %c0_260 = arith.constant 0 : index
    %469 = vector.load %arg15[%c1_258, %c0_259, %c0_260] : memref<4x32x32xf32, #tpu.memory_space<vmem>>, vector<1x32x32xf32>
    %470 = vector.shape_cast %469 : vector<1x32x32xf32> to vector<32x32xf32>
    %cst_261 = arith.constant dense<0.000000e+00> : vector<8x32xf32>
    %471 = tpu.matmul %231, %470, %cst_261 {dimension_numbers = #tpu.dot_dimension_numbers<[1], [0], [0], [1], [0, 0, 1, 1], [], []>} : vector<8x32xf32>, vector<32x32xf32>, vector<8x32xf32> -> vector<8x32xf32>
    %c1_262 = arith.constant 1 : index
    %c0_263 = arith.constant 0 : index
    %c0_264 = arith.constant 0 : index
    %472 = vector.load %arg16[%c1_262, %c0_263, %c0_264] : memref<4x1x32xf32, #tpu.memory_space<vmem>>, vector<1x1x32xf32>
    %473 = vector.shape_cast %472 : vector<1x1x32xf32> to vector<1x32xf32>
    %474 = vector.broadcast %473 : vector<1x32xf32> to vector<8x32xf32>
    %475 = arith.addf %471, %474 : vector<8x32xf32>
    %476 = arith.addf %468, %475 : vector<8x32xf32>
    %c2_265 = arith.constant 2 : index
    %c0_266 = arith.constant 0 : index
    %c0_267 = arith.constant 0 : index
    %477 = vector.load %arg15[%c2_265, %c0_266, %c0_267] : memref<4x32x32xf32, #tpu.memory_space<vmem>>, vector<1x32x32xf32>
    %478 = vector.shape_cast %477 : vector<1x32x32xf32> to vector<32x32xf32>
    %cst_268 = arith.constant dense<0.000000e+00> : vector<8x32xf32>
    %479 = tpu.matmul %346, %478, %cst_268 {dimension_numbers = #tpu.dot_dimension_numbers<[1], [0], [0], [1], [0, 0, 1, 1], [], []>} : vector<8x32xf32>, vector<32x32xf32>, vector<8x32xf32> -> vector<8x32xf32>
    %c2_269 = arith.constant 2 : index
    %c0_270 = arith.constant 0 : index
    %c0_271 = arith.constant 0 : index
    %480 = vector.load %arg16[%c2_269, %c0_270, %c0_271] : memref<4x1x32xf32, #tpu.memory_space<vmem>>, vector<1x1x32xf32>
    %481 = vector.shape_cast %480 : vector<1x1x32xf32> to vector<1x32xf32>
    %482 = vector.broadcast %481 : vector<1x32xf32> to vector<8x32xf32>
    %483 = arith.addf %479, %482 : vector<8x32xf32>
    %c3_272 = arith.constant 3 : index
    %c0_273 = arith.constant 0 : index
    %c0_274 = arith.constant 0 : index
    %484 = vector.load %arg15[%c3_272, %c0_273, %c0_274] : memref<4x32x32xf32, #tpu.memory_space<vmem>>, vector<1x32x32xf32>
    %485 = vector.shape_cast %484 : vector<1x32x32xf32> to vector<32x32xf32>
    %cst_275 = arith.constant dense<0.000000e+00> : vector<8x32xf32>
    %486 = tpu.matmul %461, %485, %cst_275 {dimension_numbers = #tpu.dot_dimension_numbers<[1], [0], [0], [1], [0, 0, 1, 1], [], []>} : vector<8x32xf32>, vector<32x32xf32>, vector<8x32xf32> -> vector<8x32xf32>
    %c3_276 = arith.constant 3 : index
    %c0_277 = arith.constant 0 : index
    %c0_278 = arith.constant 0 : index
    %487 = vector.load %arg16[%c3_276, %c0_277, %c0_278] : memref<4x1x32xf32, #tpu.memory_space<vmem>>, vector<1x1x32xf32>
    %488 = vector.shape_cast %487 : vector<1x1x32xf32> to vector<1x32xf32>
    %489 = vector.broadcast %488 : vector<1x32xf32> to vector<8x32xf32>
    %490 = arith.addf %486, %489 : vector<8x32xf32>
    %491 = arith.addf %483, %490 : vector<8x32xf32>
    %492 = arith.addf %0, %476 : vector<8x32xf32>
    %c0_279 = arith.constant 0 : index
    %c0_280 = arith.constant 0 : index
    %493 = vector.load %arg17[%c0_279, %c0_280] : memref<8x32xf32, #tpu.memory_space<vmem>>, vector<8x32xf32>
    tpu.vector_store %arg17[%c0_279, %c0_280], %492 {strides = array<i32>} : memref<8x32xf32, #tpu.memory_space<vmem>>, vector<8x32xf32>,
    %494 = arith.addf %1, %491 : vector<8x32xf32>
    %c0_281 = arith.constant 0 : index
    %c0_282 = arith.constant 0 : index
    %495 = vector.load %arg18[%c0_281, %c0_282] : memref<8x32xf32, #tpu.memory_space<vmem>>, vector<8x32xf32>
    tpu.vector_store %arg18[%c0_281, %c0_282], %494 {strides = array<i32>} : memref<8x32xf32, #tpu.memory_space<vmem>>, vector<8x32xf32>,
    return
  }
  func.func @transform_0(%arg0: i32) -> (i32, i32) {
    %c0_i32 = arith.constant 0 : i32
    %c0_i32_0 = arith.constant 0 : i32
    return %arg0, %c0_i32 : i32, i32
  }
  func.func @transform_1(%arg0: i32) -> (i32, i32) {
    %c0_i32 = arith.constant 0 : i32
    %c0_i32_0 = arith.constant 0 : i32
    return %arg0, %c0_i32 : i32, i32
  }
  func.func @transform_2(%arg0: i32) -> (i32, i32, i32) {
    %c0_i32 = arith.constant 0 : i32
    %c0_i32_0 = arith.constant 0 : i32
    %c0_i32_1 = arith.constant 0 : i32
    %c0_i32_2 = arith.constant 0 : i32
    return %c0_i32, %c0_i32_0, %c0_i32_1 : i32, i32, i32
  }
  func.func @transform_3(%arg0: i32) -> (i32, i32, i32) {
    %c0_i32 = arith.constant 0 : i32
    %c0_i32_0 = arith.constant 0 : i32
    %c0_i32_1 = arith.constant 0 : i32
    %c0_i32_2 = arith.constant 0 : i32
    return %c0_i32, %c0_i32_0, %c0_i32_1 : i32, i32, i32
  }
  func.func @transform_4(%arg0: i32) -> (i32, i32, i32) {
    %c0_i32 = arith.constant 0 : i32
    %c0_i32_0 = arith.constant 0 : i32
    %c0_i32_1 = arith.constant 0 : i32
    %c0_i32_2 = arith.constant 0 : i32
    return %c0_i32, %c0_i32_0, %c0_i32_1 : i32, i32, i32
  }
  func.func @transform_5(%arg0: i32) -> (i32, i32, i32) {
    %c0_i32 = arith.constant 0 : i32
    %c0_i32_0 = arith.constant 0 : i32
    %c0_i32_1 = arith.constant 0 : i32
    %c0_i32_2 = arith.constant 0 : i32
    return %c0_i32, %c0_i32_0, %c0_i32_1 : i32, i32, i32
  }
  func.func @transform_6(%arg0: i32) -> (i32, i32, i32) {
    %c0_i32 = arith.constant 0 : i32
    %c0_i32_0 = arith.constant 0 : i32
    %c0_i32_1 = arith.constant 0 : i32
    %c0_i32_2 = arith.constant 0 : i32
    return %c0_i32, %c0_i32_0, %c0_i32_1 : i32, i32, i32
  }
  func.func @transform_7(%arg0: i32) -> (i32, i32, i32) {
    %c0_i32 = arith.constant 0 : i32
    %c0_i32_0 = arith.constant 0 : i32
    %c0_i32_1 = arith.constant 0 : i32
    %c0_i32_2 = arith.constant 0 : i32
    return %c0_i32, %c0_i32_0, %c0_i32_1 : i32, i32, i32
  }
  func.func @transform_8(%arg0: i32) -> (i32, i32, i32) {
    %c0_i32 = arith.constant 0 : i32
    %c0_i32_0 = arith.constant 0 : i32
    %c0_i32_1 = arith.constant 0 : i32
    %c0_i32_2 = arith.constant 0 : i32
    return %c0_i32, %c0_i32_0, %c0_i32_1 : i32, i32, i32
  }
  func.func @transform_9(%arg0: i32) -> (i32, i32, i32) {
    %c0_i32 = arith.constant 0 : i32
    %c0_i32_0 = arith.constant 0 : i32
    %c0_i32_1 = arith.constant 0 : i32
    %c0_i32_2 = arith.constant 0 : i32
    return %c0_i32, %c0_i32_0, %c0_i32_1 : i32, i32, i32
  }
  func.func @transform_10(%arg0: i32) -> (i32, i32, i32) {
    %c0_i32 = arith.constant 0 : i32
    %c0_i32_0 = arith.constant 0 : i32
    %c0_i32_1 = arith.constant 0 : i32
    %c0_i32_2 = arith.constant 0 : i32
    return %c0_i32, %c0_i32_0, %c0_i32_1 : i32, i32, i32
  }
  func.func @transform_11(%arg0: i32) -> (i32, i32, i32) {
    %c0_i32 = arith.constant 0 : i32
    %c0_i32_0 = arith.constant 0 : i32
    %c0_i32_1 = arith.constant 0 : i32
    %c0_i32_2 = arith.constant 0 : i32
    return %c0_i32, %c0_i32_0, %c0_i32_1 : i32, i32, i32
  }
  func.func @transform_12(%arg0: i32) -> (i32, i32, i32) {
    %c0_i32 = arith.constant 0 : i32
    %c0_i32_0 = arith.constant 0 : i32
    %c0_i32_1 = arith.constant 0 : i32
    %c0_i32_2 = arith.constant 0 : i32
    return %c0_i32, %c0_i32_0, %c0_i32_1 : i32, i32, i32
  }
  func.func @transform_13(%arg0: i32) -> (i32, i32, i32) {
    %c0_i32 = arith.constant 0 : i32
    %c0_i32_0 = arith.constant 0 : i32
    %c0_i32_1 = arith.constant 0 : i32
    %c0_i32_2 = arith.constant 0 : i32
    return %c0_i32, %c0_i32_0, %c0_i32_1 : i32, i32, i32
  }
  func.func @transform_14(%arg0: i32) -> (i32, i32, i32) {
    %c0_i32 = arith.constant 0 : i32
    %c0_i32_0 = arith.constant 0 : i32
    %c0_i32_1 = arith.constant 0 : i32
    %c0_i32_2 = arith.constant 0 : i32
    return %c0_i32, %c0_i32_0, %c0_i32_1 : i32, i32, i32
  }
  func.func @transform_15(%arg0: i32) -> (i32, i32, i32) {
    %c0_i32 = arith.constant 0 : i32
    %c0_i32_0 = arith.constant 0 : i32
    %c0_i32_1 = arith.constant 0 : i32
    %c0_i32_2 = arith.constant 0 : i32
    return %c0_i32, %c0_i32_0, %c0_i32_1 : i32, i32, i32
  }
  func.func @transform_16(%arg0: i32) -> (i32, i32) {
    %c0_i32 = arith.constant 0 : i32
    %c0_i32_0 = arith.constant 0 : i32
    return %arg0, %c0_i32 : i32, i32
  }
  func.func @transform_17(%arg0: i32) -> (i32, i32) {
    %c0_i32 = arith.constant 0 : i32
    %c0_i32_0 = arith.constant 0 : i32
    return %arg0, %c0_i32 : i32, i32
  }
}

</mosaic_0001>

<llo_original>
// kernel: tpu_custom_call.1
$region0: #{tpu_custom_call.1}
  #allocation0 [shape = 'u32[]', space=smem, size = 0x4, offset = 0x4, fixed_abs, tag = 'smem constant byte address 0x4 - core index']
  #allocation1 [shape = 'u32[72,128]{1,0:T(1,128)}', space=vmem, size = 0x9000, scoped, tag = 'internal scratch']
  %s0 = inlined_call_operand.hbm [shape: f32[16,32], index: 0, kind: input, shape index: {}]
  %s1 = inlined_call_operand.hbm [shape: f32[16,32], index: 1, kind: input, shape index: {}]
  %s2 = inlined_call_operand.hbm [shape: f32[4,32,32], index: 2, kind: input, shape index: {}]
  %s3 = inlined_call_operand.hbm [shape: f32[4,1,32], index: 3, kind: input, shape index: {}]
  %s4 = inlined_call_operand.hbm [shape: f32[4,32,32], index: 4, kind: input, shape index: {}]
  %s5 = inlined_call_operand.vmem [shape: f32[4,1,32], index: 5, kind: input, shape index: {}]
  %s6 = inlined_call_operand.hbm [shape: f32[4,32,32], index: 6, kind: input, shape index: {}]
  %s7 = inlined_call_operand.hbm [shape: f32[4,1,32], index: 7, kind: input, shape index: {}]
  %s8 = inlined_call_operand.hbm [shape: f32[4,32,32], index: 8, kind: input, shape index: {}]
  %s9 = inlined_call_operand.vmem [shape: f32[4,1,32], index: 9, kind: input, shape index: {}]
  %s10 = inlined_call_operand.hbm [shape: f32[4,32,32], index: 10, kind: input, shape index: {}]
  %s11 = inlined_call_operand.hbm [shape: f32[4,1,32], index: 11, kind: input, shape index: {}]
  %s12 = inlined_call_operand.hbm [shape: f32[4,32,32], index: 12, kind: input, shape index: {}]
  %s13 = inlined_call_operand.vmem [shape: f32[4,1,32], index: 13, kind: input, shape index: {}]
  %s14 = inlined_call_operand.hbm [shape: f32[4,32,32], index: 14, kind: input, shape index: {}]
  %s15 = inlined_call_operand.hbm [shape: f32[4,1,32], index: 15, kind: input, shape index: {}]
  %s16 = inlined_call_operand.hbm [shape: f32[16,32], index: 16, kind: output, shape index: {0}]
  %s17 = inlined_call_operand.hbm [shape: f32[16,32], index: 17, kind: output, shape index: {1}]
  %18 = xla_tuple %s16, %s17
  %s19 = sld [smem:[#allocation0]]
  $region157: #{tpu_custom_call.1} parent=0
    _
  %s21 = ssub.s32 1, %s19
  %s22 = scalar_select 0, %s21, %s19
  $region1: #{tpu_custom_call.1} parent=0
    #allocation2 [shape = 'u8[8192]{0}', space=vmem, size = 0x2000, scoped, tag = 'input window, operand 0']
    #allocation3 [shape = 's32[2]{0}', space=sflag, size = 0x8, scoped, tag = 'scoped memory for tpu_custom_call.1']
    #allocation4 [shape = 's32[2]{0}', space=sflag, size = 0x8, scoped, tag = 'scoped memory for tpu_custom_call.1']
    #allocation5 [shape = 'u8[8192]{0}', space=vmem, size = 0x2000, scoped, tag = 'input window, operand 1']
    #allocation6 [shape = 's32[2]{0}', space=sflag, size = 0x8, scoped, tag = 'scoped memory for tpu_custom_call.1']
    #allocation7 [shape = 'u8[65536]{0}', space=vmem, size = 0x10000, scoped, tag = 'input window, operand 2, single buffered']
    #allocation8 [shape = 'u8[2048]{0}', space=vmem, size = 0x800, scoped, tag = 'input window, operand 3, single buffered']
    #allocation9 [shape = 's32[1]{0}', space=sflag, size = 0x4, scoped, tag = 'scoped memory for tpu_custom_call.1']
    #allocation10 [shape = 'u8[65536]{0}', space=vmem, size = 0x10000, scoped, tag = 'input window, operand 4, single buffered']
    #allocation11 [shape = 'u8[65536]{0}', space=vmem, size = 0x10000, scoped, tag = 'input window, operand 6, single buffered']
    #allocation12 [shape = 's32[1]{0}', space=sflag, size = 0x4, scoped, tag = 'scoped memory for tpu_custom_call.1']
    #allocation13 [shape = 'u8[2048]{0}', space=vmem, size = 0x800, scoped, tag = 'input window, operand 7, single buffered']
    #allocation14 [shape = 'u8[65536]{0}', space=vmem, size = 0x10000, scoped, tag = 'input window, operand 8, single buffered']
    #allocation15 [shape = 's32[1]{0}', space=sflag, size = 0x4, scoped, tag = 'scoped memory for tpu_custom_call.1']
    #allocation16 [shape = 'u8[65536]{0}', space=vmem, size = 0x10000, scoped, tag = 'input window, operand 10, single buffered']
    #allocation17 [shape = 'u8[2048]{0}', space=vmem, size = 0x800, scoped, tag = 'input window, operand 11, single buffered']
    #allocation18 [shape = 's32[1]{0}', space=sflag, size = 0x4, scoped, tag = 'scoped memory for tpu_custom_call.1']
    #allocation19 [shape = 'u8[65536]{0}', space=vmem, size = 0x10000, scoped, tag = 'input window, operand 12, single buffered']
    #allocation20 [shape = 'u8[65536]{0}', space=vmem, size = 0x10000, scoped, tag = 'input window, operand 14, single buffered']
    #allocation21 [shape = 's32[1]{0}', space=sflag, size = 0x4, scoped, tag = 'scoped memory for tpu_custom_call.1']
    #allocation22 [shape = 'u8[2048]{0}', space=vmem, size = 0x800, scoped, tag = 'input window, operand 15, single buffered']
    #allocation23 [shape = 'u8[8192]{0}', space=vmem, size = 0x2000, scoped, tag = 'output window, operand 0']
    #allocation24 [shape = 'u8[8192]{0}', space=vmem, size = 0x2000, scoped, tag = 'output window, operand 1']
    #allocation25 [shape = 's32[2]{0}', space=sflag, size = 0x8, scoped, tag = 'scoped memory for tpu_custom_call.1']
    %23 = vsyncpa [#allocation3], 0
    %s24 = scalar_lea.sflag [#allocation3], 1
    %25 = vsyncpa %s24, 0
    %26 = vsyncpa [#allocation6], 0
    %s27 = scalar_lea.sflag [#allocation6], 1
    %28 = vsyncpa %s27, 0
    %29 = vsyncpa [#allocation9], 0
    %30 = vsyncpa [#allocation12], 0
    %31 = vsyncpa [#allocation15], 0
    %32 = vsyncpa [#allocation18], 0
    %33 = vsyncpa [#allocation21], 0
    %34 = vsyncpa [#allocation4], 0
    %s35 = scalar_lea.sflag [#allocation4], 1
    %36 = vsyncpa %s35, 0
    %37 = vsyncpa [#allocation25], 0
    %s38 = scalar_lea.sflag [#allocation25], 1
    %39 = vsyncpa %s38, 0
    loop: start=0, step=1, limit=4
    $region2: #{tpu_custom_call.1} parent=1 // loop_pre_header
      _
    $region3: #{tpu_custom_call.1} parent=1 // loop_header
      %s41 = sphi 0, %s45
      %p42 = scmp.ge.s32.totalorder %s41, 4
      %s51 = sphi 0, %s53
      %s54 = sphi 0, %s51
      %s55 = sphi 0, %s54
      %s71 = sphi 0, %s55
      %s77 = sphi 0, %s79
      %s80 = sphi 0, %s77
      %s81 = sphi 0, %s80
      %s97 = sphi 0, %s81
      %s101 = sphi 0, %s101
      %s103 = sphi 0, %s101
      %s104 = sphi 0, %s103
      %s118 = sphi 0, %s104
      %s122 = sphi 0, %s122
      %s124 = sphi 0, %s122
      %s125 = sphi 0, %s124
      %s139 = sphi 0, %s125
      %s143 = sphi 0, %s143
      %s145 = sphi 0, %s143
      %s146 = sphi 0, %s145
      %s160 = sphi 0, %s146
      %s164 = sphi 0, %s164
      %s166 = sphi 0, %s164
      %s167 = sphi 0, %s166
      %s181 = sphi 0, %s167
      %s185 = sphi 0, %s185
      %s187 = sphi 0, %s185
      %s188 = sphi 0, %s187
      %s202 = sphi 0, %s188
      %s206 = sphi 0, %s206
      %s208 = sphi 0, %s206
      %s209 = sphi 0, %s208
      %s223 = sphi 0, %s209
      %s227 = sphi 0, %s227
      %s229 = sphi 0, %s227
      %s230 = sphi 0, %s229
      %s244 = sphi 0, %s230
      %s248 = sphi 0, %s248
      %s250 = sphi 0, %s248
      %s251 = sphi 0, %s250
      %s265 = sphi 0, %s251
      %s269 = sphi 0, %s269
      %s271 = sphi 0, %s269
      %s272 = sphi 0, %s271
      %s286 = sphi 0, %s272
      %s290 = sphi 0, %s290
      %s292 = sphi 0, %s290
      %s293 = sphi 0, %s292
      %s307 = sphi 0, %s293
      %s311 = sphi 0, %s311
      %s313 = sphi 0, %s311
      %s314 = sphi 0, %s313
      %s328 = sphi 0, %s314
      %s332 = sphi 0, %s332
      %s334 = sphi 0, %s332
      %s335 = sphi 0, %s334
      %s349 = sphi 0, %s335
      %s353 = sphi 0, %s353
      %s355 = sphi 0, %s353
      %s356 = sphi 0, %s355
      %s370 = sphi 0, %s356
      %s374 = sphi 0, %s374
      %s376 = sphi 0, %s374
      %s377 = sphi 0, %s376
      %s391 = sphi 0, %s377
      %s397 = sphi 0, %s399
      %s400 = sphi 0, %s397
      %s401 = sphi 0, %s400
      %s417 = sphi 0, %s401
      %s423 = sphi 0, %s425
      %s426 = sphi 0, %s423
      %s427 = sphi 0, %s426
      %s443 = sphi 0, %s427
    $region4: #{tpu_custom_call.1} parent=1 // loop_header_branch
      %44 = sbr.rel (%p42) target = $region8
    $region5: #{tpu_custom_call.1} parent=1 // loop_body
      %s46 = ssub.s32 %s41, 1
      %s47 = ssub.s32 %s41, 2
      %s48 = sadd.s32 %s41, 1
      %s49 = ssub.s32 %s41, %s48
      %p50 = scmp.eq.s32.totalorder %s49, 0
      %s52 = sadd.s32 %s51, 1
      %s53 = scalar_select %p50, %s51, %s52
      %p56 = pneg %p50
      %p57 = scmp.eq.s32.totalorder %s41, 1
      %p58 = por %p56, %p57
      %p59 = scmp.ne.s32.totalorder %s51, %s54
      %p60 = scmp.eq.s32.totalorder %s41, 0
      %p61 = por %p59, %p60
      %p62 = scmp.ne.s32.totalorder %s51, %s54
      %p63 = scmp.eq.s32.totalorder %s46, 1
      %p64 = por %p62, %p63
      %p65 = scmp.ne.s32.totalorder %s54, %s55
      %p66 = scmp.eq.s32.totalorder %s46, 0
      %p67 = por %p65, %p66
      %p68 = scmp.ne.s32.totalorder %s54, %s55
      %p69 = scmp.eq.s32.totalorder %s47, 1
      %p70 = por %p68, %p69
      %p72 = scmp.ne.s32.totalorder %s55, %s71
      %p73 = scmp.eq.s32.totalorder %s47, 0
      %p74 = por %p72, %p73
      %s75 = ssub.s32 %s41, %s48
      %p76 = scmp.eq.s32.totalorder %s75, 0
      %s78 = sadd.s32 %s77, 1
      %s79 = scalar_select %p76, %s77, %s78
      %p82 = pneg %p76
      %p83 = scmp.eq.s32.totalorder %s41, 1
      %p84 = por %p82, %p83
      %p85 = scmp.ne.s32.totalorder %s77, %s80
      %p86 = scmp.eq.s32.totalorder %s41, 0
      %p87 = por %p85, %p86
      %p88 = scmp.ne.s32.totalorder %s77, %s80
      %p89 = scmp.eq.s32.totalorder %s46, 1
      %p90 = por %p88, %p89
      %p91 = scmp.ne.s32.totalorder %s80, %s81
      %p92 = scmp.eq.s32.totalorder %s46, 0
      %p93 = por %p91, %p92
      %p94 = scmp.ne.s32.totalorder %s80, %s81
      %p95 = scmp.eq.s32.totalorder %s47, 1
      %p96 = por %p94, %p95
      %p98 = scmp.ne.s32.totalorder %s81, %s97
      %p99 = scmp.eq.s32.totalorder %s47, 0
      %p100 = por %p98, %p99
      %s102 = sadd.s32 %s101, 1
      %p105 = scmp.eq.s32.totalorder %s41, 1
      %p106 = scmp.ne.s32.totalorder %s101, %s103
      %p107 = scmp.eq.s32.totalorder %s41, 0
      %p108 = por %p106, %p107
      %p109 = scmp.ne.s32.totalorder %s101, %s103
      %p110 = scmp.eq.s32.totalorder %s46, 1
      %p111 = por %p109, %p110
      %p112 = scmp.ne.s32.totalorder %s103, %s104
      %p113 = scmp.eq.s32.totalorder %s46, 0
      %p114 = por %p112, %p113
      %p115 = scmp.ne.s32.totalorder %s103, %s104
      %p116 = scmp.eq.s32.totalorder %s47, 1
      %p117 = por %p115, %p116
      %p119 = scmp.ne.s32.totalorder %s104, %s118
      %p120 = scmp.eq.s32.totalorder %s47, 0
      %p121 = por %p119, %p120
      %s123 = sadd.s32 %s122, 1
      %p126 = scmp.eq.s32.totalorder %s41, 1
      %p127 = scmp.ne.s32.totalorder %s122, %s124
      %p128 = scmp.eq.s32.totalorder %s41, 0
      %p129 = por %p127, %p128
      %p130 = scmp.ne.s32.totalorder %s122, %s124
      %p131 = scmp.eq.s32.totalorder %s46, 1
      %p132 = por %p130, %p131
      %p133 = scmp.ne.s32.totalorder %s124, %s125
      %p134 = scmp.eq.s32.totalorder %s46, 0
      %p135 = por %p133, %p134
      %p136 = scmp.ne.s32.totalorder %s124, %s125
      %p137 = scmp.eq.s32.totalorder %s47, 1
      %p138 = por %p136, %p137
      %p140 = scmp.ne.s32.totalorder %s125, %s139
      %p141 = scmp.eq.s32.totalorder %s47, 0
      %p142 = por %p140, %p141
      %s144 = sadd.s32 %s143, 1
      %p147 = scmp.eq.s32.totalorder %s41, 1
      %p148 = scmp.ne.s32.totalorder %s143, %s145
      %p149 = scmp.eq.s32.totalorder %s41, 0
      %p150 = por %p148, %p149
      %p151 = scmp.ne.s32.totalorder %s143, %s145
      %p152 = scmp.eq.s32.totalorder %s46, 1
      %p153 = por %p151, %p152
      %p154 = scmp.ne.s32.totalorder %s145, %s146
      %p155 = scmp.eq.s32.totalorder %s46, 0
      %p156 = por %p154, %p155
      %p157 = scmp.ne.s32.totalorder %s145, %s146
      %p158 = scmp.eq.s32.totalorder %s47, 1
      %p159 = por %p157, %p158
      %p161 = scmp.ne.s32.totalorder %s146, %s160
      %p162 = scmp.eq.s32.totalorder %s47, 0
      %p163 = por %p161, %p162
      %s165 = sadd.s32 %s164, 1
      %p168 = scmp.eq.s32.totalorder %s41, 1
      %p169 = scmp.ne.s32.totalorder %s164, %s166
      %p170 = scmp.eq.s32.totalorder %s41, 0
      %p171 = por %p169, %p170
      %p172 = scmp.ne.s32.totalorder %s164, %s166
      %p173 = scmp.eq.s32.totalorder %s46, 1
      %p174 = por %p172, %p173
      %p175 = scmp.ne.s32.totalorder %s166, %s167
      %p176 = scmp.eq.s32.totalorder %s46, 0
      %p177 = por %p175, %p176
      %p178 = scmp.ne.s32.totalorder %s166, %s167
      %p179 = scmp.eq.s32.totalorder %s47, 1
      %p180 = por %p178, %p179
      %p182 = scmp.ne.s32.totalorder %s167, %s181
      %p183 = scmp.eq.s32.totalorder %s47, 0
      %p184 = por %p182, %p183
      %s186 = sadd.s32 %s185, 1
      %p189 = scmp.eq.s32.totalorder %s41, 1
      %p190 = scmp.ne.s32.totalorder %s185, %s187
      %p191 = scmp.eq.s32.totalorder %s41, 0
      %p192 = por %p190, %p191
      %p193 = scmp.ne.s32.totalorder %s185, %s187
      %p194 = scmp.eq.s32.totalorder %s46, 1
      %p195 = por %p193, %p194
      %p196 = scmp.ne.s32.totalorder %s187, %s188
      %p197 = scmp.eq.s32.totalorder %s46, 0
      %p198 = por %p196, %p197
      %p199 = scmp.ne.s32.totalorder %s187, %s188
      %p200 = scmp.eq.s32.totalorder %s47, 1
      %p201 = por %p199, %p200
      %p203 = scmp.ne.s32.totalorder %s188, %s202
      %p204 = scmp.eq.s32.totalorder %s47, 0
      %p205 = por %p203, %p204
      %s207 = sadd.s32 %s206, 1
      %p210 = scmp.eq.s32.totalorder %s41, 1
      %p211 = scmp.ne.s32.totalorder %s206, %s208
      %p212 = scmp.eq.s32.totalorder %s41, 0
      %p213 = por %p211, %p212
      %p214 = scmp.ne.s32.totalorder %s206, %s208
      %p215 = scmp.eq.s32.totalorder %s46, 1
      %p216 = por %p214, %p215
      %p217 = scmp.ne.s32.totalorder %s208, %s209
      %p218 = scmp.eq.s32.totalorder %s46, 0
      %p219 = por %p217, %p218
      %p220 = scmp.ne.s32.totalorder %s208, %s209
      %p221 = scmp.eq.s32.totalorder %s47, 1
      %p222 = por %p220, %p221
      %p224 = scmp.ne.s32.totalorder %s209, %s223
      %p225 = scmp.eq.s32.totalorder %s47, 0
      %p226 = por %p224, %p225
      %s228 = sadd.s32 %s227, 1
      %p231 = scmp.eq.s32.totalorder %s41, 1
      %p232 = scmp.ne.s32.totalorder %s227, %s229
      %p233 = scmp.eq.s32.totalorder %s41, 0
      %p234 = por %p232, %p233
      %p235 = scmp.ne.s32.totalorder %s227, %s229
      %p236 = scmp.eq.s32.totalorder %s46, 1
      %p237 = por %p235, %p236
      %p238 = scmp.ne.s32.totalorder %s229, %s230
      %p239 = scmp.eq.s32.totalorder %s46, 0
      %p240 = por %p238, %p239
      %p241 = scmp.ne.s32.totalorder %s229, %s230
      %p242 = scmp.eq.s32.totalorder %s47, 1
      %p243 = por %p241, %p242
      %p245 = scmp.ne.s32.totalorder %s230, %s244
      %p246 = scmp.eq.s32.totalorder %s47, 0
      %p247 = por %p245, %p246
      %s249 = sadd.s32 %s248, 1
      %p252 = scmp.eq.s32.totalorder %s41, 1
      %p253 = scmp.ne.s32.totalorder %s248, %s250
      %p254 = scmp.eq.s32.totalorder %s41, 0
      %p255 = por %p253, %p254
      %p256 = scmp.ne.s32.totalorder %s248, %s250
      %p257 = scmp.eq.s32.totalorder %s46, 1
      %p258 = por %p256, %p257
      %p259 = scmp.ne.s32.totalorder %s250, %s251
      %p260 = scmp.eq.s32.totalorder %s46, 0
      %p261 = por %p259, %p260
      %p262 = scmp.ne.s32.totalorder %s250, %s251
      %p263 = scmp.eq.s32.totalorder %s47, 1
      %p264 = por %p262, %p263
      %p266 = scmp.ne.s32.totalorder %s251, %s265
      %p267 = scmp.eq.s32.totalorder %s47, 0
      %p268 = por %p266, %p267
      %s270 = sadd.s32 %s269, 1
      %p273 = scmp.eq.s32.totalorder %s41, 1
      %p274 = scmp.ne.s32.totalorder %s269, %s271
      %p275 = scmp.eq.s32.totalorder %s41, 0
      %p276 = por %p274, %p275
      %p277 = scmp.ne.s32.totalorder %s269, %s271
      %p278 = scmp.eq.s32.totalorder %s46, 1
      %p279 = por %p277, %p278
      %p280 = scmp.ne.s32.totalorder %s271, %s272
      %p281 = scmp.eq.s32.totalorder %s46, 0
      %p282 = por %p280, %p281
      %p283 = scmp.ne.s32.totalorder %s271, %s272
      %p284 = scmp.eq.s32.totalorder %s47, 1
      %p285 = por %p283, %p284
      %p287 = scmp.ne.s32.totalorder %s272, %s286
      %p288 = scmp.eq.s32.totalorder %s47, 0
      %p289 = por %p287, %p288
      %s291 = sadd.s32 %s290, 1
      %p294 = scmp.eq.s32.totalorder %s41, 1
      %p295 = scmp.ne.s32.totalorder %s290, %s292
      %p296 = scmp.eq.s32.totalorder %s41, 0
      %p297 = por %p295, %p296
      %p298 = scmp.ne.s32.totalorder %s290, %s292
      %p299 = scmp.eq.s32.totalorder %s46, 1
      %p300 = por %p298, %p299
      %p301 = scmp.ne.s32.totalorder %s292, %s293
      %p302 = scmp.eq.s32.totalorder %s46, 0
      %p303 = por %p301, %p302
      %p304 = scmp.ne.s32.totalorder %s292, %s293
      %p305 = scmp.eq.s32.totalorder %s47, 1
      %p306 = por %p304, %p305
      %p308 = scmp.ne.s32.totalorder %s293, %s307
      %p309 = scmp.eq.s32.totalorder %s47, 0
      %p310 = por %p308, %p309
      %s312 = sadd.s32 %s311, 1
      %p315 = scmp.eq.s32.totalorder %s41, 1
      %p316 = scmp.ne.s32.totalorder %s311, %s313
      %p317 = scmp.eq.s32.totalorder %s41, 0
      %p318 = por %p316, %p317
      %p319 = scmp.ne.s32.totalorder %s311, %s313
      %p320 = scmp.eq.s32.totalorder %s46, 1
      %p321 = por %p319, %p320
      %p322 = scmp.ne.s32.totalorder %s313, %s314
      %p323 = scmp.eq.s32.totalorder %s46, 0
      %p324 = por %p322, %p323
      %p325 = scmp.ne.s32.totalorder %s313, %s314
      %p326 = scmp.eq.s32.totalorder %s47, 1
      %p327 = por %p325, %p326
      %p329 = scmp.ne.s32.totalorder %s314, %s328
      %p330 = scmp.eq.s32.totalorder %s47, 0
      %p331 = por %p329, %p330
      %s333 = sadd.s32 %s332, 1
      %p336 = scmp.eq.s32.totalorder %s41, 1
      %p337 = scmp.ne.s32.totalorder %s332, %s334
      %p338 = scmp.eq.s32.totalorder %s41, 0
      %p339 = por %p337, %p338
      %p340 = scmp.ne.s32.totalorder %s332, %s334
      %p341 = scmp.eq.s32.totalorder %s46, 1
      %p342 = por %p340, %p341
      %p343 = scmp.ne.s32.totalorder %s334, %s335
      %p344 = scmp.eq.s32.totalorder %s46, 0
      %p345 = por %p343, %p344
      %p346 = scmp.ne.s32.totalorder %s334, %s335
      %p347 = scmp.eq.s32.totalorder %s47, 1
      %p348 = por %p346, %p347
      %p350 = scmp.ne.s32.totalorder %s335, %s349
      %p351 = scmp.eq.s32.totalorder %s47, 0
      %p352 = por %p350, %p351
      %s354 = sadd.s32 %s353, 1
      %p357 = scmp.eq.s32.totalorder %s41, 1
      %p358 = scmp.ne.s32.totalorder %s353, %s355
      %p359 = scmp.eq.s32.totalorder %s41, 0
      %p360 = por %p358, %p359
      %p361 = scmp.ne.s32.totalorder %s353, %s355
      %p362 = scmp.eq.s32.totalorder %s46, 1
      %p363 = por %p361, %p362
      %p364 = scmp.ne.s32.totalorder %s355, %s356
      %p365 = scmp.eq.s32.totalorder %s46, 0
      %p366 = por %p364, %p365
      %p367 = scmp.ne.s32.totalorder %s355, %s356
      %p368 = scmp.eq.s32.totalorder %s47, 1
      %p369 = por %p367, %p368
      %p371 = scmp.ne.s32.totalorder %s356, %s370
      %p372 = scmp.eq.s32.totalorder %s47, 0
      %p373 = por %p371, %p372
      %s375 = sadd.s32 %s374, 1
      %p378 = scmp.eq.s32.totalorder %s41, 1
      %p379 = scmp.ne.s32.totalorder %s374, %s376
      %p380 = scmp.eq.s32.totalorder %s41, 0
      %p381 = por %p379, %p380
      %p382 = scmp.ne.s32.totalorder %s374, %s376
      %p383 = scmp.eq.s32.totalorder %s46, 1
      %p384 = por %p382, %p383
      %p385 = scmp.ne.s32.totalorder %s376, %s377
      %p386 = scmp.eq.s32.totalorder %s46, 0
      %p387 = por %p385, %p386
      %p388 = scmp.ne.s32.totalorder %s376, %s377
      %p389 = scmp.eq.s32.totalorder %s47, 1
      %p390 = por %p388, %p389
      %p392 = scmp.ne.s32.totalorder %s377, %s391
      %p393 = scmp.eq.s32.totalorder %s47, 0
      %p394 = por %p392, %p393
      %s395 = ssub.s32 %s41, %s48
      %p396 = scmp.eq.s32.totalorder %s395, 0
      %s398 = sadd.s32 %s397, 1
      %s399 = scalar_select %p396, %s397, %s398
      %p402 = pneg %p396
      %p403 = scmp.eq.s32.totalorder %s41, 1
      %p404 = por %p402, %p403
      %p405 = scmp.ne.s32.totalorder %s397, %s400
      %p406 = scmp.eq.s32.totalorder %s41, 0
      %p407 = por %p405, %p406
      %p408 = scmp.ne.s32.totalorder %s397, %s400
      %p409 = scmp.eq.s32.totalorder %s46, 1
      %p410 = por %p408, %p409
      %p411 = scmp.ne.s32.totalorder %s400, %s401
      %p412 = scmp.eq.s32.totalorder %s46, 0
      %p413 = por %p411, %p412
      %p414 = scmp.ne.s32.totalorder %s400, %s401
      %p415 = scmp.eq.s32.totalorder %s47, 1
      %p416 = por %p414, %p415
      %p418 = scmp.ne.s32.totalorder %s401, %s417
      %p419 = scmp.eq.s32.totalorder %s47, 0
      %p420 = por %p418, %p419
      %s421 = ssub.s32 %s41, %s48
      %p422 = scmp.eq.s32.totalorder %s421, 0
      %s424 = sadd.s32 %s423, 1
      %s425 = scalar_select %p422, %s423, %s424
      %p428 = pneg %p422
      %p429 = scmp.eq.s32.totalorder %s41, 1
      %p430 = por %p428, %p429
      %p431 = scmp.ne.s32.totalorder %s423, %s426
      %p432 = scmp.eq.s32.totalorder %s41, 0
      %p433 = por %p431, %p432
      %p434 = scmp.ne.s32.totalorder %s423, %s426
      %p435 = scmp.eq.s32.totalorder %s46, 1
      %p436 = por %p434, %p435
      %p437 = scmp.ne.s32.totalorder %s426, %s427
      %p438 = scmp.eq.s32.totalorder %s46, 0
      %p439 = por %p437, %p438
      %p440 = scmp.ne.s32.totalorder %s426, %s427
      %p441 = scmp.eq.s32.totalorder %s47, 1
      %p442 = por %p440, %p441
      %p444 = scmp.ne.s32.totalorder %s427, %s443
      %p445 = scmp.eq.s32.totalorder %s47, 0
      %p446 = por %p444, %p445
      %p447 = scmp.le.s32.totalorder 1, %s41
      %p448 = scmp.lt.s32.totalorder %s41, 3
      %p449 = pnand %p447, %p448
      %p450 = pneg %p449
      // Predicated region
      $region9: #{tpu_custom_call.1} parent=5 // pred_check
        _
      $region10: #{tpu_custom_call.1} parent=5 // pred_check_branch
        %452 = sbr.rel (%p449) target = $region12
      $region11: #{tpu_custom_call.1} parent=5 // pred_region
        %s453 = ssub.s32 %s41, 1
        // Predicated region
        $region13: #{tpu_custom_call.1} parent=11 // pred_check
          %p454 = pneg %p114
        $region14: #{tpu_custom_call.1} parent=11 // pred_check_branch
          %456 = sbr.rel (%p454) target = $region16
        $region15: #{tpu_custom_call.1} parent=11 // pred_region
          %458 = vsyncadd [#allocation6], 0
          %s459 = sshll.u32 %s2, 4
          %s460 = int_to_ptr.hbm [resolvable:$true] %s459
          %s461 = sshll.u32 [#allocation7], 4
          %s462 = int_to_ptr.vmem [resolvable:$true] %s461
          %467 = dma.hbm_to_vmem [thread:$0]  %s460, 2048, %s462, [#allocation6], 128, 128, 8
        $region16: #{tpu_custom_call.1} parent=11 // pred_fallthru
          _
        // Predicated region
        $region17: #{tpu_custom_call.1} parent=11 // pred_check
          %p468 = pneg %p135
        $region18: #{tpu_custom_call.1} parent=11 // pred_check_branch
          %470 = sbr.rel (%p468) target = $region20
        $region19: #{tpu_custom_call.1} parent=11 // pred_region
          %472 = vsyncadd [#allocation9], 0
          %s473 = sshll.u32 %s3, 4
          %s474 = int_to_ptr.hbm [resolvable:$true] %s473
          %s475 = sshll.u32 [#allocation8], 4
          %s476 = int_to_ptr.vmem [resolvable:$true] %s475
          %481 = dma.hbm_to_vmem [thread:$0]  %s474, 64, %s476, [#allocation9], 16, 16, 1
        $region20: #{tpu_custom_call.1} parent=11 // pred_fallthru
          _
        // Predicated region
        $region21: #{tpu_custom_call.1} parent=11 // pred_check
          %p482 = pneg %p156
        $region22: #{tpu_custom_call.1} parent=11 // pred_check_branch
          %484 = sbr.rel (%p482) target = $region24
        $region23: #{tpu_custom_call.1} parent=11 // pred_region
          %486 = vsyncadd [#allocation9], 0
          %s487 = sshll.u32 %s4, 4
          %s488 = int_to_ptr.hbm [resolvable:$true] %s487
          %s489 = sshll.u32 [#allocation10], 4
          %s490 = int_to_ptr.vmem [resolvable:$true] %s489
          %495 = dma.hbm_to_vmem [thread:$0]  %s488, 2048, %s490, [#allocation9], 128, 128, 8
        $region24: #{tpu_custom_call.1} parent=11 // pred_fallthru
          _
        // Predicated region
        $region25: #{tpu_custom_call.1} parent=11 // pred_check
          %p496 = pneg %p177
        $region26: #{tpu_custom_call.1} parent=11 // pred_check_branch
          %498 = sbr.rel (%p496) target = $region28
        $region27: #{tpu_custom_call.1} parent=11 // pred_region
          _
        $region28: #{tpu_custom_call.1} parent=11 // pred_fallthru
          _
        // Predicated region
        $region29: #{tpu_custom_call.1} parent=11 // pred_check
          %p499 = pneg %p198
        $region30: #{tpu_custom_call.1} parent=11 // pred_check_branch
          %501 = sbr.rel (%p499) target = $region32
        $region31: #{tpu_custom_call.1} parent=11 // pred_region
          %503 = vsyncadd [#allocation12], 0
          %s504 = sshll.u32 %s6, 4
          %s505 = int_to_ptr.hbm [resolvable:$true] %s504
          %s506 = sshll.u32 [#allocation11], 4
          %s507 = int_to_ptr.vmem [resolvable:$true] %s506
          %512 = dma.hbm_to_vmem [thread:$0]  %s505, 2048, %s507, [#allocation12], 128, 128, 8
        $region32: #{tpu_custom_call.1} parent=11 // pred_fallthru
          _
        // Predicated region
        $region33: #{tpu_custom_call.1} parent=11 // pred_check
          %p513 = pneg %p219
        $region34: #{tpu_custom_call.1} parent=11 // pred_check_branch
          %515 = sbr.rel (%p513) target = $region36
        $region35: #{tpu_custom_call.1} parent=11 // pred_region
          %517 = vsyncadd [#allocation12], 0
          %s518 = sshll.u32 %s7, 4
          %s519 = int_to_ptr.hbm [resolvable:$true] %s518
          %s520 = sshll.u32 [#allocation13], 4
          %s521 = int_to_ptr.vmem [resolvable:$true] %s520
          %526 = dma.hbm_to_vmem [thread:$0]  %s519, 64, %s521, [#allocation12], 16, 16, 1
        $region36: #{tpu_custom_call.1} parent=11 // pred_fallthru
          _
        // Predicated region
        $region37: #{tpu_custom_call.1} parent=11 // pred_check
          %p527 = pneg %p240
        $region38: #{tpu_custom_call.1} parent=11 // pred_check_branch
          %529 = sbr.rel (%p527) target = $region40
        $region39: #{tpu_custom_call.1} parent=11 // pred_region
          %531 = vsyncadd [#allocation15], 0
          %s532 = sshll.u32 %s8, 4
          %s533 = int_to_ptr.hbm [resolvable:$true] %s532
          %s534 = sshll.u32 [#allocation14], 4
          %s535 = int_to_ptr.vmem [resolvable:$true] %s534
          %540 = dma.hbm_to_vmem [thread:$0]  %s533, 2048, %s535, [#allocation15], 128, 128, 8
        $region40: #{tpu_custom_call.1} parent=11 // pred_fallthru
          _
        // Predicated region
        $region41: #{tpu_custom_call.1} parent=11 // pred_check
          %p541 = pneg %p261
        $region42: #{tpu_custom_call.1} parent=11 // pred_check_branch
          %543 = sbr.rel (%p541) target = $region44
        $region43: #{tpu_custom_call.1} parent=11 // pred_region
          _
        $region44: #{tpu_custom_call.1} parent=11 // pred_fallthru
          _
        // Predicated region
        $region45: #{tpu_custom_call.1} parent=11 // pred_check
          %p544 = pneg %p282
        $region46: #{tpu_custom_call.1} parent=11 // pred_check_branch
          %546 = sbr.rel (%p544) target = $region48
        $region47: #{tpu_custom_call.1} parent=11 // pred_region
          %548 = vsyncadd [#allocation15], 0
          %s549 = sshll.u32 %s10, 4
          %s550 = int_to_ptr.hbm [resolvable:$true] %s549
          %s551 = sshll.u32 [#allocation16], 4
          %s552 = int_to_ptr.vmem [resolvable:$true] %s551
          %557 = dma.hbm_to_vmem [thread:$0]  %s550, 2048, %s552, [#allocation15], 128, 128, 8
        $region48: #{tpu_custom_call.1} parent=11 // pred_fallthru
          _
        // Predicated region
        $region49: #{tpu_custom_call.1} parent=11 // pred_check
          %p558 = pneg %p303
        $region50: #{tpu_custom_call.1} parent=11 // pred_check_branch
          %560 = sbr.rel (%p558) target = $region52
        $region51: #{tpu_custom_call.1} parent=11 // pred_region
          %562 = vsyncadd [#allocation18], 0
          %s563 = sshll.u32 %s11, 4
          %s564 = int_to_ptr.hbm [resolvable:$true] %s563
          %s565 = sshll.u32 [#allocation17], 4
          %s566 = int_to_ptr.vmem [resolvable:$true] %s565
          %571 = dma.hbm_to_vmem [thread:$0]  %s564, 64, %s566, [#allocation18], 16, 16, 1
        $region52: #{tpu_custom_call.1} parent=11 // pred_fallthru
          _
        // Predicated region
        $region53: #{tpu_custom_call.1} parent=11 // pred_check
          %p572 = pneg %p324
        $region54: #{tpu_custom_call.1} parent=11 // pred_check_branch
          %574 = sbr.rel (%p572) target = $region56
        $region55: #{tpu_custom_call.1} parent=11 // pred_region
          %576 = vsyncadd [#allocation18], 0
          %s577 = sshll.u32 %s12, 4
          %s578 = int_to_ptr.hbm [resolvable:$true] %s577
          %s579 = sshll.u32 [#allocation19], 4
          %s580 = int_to_ptr.vmem [resolvable:$true] %s579
          %585 = dma.hbm_to_vmem [thread:$0]  %s578, 2048, %s580, [#allocation18], 128, 128, 8
        $region56: #{tpu_custom_call.1} parent=11 // pred_fallthru
          _
        // Predicated region
        $region57: #{tpu_custom_call.1} parent=11 // pred_check
          %p586 = pneg %p345
        $region58: #{tpu_custom_call.1} parent=11 // pred_check_branch
          %588 = sbr.rel (%p586) target = $region60
        $region59: #{tpu_custom_call.1} parent=11 // pred_region
          _
        $region60: #{tpu_custom_call.1} parent=11 // pred_fallthru
          _
        // Predicated region
        $region61: #{tpu_custom_call.1} parent=11 // pred_check
          %p589 = pneg %p366
        $region62: #{tpu_custom_call.1} parent=11 // pred_check_branch
          %591 = sbr.rel (%p589) target = $region64
        $region63: #{tpu_custom_call.1} parent=11 // pred_region
          %593 = vsyncadd [#allocation21], 0
          %s594 = sshll.u32 %s14, 4
          %s595 = int_to_ptr.hbm [resolvable:$true] %s594
          %s596 = sshll.u32 [#allocation20], 4
          %s597 = int_to_ptr.vmem [resolvable:$true] %s596
          %602 = dma.hbm_to_vmem [thread:$0]  %s595, 2048, %s597, [#allocation21], 128, 128, 8
        $region64: #{tpu_custom_call.1} parent=11 // pred_fallthru
          _
        // Predicated region
        $region65: #{tpu_custom_call.1} parent=11 // pred_check
          %p603 = pneg %p387
        $region66: #{tpu_custom_call.1} parent=11 // pred_check_branch
          %605 = sbr.rel (%p603) target = $region68
        $region67: #{tpu_custom_call.1} parent=11 // pred_region
          %607 = vsyncadd [#allocation21], 0
          %s608 = sshll.u32 %s15, 4
          %s609 = int_to_ptr.hbm [resolvable:$true] %s608
          %s610 = sshll.u32 [#allocation22], 4
          %s611 = int_to_ptr.vmem [resolvable:$true] %s610
          %616 = dma.hbm_to_vmem [thread:$0]  %s609, 64, %s611, [#allocation21], 16, 16, 1
        $region68: #{tpu_custom_call.1} parent=11 // pred_fallthru
          _
      $region12: #{tpu_custom_call.1} parent=5 // pred_fallthru
        _
      %p617 = scmp.lt.s32.totalorder %s41, 2
      // Predicated region
      $region69: #{tpu_custom_call.1} parent=5 // pred_check
        %p618 = pneg %p617
      $region70: #{tpu_custom_call.1} parent=5 // pred_check_branch
        %620 = sbr.rel (%p618) target = $region72
      $region71: #{tpu_custom_call.1} parent=5 // pred_region
        // Predicated region
        $region73: #{tpu_custom_call.1} parent=71 // pred_check
          %p621 = pneg %p61
        $region74: #{tpu_custom_call.1} parent=71 // pred_check_branch
          %623 = sbr.rel (%p621) target = $region76
        $region75: #{tpu_custom_call.1} parent=71 // pred_region
          %s624 = sand.u32 %s51, 1
          %s625 = scalar_lea.sflag [#allocation3], %s624
          %s626 = sand.u32 %s51, 1
          %s627 = smul.addr %s626, 8
          %s628 = scalar_lea.vmem [#allocation2], %s627
          %630 = vsyncadd %s625, 0
          %s631 = smul.addr %s41, 8
          %s632 = scalar_lea.hbm %s0, %s631
          %s634 = sshll.u32 %s632, 4
          %s635 = int_to_ptr.hbm [resolvable:$true] %s634
          %s636 = sshll.u32 %s628, 4
          %s637 = int_to_ptr.vmem [resolvable:$true] %s636
          %639 = dma.hbm_to_vmem [thread:$0]  %s635, 128, %s637, %s625
        $region76: #{tpu_custom_call.1} parent=71 // pred_fallthru
          _
        // Predicated region
        $region77: #{tpu_custom_call.1} parent=71 // pred_check
          %p640 = pneg %p87
        $region78: #{tpu_custom_call.1} parent=71 // pred_check_branch
          %642 = sbr.rel (%p640) target = $region80
        $region79: #{tpu_custom_call.1} parent=71 // pred_region
          %s643 = sand.u32 %s41, 1
          %s644 = scalar_lea.sflag [#allocation6], %s643
          %s645 = sand.u32 %s77, 1
          %s646 = smul.addr %s645, 8
          %s647 = scalar_lea.vmem [#allocation5], %s646
          %649 = vsyncadd %s644, 0
          %s650 = smul.addr %s41, 8
          %s651 = scalar_lea.hbm %s1, %s650
          %s653 = sshll.u32 %s651, 4
          %s654 = int_to_ptr.hbm [resolvable:$true] %s653
          %s655 = sshll.u32 %s647, 4
          %s656 = int_to_ptr.vmem [resolvable:$true] %s655
          %658 = dma.hbm_to_vmem [thread:$0]  %s654, 128, %s656, %s644
        $region80: #{tpu_custom_call.1} parent=71 // pred_fallthru
          _
      $region72: #{tpu_custom_call.1} parent=5 // pred_fallthru
        _
      %p659 = scmp.le.s32.totalorder 1, %s41
      %p660 = scmp.lt.s32.totalorder %s41, 3
      %p661 = pnand %p659, %p660
      %p662 = pneg %p661
      // Predicated region
      $region81: #{tpu_custom_call.1} parent=5 // pred_check
        _
      $region82: #{tpu_custom_call.1} parent=5 // pred_check_branch
        %664 = sbr.rel (%p661) target = $region84
      $region83: #{tpu_custom_call.1} parent=5 // pred_region
        %s665 = ssub.s32 %s41, 1
        %s666 = sand.u32 %s54, 1
        %s667 = scalar_lea.sflag [#allocation3], %s666
        %s668 = sand.u32 %s54, 1
        %s669 = smul.addr %s668, 8
        %s670 = scalar_lea.vmem [#allocation2], %s669
        // Predicated region
        $region85: #{tpu_custom_call.1} parent=83 // pred_check
          %p671 = pneg %p67
        $region86: #{tpu_custom_call.1} parent=83 // pred_check_branch
          %673 = sbr.rel (%p671) target = $region88
        $region87: #{tpu_custom_call.1} parent=83 // pred_region
          %675 = dma.done %s667, 128
        $region88: #{tpu_custom_call.1} parent=83 // pred_fallthru
          _
        %s676 = sand.u32 %s46, 1
        %s677 = scalar_lea.sflag [#allocation6], %s676
        %s678 = sand.u32 %s80, 1
        %s679 = smul.addr %s678, 8
        %s680 = scalar_lea.vmem [#allocation5], %s679
        // Predicated region
        $region89: #{tpu_custom_call.1} parent=83 // pred_check
          %p681 = pneg %p93
        $region90: #{tpu_custom_call.1} parent=83 // pred_check_branch
          %683 = sbr.rel (%p681) target = $region92
        $region91: #{tpu_custom_call.1} parent=83 // pred_region
          %685 = dma.done %s677, 128
        $region92: #{tpu_custom_call.1} parent=83 // pred_fallthru
          _
        // Predicated region
        $region93: #{tpu_custom_call.1} parent=83 // pred_check
          %p686 = pneg %p114
        $region94: #{tpu_custom_call.1} parent=83 // pred_check_branch
          %688 = sbr.rel (%p686) target = $region96
        $region95: #{tpu_custom_call.1} parent=83 // pred_region
          %690 = dma.done [#allocation6], 2048
        $region96: #{tpu_custom_call.1} parent=83 // pred_fallthru
          _
        // Predicated region
        $region97: #{tpu_custom_call.1} parent=83 // pred_check
          %p691 = pneg %p135
        $region98: #{tpu_custom_call.1} parent=83 // pred_check_branch
          %693 = sbr.rel (%p691) target = $region100
        $region99: #{tpu_custom_call.1} parent=83 // pred_region
          %695 = dma.done [#allocation9], 64
        $region100: #{tpu_custom_call.1} parent=83 // pred_fallthru
          _
        // Predicated region
        $region101: #{tpu_custom_call.1} parent=83 // pred_check
          %p696 = pneg %p156
        $region102: #{tpu_custom_call.1} parent=83 // pred_check_branch
          %698 = sbr.rel (%p696) target = $region104
        $region103: #{tpu_custom_call.1} parent=83 // pred_region
          %700 = dma.done [#allocation9], 2048
        $region104: #{tpu_custom_call.1} parent=83 // pred_fallthru
          _
        // Predicated region
        $region105: #{tpu_custom_call.1} parent=83 // pred_check
          %p701 = pneg %p198
        $region106: #{tpu_custom_call.1} parent=83 // pred_check_branch
          %703 = sbr.rel (%p701) target = $region108
        $region107: #{tpu_custom_call.1} parent=83 // pred_region
          %705 = dma.done [#allocation12], 2048
        $region108: #{tpu_custom_call.1} parent=83 // pred_fallthru
          _
        // Predicated region
        $region109: #{tpu_custom_call.1} parent=83 // pred_check
          %p706 = pneg %p219
        $region110: #{tpu_custom_call.1} parent=83 // pred_check_branch
          %708 = sbr.rel (%p706) target = $region112
        $region111: #{tpu_custom_call.1} parent=83 // pred_region
          %710 = dma.done [#allocation12], 64
        $region112: #{tpu_custom_call.1} parent=83 // pred_fallthru
          _
        // Predicated region
        $region113: #{tpu_custom_call.1} parent=83 // pred_check
          %p711 = pneg %p240
        $region114: #{tpu_custom_call.1} parent=83 // pred_check_branch
          %713 = sbr.rel (%p711) target = $region116
        $region115: #{tpu_custom_call.1} parent=83 // pred_region
          %715 = dma.done [#allocation15], 2048
        $region116: #{tpu_custom_call.1} parent=83 // pred_fallthru
          _
        // Predicated region
        $region117: #{tpu_custom_call.1} parent=83 // pred_check
          %p716 = pneg %p282
        $region118: #{tpu_custom_call.1} parent=83 // pred_check_branch
          %718 = sbr.rel (%p716) target = $region120
        $region119: #{tpu_custom_call.1} parent=83 // pred_region
          %720 = dma.done [#allocation15], 2048
        $region120: #{tpu_custom_call.1} parent=83 // pred_fallthru
          _
        // Predicated region
        $region121: #{tpu_custom_call.1} parent=83 // pred_check
          %p721 = pneg %p303
        $region122: #{tpu_custom_call.1} parent=83 // pred_check_branch
          %723 = sbr.rel (%p721) target = $region124
        $region123: #{tpu_custom_call.1} parent=83 // pred_region
          %725 = dma.done [#allocation18], 64
        $region124: #{tpu_custom_call.1} parent=83 // pred_fallthru
          _
        // Predicated region
        $region125: #{tpu_custom_call.1} parent=83 // pred_check
          %p726 = pneg %p324
        $region126: #{tpu_custom_call.1} parent=83 // pred_check_branch
          %728 = sbr.rel (%p726) target = $region128
        $region127: #{tpu_custom_call.1} parent=83 // pred_region
          %730 = dma.done [#allocation18], 2048
        $region128: #{tpu_custom_call.1} parent=83 // pred_fallthru
          _
        // Predicated region
        $region129: #{tpu_custom_call.1} parent=83 // pred_check
          %p731 = pneg %p366
        $region130: #{tpu_custom_call.1} parent=83 // pred_check_branch
          %733 = sbr.rel (%p731) target = $region132
        $region131: #{tpu_custom_call.1} parent=83 // pred_region
          %735 = dma.done [#allocation21], 2048
        $region132: #{tpu_custom_call.1} parent=83 // pred_fallthru
          _
        // Predicated region
        $region133: #{tpu_custom_call.1} parent=83 // pred_check
          %p736 = pneg %p387
        $region134: #{tpu_custom_call.1} parent=83 // pred_check_branch
          %738 = sbr.rel (%p736) target = $region136
        $region135: #{tpu_custom_call.1} parent=83 // pred_region
          %740 = dma.done [#allocation21], 64
        $region136: #{tpu_custom_call.1} parent=83 // pred_fallthru
          _
        %s741 = sand.u32 %s54, 1
        %s742 = scalar_lea.sflag [#allocation3], %s741
        %s743 = sand.u32 %s54, 1
        %s744 = smul.addr %s743, 8
        %s745 = scalar_lea.vmem [#allocation2], %s744
        %p746 = pneg %p67
        %p747 = pneg %p64
        %s748 = sand.u32 %s46, 1
        %s749 = scalar_lea.sflag [#allocation6], %s748
        %s750 = sand.u32 %s80, 1
        %s751 = smul.addr %s750, 8
        %s752 = scalar_lea.vmem [#allocation5], %s751
        %p753 = pneg %p93
        %p754 = pneg %p90
        %p755 = pneg %p114
        %p756 = pneg %p111
        %p757 = pneg %p135
        %p758 = pneg %p132
        %p759 = pneg %p156
        %p760 = pneg %p153
        %p761 = pneg %p177
        %p762 = pneg %p174
        %p763 = pneg %p198
        %p764 = pneg %p195
        %p765 = pneg %p219
        %p766 = pneg %p216
        %p767 = pneg %p240
        %p768 = pneg %p237
        %p769 = pneg %p261
        %p770 = pneg %p258
        %p771 = pneg %p282
        %p772 = pneg %p279
        %p773 = pneg %p303
        %p774 = pneg %p300
        %p775 = pneg %p324
        %p776 = pneg %p321
        %p777 = pneg %p345
        %p778 = pneg %p342
        %p779 = pneg %p366
        %p780 = pneg %p363
        %p781 = pneg %p387
        %p782 = pneg %p384
        %p783 = pneg %p413
        %p784 = pneg %p410
        %s785 = sand.u32 %s400, 1
        %s786 = scalar_lea.sflag [#allocation4], %s785
        %s787 = sand.u32 %s400, 1
        %s788 = smul.addr %s787, 8
        %s789 = scalar_lea.vmem [#allocation23], %s788
        %p790 = pneg %p439
        %p791 = pneg %p436
        %s792 = sand.u32 %s426, 1
        %s793 = scalar_lea.sflag [#allocation25], %s792
        %s794 = sand.u32 %s426, 1
        %s795 = smul.addr %s794, 8
        %s796 = scalar_lea.vmem [#allocation24], %s795
        %v797 = vld [vmem:[%s670] sm:$0xff]
        %v798 = vld [vmem:[%s680] sm:$0xff]
        %v799 = vld [vmem:[#allocation7] sm:$0xff]
        %v800 = vld [vmem:[#allocation7 + $0x8] sm:$0xff]
        %v801 = vld [vmem:[#allocation7 + $0x10] sm:$0xff]
        %v802 = vld [vmem:[#allocation7 + $0x18] sm:$0xff]
        %v803 = vld [vmem:[#allocation8] sm:$0x1]
        %v805 = vperm.slane %v803, 0
        %vm807 = vcmask 261120
        %v809 = vsel %vm807, %v797, 0
        %811 = vmatpush.msra.mxu0 0.0
        %812 = vmatpush.msra.mxu0 0.0
        %813 = vmatpush.msra.mxu0 0.0
        %814 = vmatpush.msra.mxu0 0.0
        %815 = vmatpush.msra.mxu0 0.0
        %816 = vmatpush.msra.mxu0 0.0
        %817 = vmatpush.msra.mxu0 0.0
        %818 = vmatpush.msra.mxu0 0.0
        %819 = vmatpush.msra.mxu0 0.0
        %820 = vmatpush.msra.mxu0 0.0
        %821 = vmatpush.msra.mxu0 0.0
        %822 = vmatpush.msra.mxu0 0.0
        %823 = vmatpush.msra.mxu0 %v802
        %824 = vmatpush.msra.mxu0 %v801
        %825 = vmatpush.msra.mxu0 %v800
        %826 = vmatpush.msra.mxu0 %v799
        %827 = vmatmul.f32.gmra.mxu0 %v809
        %v828 = vpop.f32.mrf.mxu0
        %v829 = vadd.f32 %v805, %v828
        %830 = vdwg.mxu0
        %v831 = vld [vmem:[#allocation10] sm:$0xff]
        %v832 = vld [vmem:[#allocation10 + $0x8] sm:$0xff]
        %v833 = vld [vmem:[#allocation10 + $0x10] sm:$0xff]
        %v834 = vld [vmem:[#allocation10 + $0x18] sm:$0xff]
        %v835 = vld [vmem:[%s5] sm:$0x1]
        %v837 = vperm.slane %v835, 0
        %839 = vmatpush.msra.mxu0 0.0
        %840 = vmatpush.msra.mxu0 0.0
        %841 = vmatpush.msra.mxu0 0.0
        %842 = vmatpush.msra.mxu0 0.0
        %843 = vmatpush.msra.mxu0 0.0
        %844 = vmatpush.msra.mxu0 0.0
        %845 = vmatpush.msra.mxu0 0.0
        %846 = vmatpush.msra.mxu0 0.0
        %847 = vmatpush.msra.mxu0 0.0
        %848 = vmatpush.msra.mxu0 0.0
        %849 = vmatpush.msra.mxu0 0.0
        %850 = vmatpush.msra.mxu0 0.0
        %851 = vmatpush.msra.mxu0 %v834
        %852 = vmatpush.msra.mxu0 %v833
        %853 = vmatpush.msra.mxu0 %v832
        %854 = vmatpush.msra.mxu0 %v831
        %855 = vmatmul.f32.gmra.mxu0 %v809
        %v856 = vpop.f32.mrf.mxu0
        %v857 = vadd.f32 %v837, %v856
        %858 = vdwg.mxu0
        %v859 = vld [vmem:[#allocation11] sm:$0xff]
        %v860 = vld [vmem:[#allocation11 + $0x8] sm:$0xff]
        %v861 = vld [vmem:[#allocation11 + $0x10] sm:$0xff]
        %v862 = vld [vmem:[#allocation11 + $0x18] sm:$0xff]
        %v863 = vld [vmem:[#allocation13] sm:$0x1]
        %v865 = vperm.slane %v863, 0
        %867 = vmatpush.msra.mxu0 0.0
        %868 = vmatpush.msra.mxu0 0.0
        %869 = vmatpush.msra.mxu0 0.0
        %870 = vmatpush.msra.mxu0 0.0
        %871 = vmatpush.msra.mxu0 0.0
        %872 = vmatpush.msra.mxu0 0.0
        %873 = vmatpush.msra.mxu0 0.0
        %874 = vmatpush.msra.mxu0 0.0
        %875 = vmatpush.msra.mxu0 0.0
        %876 = vmatpush.msra.mxu0 0.0
        %877 = vmatpush.msra.mxu0 0.0
        %878 = vmatpush.msra.mxu0 0.0
        %879 = vmatpush.msra.mxu0 %v862
        %880 = vmatpush.msra.mxu0 %v861
        %881 = vmatpush.msra.mxu0 %v860
        %882 = vmatpush.msra.mxu0 %v859
        %883 = vmatmul.f32.gmra.mxu0 %v809
        %v884 = vpop.f32.mrf.mxu0
        %v885 = vadd.f32 %v865, %v884
        %886 = vdwg.mxu0
        %vm887 = vcmask 64512
        %v889 = vsel %vm887, %v829, 0
        %v892 = vsel %vm887, %v857, 0
        %894 = vmatpush.xpose.msra.mxu0 0.0
        %895 = vmatpush.xpose.msra.mxu0 0.0
        %896 = vmatpush.xpose.msra.mxu0 0.0
        %897 = vmatpush.xpose.msra.mxu0 0.0
        %898 = vmatpush.xpose.msra.mxu0 0.0
        %899 = vmatpush.xpose.msra.mxu0 0.0
        %900 = vmatpush.xpose.msra.mxu0 0.0
        %901 = vmatpush.xpose.msra.mxu0 0.0
        %902 = vmatpush.xpose.msra.mxu0 0.0
        %903 = vmatpush.xpose.msra.mxu0 0.0
        %904 = vmatpush.xpose.msra.mxu0 0.0
        %905 = vmatpush.xpose.msra.mxu0 0.0
        %906 = vmatpush.xpose.msra.mxu0 0.0
        %907 = vmatpush.xpose.msra.mxu0 0.0
        %908 = vmatpush.xpose.msra.mxu0 0.0
        %909 = vmatpush.xpose.msra.mxu0 %v892
        %910 = vmatmul.f32.gmra.mxu0 %v889
        %v911 = vpop.f32.mrf.mxu0
        %v912 = vadd.f32 0.0, %v911
        %913 = vdwg.mxu0
        %v914 = vmul.f32 %v912, 0.17677669
        %v915 = vsel %vm887, %v914, -inf
        %916 = vmax.xlane.f32.xlu0 %v915
        %v917 = vpop.xlane.xlu0 %916
        %v918 = vsub.f32 %v914, %v917
        %v919 = vmul.f32 %v918, 1.442695
        %v920 = vpow.pop %v919
        %v921 = vsel %vm887, %v920, 0.0
        %922 = vadd.xlane.f32.xlu0 %v921
        %v923 = vpop.xlane.xlu0 %922
        %v924 = vrcp.pop %v923
        %v925 = vmul.f32 %v923, %v924
        %v926 = vsub.f32 1.0, %v925
        %v927 = vmul.f32 %v924, %v926
        %v928 = vadd.f32 %v924, %v927
        %vm929 = vweird.f32 %v923
        %vm930 = vweird.f32 %v924
        %vm931 = vmor %vm929, %vm930
        %v932 = vsel %vm931, %v924, %v928
        %v933 = vand.u32 2147483647, %v923
        %vm934 = vcmp.eq.f32.partialorder %v933, 8.507059e+37
        %v935 = vand.u32 %v923, 2147483648
        %v936 = vor.u32 1.1754944e-38, %v935
        %v937 = vsel %vm934, %v936, %v932
        %v938 = vmul.f32 %v920, %v937
        %v940 = vsel %vm887, %v938, 0
        %942 = vmatpush.msra.mxu0 0.0
        %943 = vmatpush.msra.mxu0 0.0
        %944 = vmatpush.msra.mxu0 0.0
        %945 = vmatpush.msra.mxu0 0.0
        %946 = vmatpush.msra.mxu0 0.0
        %947 = vmatpush.msra.mxu0 0.0
        %948 = vmatpush.msra.mxu0 0.0
        %949 = vmatpush.msra.mxu0 0.0
        %950 = vmatpush.msra.mxu0 0.0
        %951 = vmatpush.msra.mxu0 0.0
        %952 = vmatpush.msra.mxu0 0.0
        %953 = vmatpush.msra.mxu0 0.0
        %954 = vmatpush.msra.mxu0 0.0
        %955 = vmatpush.msra.mxu0 0.0
        %956 = vmatpush.msra.mxu0 0.0
        %957 = vmatpush.msra.mxu0 %v885
        %958 = vmatmul.f32.gmra.mxu0 %v940
        %v959 = vpop.f32.mrf.mxu0
        %v960 = vadd.f32 0.0, %v959
        %961 = vdwg.mxu0
        %962 = vrot.lane.b32.xlu0 %v829, 120
        %v963 = vpop.permute.xlu0 %962
        %964 = vrot.lane.b32.xlu0 %v857, 120
        %v965 = vpop.permute.xlu0 %964
        %v966 = vsel %vm887, %v963, 0
        %v968 = vsel %vm887, %v965, 0
        %970 = vmatpush.xpose.msra.mxu0 0.0
        %971 = vmatpush.xpose.msra.mxu0 0.0
        %972 = vmatpush.xpose.msra.mxu0 0.0
        %973 = vmatpush.xpose.msra.mxu0 0.0
        %974 = vmatpush.xpose.msra.mxu0 0.0
        %975 = vmatpush.xpose.msra.mxu0 0.0
        %976 = vmatpush.xpose.msra.mxu0 0.0
        %977 = vmatpush.xpose.msra.mxu0 0.0
        %978 = vmatpush.xpose.msra.mxu0 0.0
        %979 = vmatpush.xpose.msra.mxu0 0.0
        %980 = vmatpush.xpose.msra.mxu0 0.0
        %981 = vmatpush.xpose.msra.mxu0 0.0
        %982 = vmatpush.xpose.msra.mxu0 0.0
        %983 = vmatpush.xpose.msra.mxu0 0.0
        %984 = vmatpush.xpose.msra.mxu0 0.0
        %985 = vmatpush.xpose.msra.mxu0 %v968
        %986 = vmatmul.f32.gmra.mxu0 %v966
        %v987 = vpop.f32.mrf.mxu0
        %v988 = vadd.f32 0.0, %v987
        %989 = vdwg.mxu0
        %v990 = vmul.f32 %v988, 0.17677669
        %v991 = vsel %vm887, %v990, -inf
        %992 = vmax.xlane.f32.xlu0 %v991
        %v993 = vpop.xlane.xlu0 %992
        %v994 = vsub.f32 %v990, %v993
        %v995 = vmul.f32 %v994, 1.442695
        %v996 = vpow.pop %v995
        %v997 = vsel %vm887, %v996, 0.0
        %998 = vadd.xlane.f32.xlu0 %v997
        %v999 = vpop.xlane.xlu0 %998
        %v1000 = vrcp.pop %v999
        %v1001 = vmul.f32 %v999, %v1000
        %v1002 = vsub.f32 1.0, %v1001
        %v1003 = vmul.f32 %v1000, %v1002
        %v1004 = vadd.f32 %v1000, %v1003
        %vm1005 = vweird.f32 %v999
        %vm1006 = vweird.f32 %v1000
        %vm1007 = vmor %vm1005, %vm1006
        %v1008 = vsel %vm1007, %v1000, %v1004
        %v1009 = vand.u32 2147483647, %v999
        %vm1010 = vcmp.eq.f32.partialorder %v1009, 8.507059e+37
        %v1011 = vand.u32 %v999, 2147483648
        %v1012 = vor.u32 1.1754944e-38, %v1011
        %v1013 = vsel %vm1010, %v1012, %v1008
        %v1014 = vmul.f32 %v996, %v1013
        %1016 = vrot.lane.b32.xlu0 %v885, 120
        %v1017 = vpop.permute.xlu0 %1016
        %v1020 = vsel %vm887, %v1014, 0
        %1022 = vmatpush.msra.mxu0 0.0
        %1023 = vmatpush.msra.mxu0 0.0
        %1024 = vmatpush.msra.mxu0 0.0
        %1025 = vmatpush.msra.mxu0 0.0
        %1026 = vmatpush.msra.mxu0 0.0
        %1027 = vmatpush.msra.mxu0 0.0
        %1028 = vmatpush.msra.mxu0 0.0
        %1029 = vmatpush.msra.mxu0 0.0
        %1030 = vmatpush.msra.mxu0 0.0
        %1031 = vmatpush.msra.mxu0 0.0
        %1032 = vmatpush.msra.mxu0 0.0
        %1033 = vmatpush.msra.mxu0 0.0
        %1034 = vmatpush.msra.mxu0 0.0
        %1035 = vmatpush.msra.mxu0 0.0
        %1036 = vmatpush.msra.mxu0 0.0
        %1037 = vmatpush.msra.mxu0 %v1017
        %1038 = vmatmul.f32.gmra.mxu0 %v1020
        %v1039 = vpop.f32.mrf.mxu0
        %v1040 = vadd.f32 0.0, %v1039
        %1041 = vdwg.mxu0
        %1042 = vrot.lane.b32.xlu0 %v829, 112
        %v1043 = vpop.permute.xlu0 %1042
        %1044 = vrot.lane.b32.xlu0 %v857, 112
        %v1045 = vpop.permute.xlu0 %1044
        %v1046 = vsel %vm887, %v1043, 0
        %v1048 = vsel %vm887, %v1045, 0
        %1050 = vmatpush.xpose.msra.mxu0 0.0
        %1051 = vmatpush.xpose.msra.mxu0 0.0
        %1052 = vmatpush.xpose.msra.mxu0 0.0
        %1053 = vmatpush.xpose.msra.mxu0 0.0
        %1054 = vmatpush.xpose.msra.mxu0 0.0
        %1055 = vmatpush.xpose.msra.mxu0 0.0
        %1056 = vmatpush.xpose.msra.mxu0 0.0
        %1057 = vmatpush.xpose.msra.mxu0 0.0
        %1058 = vmatpush.xpose.msra.mxu0 0.0
        %1059 = vmatpush.xpose.msra.mxu0 0.0
        %1060 = vmatpush.xpose.msra.mxu0 0.0
        %1061 = vmatpush.xpose.msra.mxu0 0.0
        %1062 = vmatpush.xpose.msra.mxu0 0.0
        %1063 = vmatpush.xpose.msra.mxu0 0.0
        %1064 = vmatpush.xpose.msra.mxu0 0.0
        %1065 = vmatpush.xpose.msra.mxu0 %v1048
        %1066 = vmatmul.f32.gmra.mxu0 %v1046
        %v1067 = vpop.f32.mrf.mxu0
        %v1068 = vadd.f32 0.0, %v1067
        %1069 = vdwg.mxu0
        %v1070 = vmul.f32 %v1068, 0.17677669
        %v1071 = vsel %vm887, %v1070, -inf
        %1072 = vmax.xlane.f32.xlu0 %v1071
        %v1073 = vpop.xlane.xlu0 %1072
        %v1074 = vsub.f32 %v1070, %v1073
        %v1075 = vmul.f32 %v1074, 1.442695
        %v1076 = vpow.pop %v1075
        %v1077 = vsel %vm887, %v1076, 0.0
        %1078 = vadd.xlane.f32.xlu0 %v1077
        %v1079 = vpop.xlane.xlu0 %1078
        %v1080 = vrcp.pop %v1079
        %v1081 = vmul.f32 %v1079, %v1080
        %v1082 = vsub.f32 1.0, %v1081
        %v1083 = vmul.f32 %v1080, %v1082
        %v1084 = vadd.f32 %v1080, %v1083
        %vm1085 = vweird.f32 %v1079
        %vm1086 = vweird.f32 %v1080
        %vm1087 = vmor %vm1085, %vm1086
        %v1088 = vsel %vm1087, %v1080, %v1084
        %v1089 = vand.u32 2147483647, %v1079
        %vm1090 = vcmp.eq.f32.partialorder %v1089, 8.507059e+37
        %v1091 = vand.u32 %v1079, 2147483648
        %v1092 = vor.u32 1.1754944e-38, %v1091
        %v1093 = vsel %vm1090, %v1092, %v1088
        %v1094 = vmul.f32 %v1076, %v1093
        %1095 = vrot.lane.b32.xlu0 %v885, 112
        %v1096 = vpop.permute.xlu0 %1095
        %v1099 = vsel %vm887, %v1094, 0
        %1101 = vmatpush.msra.mxu0 0.0
        %1102 = vmatpush.msra.mxu0 0.0
        %1103 = vmatpush.msra.mxu0 0.0
        %1104 = vmatpush.msra.mxu0 0.0
        %1105 = vmatpush.msra.mxu0 0.0
        %1106 = vmatpush.msra.mxu0 0.0
        %1107 = vmatpush.msra.mxu0 0.0
        %1108 = vmatpush.msra.mxu0 0.0
        %1109 = vmatpush.msra.mxu0 0.0
        %1110 = vmatpush.msra.mxu0 0.0
        %1111 = vmatpush.msra.mxu0 0.0
        %1112 = vmatpush.msra.mxu0 0.0
        %1113 = vmatpush.msra.mxu0 0.0
        %1114 = vmatpush.msra.mxu0 0.0
        %1115 = vmatpush.msra.mxu0 0.0
        %1116 = vmatpush.msra.mxu0 %v1096
        %1117 = vmatmul.f32.gmra.mxu0 %v1099
        %v1118 = vpop.f32.mrf.mxu0
        %v1119 = vadd.f32 0.0, %v1118
        %1120 = vdwg.mxu0
        %1121 = vrot.lane.b32.xlu0 %v829, 104
        %v1122 = vpop.permute.xlu0 %1121
        %1123 = vrot.lane.b32.xlu0 %v857, 104
        %v1124 = vpop.permute.xlu0 %1123
        %v1125 = vsel %vm887, %v1122, 0
        %v1127 = vsel %vm887, %v1124, 0
        %1129 = vmatpush.xpose.msra.mxu0 0.0
        %1130 = vmatpush.xpose.msra.mxu0 0.0
        %1131 = vmatpush.xpose.msra.mxu0 0.0
        %1132 = vmatpush.xpose.msra.mxu0 0.0
        %1133 = vmatpush.xpose.msra.mxu0 0.0
        %1134 = vmatpush.xpose.msra.mxu0 0.0
        %1135 = vmatpush.xpose.msra.mxu0 0.0
        %1136 = vmatpush.xpose.msra.mxu0 0.0
        %1137 = vmatpush.xpose.msra.mxu0 0.0
        %1138 = vmatpush.xpose.msra.mxu0 0.0
        %1139 = vmatpush.xpose.msra.mxu0 0.0
        %1140 = vmatpush.xpose.msra.mxu0 0.0
        %1141 = vmatpush.xpose.msra.mxu0 0.0
        %1142 = vmatpush.xpose.msra.mxu0 0.0
        %1143 = vmatpush.xpose.msra.mxu0 0.0
        %1144 = vmatpush.xpose.msra.mxu0 %v1127
        %1145 = vmatmul.f32.gmra.mxu0 %v1125
        %v1146 = vpop.f32.mrf.mxu0
        %v1147 = vadd.f32 0.0, %v1146
        %1148 = vdwg.mxu0
        %v1149 = vmul.f32 %v1147, 0.17677669
        %v1150 = vsel %vm887, %v1149, -inf
        %1151 = vmax.xlane.f32.xlu0 %v1150
        %v1152 = vpop.xlane.xlu0 %1151
        %v1153 = vsub.f32 %v1149, %v1152
        %v1154 = vmul.f32 %v1153, 1.442695
        %v1155 = vpow.pop %v1154
        %v1156 = vsel %vm887, %v1155, 0.0
        %1157 = vadd.xlane.f32.xlu0 %v1156
        %v1158 = vpop.xlane.xlu0 %1157
        %v1159 = vrcp.pop %v1158
        %v1160 = vmul.f32 %v1158, %v1159
        %v1161 = vsub.f32 1.0, %v1160
        %v1162 = vmul.f32 %v1159, %v1161
        %v1163 = vadd.f32 %v1159, %v1162
        %vm1164 = vweird.f32 %v1158
        %vm1165 = vweird.f32 %v1159
        %vm1166 = vmor %vm1164, %vm1165
        %v1167 = vsel %vm1166, %v1159, %v1163
        %v1168 = vand.u32 2147483647, %v1158
        %vm1169 = vcmp.eq.f32.partialorder %v1168, 8.507059e+37
        %v1170 = vand.u32 %v1158, 2147483648
        %v1171 = vor.u32 1.1754944e-38, %v1170
        %v1172 = vsel %vm1169, %v1171, %v1167
        %v1173 = vmul.f32 %v1155, %v1172
        %1174 = vrot.lane.b32.xlu0 %v885, 104
        %v1175 = vpop.permute.xlu0 %1174
        %v1178 = vsel %vm887, %v1173, 0
        %1180 = vmatpush.msra.mxu0 0.0
        %1181 = vmatpush.msra.mxu0 0.0
        %1182 = vmatpush.msra.mxu0 0.0
        %1183 = vmatpush.msra.mxu0 0.0
        %1184 = vmatpush.msra.mxu0 0.0
        %1185 = vmatpush.msra.mxu0 0.0
        %1186 = vmatpush.msra.mxu0 0.0
        %1187 = vmatpush.msra.mxu0 0.0
        %1188 = vmatpush.msra.mxu0 0.0
        %1189 = vmatpush.msra.mxu0 0.0
        %1190 = vmatpush.msra.mxu0 0.0
        %1191 = vmatpush.msra.mxu0 0.0
        %1192 = vmatpush.msra.mxu0 0.0
        %1193 = vmatpush.msra.mxu0 0.0
        %1194 = vmatpush.msra.mxu0 0.0
        %1195 = vmatpush.msra.mxu0 %v1175
        %1196 = vmatmul.f32.gmra.mxu0 %v1178
        %v1197 = vpop.f32.mrf.mxu0
        %v1198 = vadd.f32 0.0, %v1197
        %1199 = vdwg.mxu0
        %1201 = vrot.lane.b32.xlu0 %v1040, 8
        %v1202 = vpop.permute.xlu0 %1201
        %1205 = vrot.lane.b32.xlu0 %v1119, 16
        %v1206 = vpop.permute.xlu0 %1205
        %1209 = vrot.lane.b32.xlu0 %v1198, 24
        %v1210 = vpop.permute.xlu0 %1209
        %v1212 = vsel %vm887, %v960, %v1202
        %vm1213 = vcmask 130048
        %v1214 = vsel %vm1213, %v1212, %v1206
        %vm1215 = vcmask 195584
        %v1216 = vsel %vm1215, %v1214, %v1210
        %v1217 = vld [vmem:[#allocation14] sm:$0xff]
        %v1218 = vld [vmem:[#allocation14 + $0x8] sm:$0xff]
        %v1219 = vld [vmem:[#allocation14 + $0x10] sm:$0xff]
        %v1220 = vld [vmem:[#allocation14 + $0x18] sm:$0xff]
        %v1221 = vld [vmem:[%s9] sm:$0x1]
        %v1223 = vperm.slane %v1221, 0
        %v1226 = vsel %vm807, %v1216, 0
        %1228 = vmatpush.msra.mxu0 0.0
        %1229 = vmatpush.msra.mxu0 0.0
        %1230 = vmatpush.msra.mxu0 0.0
        %1231 = vmatpush.msra.mxu0 0.0
        %1232 = vmatpush.msra.mxu0 0.0
        %1233 = vmatpush.msra.mxu0 0.0
        %1234 = vmatpush.msra.mxu0 0.0
        %1235 = vmatpush.msra.mxu0 0.0
        %1236 = vmatpush.msra.mxu0 0.0
        %1237 = vmatpush.msra.mxu0 0.0
        %1238 = vmatpush.msra.mxu0 0.0
        %1239 = vmatpush.msra.mxu0 0.0
        %1240 = vmatpush.msra.mxu0 %v1220
        %1241 = vmatpush.msra.mxu0 %v1219
        %1242 = vmatpush.msra.mxu0 %v1218
        %1243 = vmatpush.msra.mxu0 %v1217
        %1244 = vmatmul.f32.gmra.mxu0 %v1226
        %v1245 = vpop.f32.mrf.mxu0
        %v1246 = vadd.f32 %v1223, %v1245
        %1247 = vdwg.mxu0
        %v1248 = vadd.f32 %v797, %v1246
        %v1249 = vld [vmem:[#allocation16] sm:$0xff]
        %v1250 = vld [vmem:[#allocation16 + $0x8] sm:$0xff]
        %v1251 = vld [vmem:[#allocation16 + $0x10] sm:$0xff]
        %v1252 = vld [vmem:[#allocation16 + $0x18] sm:$0xff]
        %v1253 = vld [vmem:[#allocation17] sm:$0x1]
        %v1255 = vperm.slane %v1253, 0
        %v1258 = vsel %vm807, %v1248, 0
        %1260 = vmatpush.msra.mxu0 0.0
        %1261 = vmatpush.msra.mxu0 0.0
        %1262 = vmatpush.msra.mxu0 0.0
        %1263 = vmatpush.msra.mxu0 0.0
        %1264 = vmatpush.msra.mxu0 0.0
        %1265 = vmatpush.msra.mxu0 0.0
        %1266 = vmatpush.msra.mxu0 0.0
        %1267 = vmatpush.msra.mxu0 0.0
        %1268 = vmatpush.msra.mxu0 0.0
        %1269 = vmatpush.msra.mxu0 0.0
        %1270 = vmatpush.msra.mxu0 0.0
        %1271 = vmatpush.msra.mxu0 0.0
        %1272 = vmatpush.msra.mxu0 %v1252
        %1273 = vmatpush.msra.mxu0 %v1251
        %1274 = vmatpush.msra.mxu0 %v1250
        %1275 = vmatpush.msra.mxu0 %v1249
        %1276 = vmatmul.f32.gmra.mxu0 %v1258
        %v1277 = vpop.f32.mrf.mxu0
        %v1278 = vadd.f32 %v1255, %v1277
        %1279 = vdwg.mxu0
        %v1280 = vmax.f32 %v1278, 0.0
        %v1281 = vld [vmem:[#allocation19] sm:$0xff]
        %v1282 = vld [vmem:[#allocation19 + $0x8] sm:$0xff]
        %v1283 = vld [vmem:[#allocation19 + $0x10] sm:$0xff]
        %v1284 = vld [vmem:[#allocation19 + $0x18] sm:$0xff]
        %v1286 = vsel %vm807, %v1280, 0
        %1288 = vmatpush.msra.mxu0 0.0
        %1289 = vmatpush.msra.mxu0 0.0
        %1290 = vmatpush.msra.mxu0 0.0
        %1291 = vmatpush.msra.mxu0 0.0
        %1292 = vmatpush.msra.mxu0 0.0
        %1293 = vmatpush.msra.mxu0 0.0
        %1294 = vmatpush.msra.mxu0 0.0
        %1295 = vmatpush.msra.mxu0 0.0
        %1296 = vmatpush.msra.mxu0 0.0
        %1297 = vmatpush.msra.mxu0 0.0
        %1298 = vmatpush.msra.mxu0 0.0
        %1299 = vmatpush.msra.mxu0 0.0
        %1300 = vmatpush.msra.mxu0 %v1284
        %1301 = vmatpush.msra.mxu0 %v1283
        %1302 = vmatpush.msra.mxu0 %v1282
        %1303 = vmatpush.msra.mxu0 %v1281
        %1304 = vmatmul.f32.gmra.mxu0 %v1286
        %v1305 = vpop.f32.mrf.mxu0
        %v1306 = vadd.f32 0.0, %v1305
        %1307 = vdwg.mxu0
        %v1308 = vadd.f32 %v1248, %v1306
        %v1309 = vld [vmem:[%s13] sm:$0x1]
        %v1311 = vperm.slane %v1309, 0
        %v1313 = vadd.f32 %v1308, %v1311
        %s1314 = scalar_lea.vmem [#allocation7], 32
        %v1315 = vld [vmem:[%s1314] sm:$0xff]
        %v1316 = vld [vmem:[%s1314 + $0x8] sm:$0xff]
        %v1317 = vld [vmem:[%s1314 + $0x10] sm:$0xff]
        %v1318 = vld [vmem:[%s1314 + $0x18] sm:$0xff]
        %s1319 = scalar_lea.vmem [#allocation8], 1
        %v1320 = vld [vmem:[%s1319] sm:$0x1]
        %v1322 = vperm.slane %v1320, 0
        %1324 = vmatpush.msra.mxu0 0.0
        %1325 = vmatpush.msra.mxu0 0.0
        %1326 = vmatpush.msra.mxu0 0.0
        %1327 = vmatpush.msra.mxu0 0.0
        %1328 = vmatpush.msra.mxu0 0.0
        %1329 = vmatpush.msra.mxu0 0.0
        %1330 = vmatpush.msra.mxu0 0.0
        %1331 = vmatpush.msra.mxu0 0.0
        %1332 = vmatpush.msra.mxu0 0.0
        %1333 = vmatpush.msra.mxu0 0.0
        %1334 = vmatpush.msra.mxu0 0.0
        %1335 = vmatpush.msra.mxu0 0.0
        %1336 = vmatpush.msra.mxu0 %v1318
        %1337 = vmatpush.msra.mxu0 %v1317
        %1338 = vmatpush.msra.mxu0 %v1316
        %1339 = vmatpush.msra.mxu0 %v1315
        %1340 = vmatmul.f32.gmra.mxu0 %v809
        %v1341 = vpop.f32.mrf.mxu0
        %v1342 = vadd.f32 %v1322, %v1341
        %1343 = vdwg.mxu0
        %s1344 = scalar_lea.vmem [#allocation10], 32
        %v1345 = vld [vmem:[%s1344] sm:$0xff]
        %v1346 = vld [vmem:[%s1344 + $0x8] sm:$0xff]
        %v1347 = vld [vmem:[%s1344 + $0x10] sm:$0xff]
        %v1348 = vld [vmem:[%s1344 + $0x18] sm:$0xff]
        %s1349 = scalar_lea.vmem %s5, 1
        %v1350 = vld [vmem:[%s1349] sm:$0x1]
        %v1352 = vperm.slane %v1350, 0
        %v1355 = vsel %vm807, %v798, 0
        %1357 = vmatpush.msra.mxu0 0.0
        %1358 = vmatpush.msra.mxu0 0.0
        %1359 = vmatpush.msra.mxu0 0.0
        %1360 = vmatpush.msra.mxu0 0.0
        %1361 = vmatpush.msra.mxu0 0.0
        %1362 = vmatpush.msra.mxu0 0.0
        %1363 = vmatpush.msra.mxu0 0.0
        %1364 = vmatpush.msra.mxu0 0.0
        %1365 = vmatpush.msra.mxu0 0.0
        %1366 = vmatpush.msra.mxu0 0.0
        %1367 = vmatpush.msra.mxu0 0.0
        %1368 = vmatpush.msra.mxu0 0.0
        %1369 = vmatpush.msra.mxu0 %v1348
        %1370 = vmatpush.msra.mxu0 %v1347
        %1371 = vmatpush.msra.mxu0 %v1346
        %1372 = vmatpush.msra.mxu0 %v1345
        %1373 = vmatmul.f32.gmra.mxu0 %v1355
        %v1374 = vpop.f32.mrf.mxu0
        %v1375 = vadd.f32 %v1352, %v1374
        %1376 = vdwg.mxu0
        %s1377 = scalar_lea.vmem [#allocation11], 32
        %v1378 = vld [vmem:[%s1377] sm:$0xff]
        %v1379 = vld [vmem:[%s1377 + $0x8] sm:$0xff]
        %v1380 = vld [vmem:[%s1377 + $0x10] sm:$0xff]
        %v1381 = vld [vmem:[%s1377 + $0x18] sm:$0xff]
        %s1382 = scalar_lea.vmem [#allocation13], 1
        %v1383 = vld [vmem:[%s1382] sm:$0x1]
        %v1385 = vperm.slane %v1383, 0
        %1387 = vmatpush.msra.mxu0 0.0
        %1388 = vmatpush.msra.mxu0 0.0
        %1389 = vmatpush.msra.mxu0 0.0
        %1390 = vmatpush.msra.mxu0 0.0
        %1391 = vmatpush.msra.mxu0 0.0
        %1392 = vmatpush.msra.mxu0 0.0
        %1393 = vmatpush.msra.mxu0 0.0
        %1394 = vmatpush.msra.mxu0 0.0
        %1395 = vmatpush.msra.mxu0 0.0
        %1396 = vmatpush.msra.mxu0 0.0
        %1397 = vmatpush.msra.mxu0 0.0
        %1398 = vmatpush.msra.mxu0 0.0
        %1399 = vmatpush.msra.mxu0 %v1381
        %1400 = vmatpush.msra.mxu0 %v1380
        %1401 = vmatpush.msra.mxu0 %v1379
        %1402 = vmatpush.msra.mxu0 %v1378
        %1403 = vmatmul.f32.gmra.mxu0 %v1355
        %v1404 = vpop.f32.mrf.mxu0
        %v1405 = vadd.f32 %v1385, %v1404
        %1406 = vdwg.mxu0
        %v1408 = vsel %vm887, %v1342, 0
        %v1411 = vsel %vm887, %v1375, 0
        %1413 = vmatpush.xpose.msra.mxu0 0.0
        %1414 = vmatpush.xpose.msra.mxu0 0.0
        %1415 = vmatpush.xpose.msra.mxu0 0.0
        %1416 = vmatpush.xpose.msra.mxu0 0.0
        %1417 = vmatpush.xpose.msra.mxu0 0.0
        %1418 = vmatpush.xpose.msra.mxu0 0.0
        %1419 = vmatpush.xpose.msra.mxu0 0.0
        %1420 = vmatpush.xpose.msra.mxu0 0.0
        %1421 = vmatpush.xpose.msra.mxu0 0.0
        %1422 = vmatpush.xpose.msra.mxu0 0.0
        %1423 = vmatpush.xpose.msra.mxu0 0.0
        %1424 = vmatpush.xpose.msra.mxu0 0.0
        %1425 = vmatpush.xpose.msra.mxu0 0.0
        %1426 = vmatpush.xpose.msra.mxu0 0.0
        %1427 = vmatpush.xpose.msra.mxu0 0.0
        %1428 = vmatpush.xpose.msra.mxu0 %v1411
        %1429 = vmatmul.f32.gmra.mxu0 %v1408
        %v1430 = vpop.f32.mrf.mxu0
        %v1431 = vadd.f32 0.0, %v1430
        %1432 = vdwg.mxu0
        %v1433 = vmul.f32 %v1431, 0.17677669
        %v1434 = vsel %vm887, %v1433, -inf
        %1435 = vmax.xlane.f32.xlu0 %v1434
        %v1436 = vpop.xlane.xlu0 %1435
        %v1437 = vsub.f32 %v1433, %v1436
        %v1438 = vmul.f32 %v1437, 1.442695
        %v1439 = vpow.pop %v1438
        %v1440 = vsel %vm887, %v1439, 0.0
        %1441 = vadd.xlane.f32.xlu0 %v1440
        %v1442 = vpop.xlane.xlu0 %1441
        %v1443 = vrcp.pop %v1442
        %v1444 = vmul.f32 %v1442, %v1443
        %v1445 = vsub.f32 1.0, %v1444
        %v1446 = vmul.f32 %v1443, %v1445
        %v1447 = vadd.f32 %v1443, %v1446
        %vm1448 = vweird.f32 %v1442
        %vm1449 = vweird.f32 %v1443
        %vm1450 = vmor %vm1448, %vm1449
        %v1451 = vsel %vm1450, %v1443, %v1447
        %v1452 = vand.u32 2147483647, %v1442
        %vm1453 = vcmp.eq.f32.partialorder %v1452, 8.507059e+37
        %v1454 = vand.u32 %v1442, 2147483648
        %v1455 = vor.u32 1.1754944e-38, %v1454
        %v1456 = vsel %vm1453, %v1455, %v1451
        %v1457 = vmul.f32 %v1439, %v1456
        %v1459 = vsel %vm887, %v1457, 0
        %1461 = vmatpush.msra.mxu0 0.0
        %1462 = vmatpush.msra.mxu0 0.0
        %1463 = vmatpush.msra.mxu0 0.0
        %1464 = vmatpush.msra.mxu0 0.0
        %1465 = vmatpush.msra.mxu0 0.0
        %1466 = vmatpush.msra.mxu0 0.0
        %1467 = vmatpush.msra.mxu0 0.0
        %1468 = vmatpush.msra.mxu0 0.0
        %1469 = vmatpush.msra.mxu0 0.0
        %1470 = vmatpush.msra.mxu0 0.0
        %1471 = vmatpush.msra.mxu0 0.0
        %1472 = vmatpush.msra.mxu0 0.0
        %1473 = vmatpush.msra.mxu0 0.0
        %1474 = vmatpush.msra.mxu0 0.0
        %1475 = vmatpush.msra.mxu0 0.0
        %1476 = vmatpush.msra.mxu0 %v1405
        %1477 = vmatmul.f32.gmra.mxu0 %v1459
        %v1478 = vpop.f32.mrf.mxu0
        %v1479 = vadd.f32 0.0, %v1478
        %1480 = vdwg.mxu0
        %1481 = vrot.lane.b32.xlu0 %v1342, 120
        %v1482 = vpop.permute.xlu0 %1481
        %1483 = vrot.lane.b32.xlu0 %v1375, 120
        %v1484 = vpop.permute.xlu0 %1483
        %v1485 = vsel %vm887, %v1482, 0
        %v1487 = vsel %vm887, %v1484, 0
        %1489 = vmatpush.xpose.msra.mxu0 0.0
        %1490 = vmatpush.xpose.msra.mxu0 0.0
        %1491 = vmatpush.xpose.msra.mxu0 0.0
        %1492 = vmatpush.xpose.msra.mxu0 0.0
        %1493 = vmatpush.xpose.msra.mxu0 0.0
        %1494 = vmatpush.xpose.msra.mxu0 0.0
        %1495 = vmatpush.xpose.msra.mxu0 0.0
        %1496 = vmatpush.xpose.msra.mxu0 0.0
        %1497 = vmatpush.xpose.msra.mxu0 0.0
        %1498 = vmatpush.xpose.msra.mxu0 0.0
        %1499 = vmatpush.xpose.msra.mxu0 0.0
        %1500 = vmatpush.xpose.msra.mxu0 0.0
        %1501 = vmatpush.xpose.msra.mxu0 0.0
        %1502 = vmatpush.xpose.msra.mxu0 0.0
        %1503 = vmatpush.xpose.msra.mxu0 0.0
        %1504 = vmatpush.xpose.msra.mxu0 %v1487
        %1505 = vmatmul.f32.gmra.mxu0 %v1485
        %v1506 = vpop.f32.mrf.mxu0
        %v1507 = vadd.f32 0.0, %v1506
        %1508 = vdwg.mxu0
        %v1509 = vmul.f32 %v1507, 0.17677669
        %v1510 = vsel %vm887, %v1509, -inf
        %1511 = vmax.xlane.f32.xlu0 %v1510
        %v1512 = vpop.xlane.xlu0 %1511
        %v1513 = vsub.f32 %v1509, %v1512
        %v1514 = vmul.f32 %v1513, 1.442695
        %v1515 = vpow.pop %v1514
        %v1516 = vsel %vm887, %v1515, 0.0
        %1517 = vadd.xlane.f32.xlu0 %v1516
        %v1518 = vpop.xlane.xlu0 %1517
        %v1519 = vrcp.pop %v1518
        %v1520 = vmul.f32 %v1518, %v1519
        %v1521 = vsub.f32 1.0, %v1520
        %v1522 = vmul.f32 %v1519, %v1521
        %v1523 = vadd.f32 %v1519, %v1522
        %vm1524 = vweird.f32 %v1518
        %vm1525 = vweird.f32 %v1519
        %vm1526 = vmor %vm1524, %vm1525
        %v1527 = vsel %vm1526, %v1519, %v1523
        %v1528 = vand.u32 2147483647, %v1518
        %vm1529 = vcmp.eq.f32.partialorder %v1528, 8.507059e+37
        %v1530 = vand.u32 %v1518, 2147483648
        %v1531 = vor.u32 1.1754944e-38, %v1530
        %v1532 = vsel %vm1529, %v1531, %v1527
        %v1533 = vmul.f32 %v1515, %v1532
        %1535 = vrot.lane.b32.xlu0 %v1405, 120
        %v1536 = vpop.permute.xlu0 %1535
        %v1539 = vsel %vm887, %v1533, 0
        %1541 = vmatpush.msra.mxu0 0.0
        %1542 = vmatpush.msra.mxu0 0.0
        %1543 = vmatpush.msra.mxu0 0.0
        %1544 = vmatpush.msra.mxu0 0.0
        %1545 = vmatpush.msra.mxu0 0.0
        %1546 = vmatpush.msra.mxu0 0.0
        %1547 = vmatpush.msra.mxu0 0.0
        %1548 = vmatpush.msra.mxu0 0.0
        %1549 = vmatpush.msra.mxu0 0.0
        %1550 = vmatpush.msra.mxu0 0.0
        %1551 = vmatpush.msra.mxu0 0.0
        %1552 = vmatpush.msra.mxu0 0.0
        %1553 = vmatpush.msra.mxu0 0.0
        %1554 = vmatpush.msra.mxu0 0.0
        %1555 = vmatpush.msra.mxu0 0.0
        %1556 = vmatpush.msra.mxu0 %v1536
        %1557 = vmatmul.f32.gmra.mxu0 %v1539
        %v1558 = vpop.f32.mrf.mxu0
        %v1559 = vadd.f32 0.0, %v1558
        %1560 = vdwg.mxu0
        %1561 = vrot.lane.b32.xlu0 %v1342, 112
        %v1562 = vpop.permute.xlu0 %1561
        %1563 = vrot.lane.b32.xlu0 %v1375, 112
        %v1564 = vpop.permute.xlu0 %1563
        %v1565 = vsel %vm887, %v1562, 0
        %v1567 = vsel %vm887, %v1564, 0
        %1569 = vmatpush.xpose.msra.mxu0 0.0
        %1570 = vmatpush.xpose.msra.mxu0 0.0
        %1571 = vmatpush.xpose.msra.mxu0 0.0
        %1572 = vmatpush.xpose.msra.mxu0 0.0
        %1573 = vmatpush.xpose.msra.mxu0 0.0
        %1574 = vmatpush.xpose.msra.mxu0 0.0
        %1575 = vmatpush.xpose.msra.mxu0 0.0
        %1576 = vmatpush.xpose.msra.mxu0 0.0
        %1577 = vmatpush.xpose.msra.mxu0 0.0
        %1578 = vmatpush.xpose.msra.mxu0 0.0
        %1579 = vmatpush.xpose.msra.mxu0 0.0
        %1580 = vmatpush.xpose.msra.mxu0 0.0
        %1581 = vmatpush.xpose.msra.mxu0 0.0
        %1582 = vmatpush.xpose.msra.mxu0 0.0
        %1583 = vmatpush.xpose.msra.mxu0 0.0
        %1584 = vmatpush.xpose.msra.mxu0 %v1567
        %1585 = vmatmul.f32.gmra.mxu0 %v1565
        %v1586 = vpop.f32.mrf.mxu0
        %v1587 = vadd.f32 0.0, %v1586
        %1588 = vdwg.mxu0
        %v1589 = vmul.f32 %v1587, 0.17677669
        %v1590 = vsel %vm887, %v1589, -inf
        %1591 = vmax.xlane.f32.xlu0 %v1590
        %v1592 = vpop.xlane.xlu0 %1591
        %v1593 = vsub.f32 %v1589, %v1592
        %v1594 = vmul.f32 %v1593, 1.442695
        %v1595 = vpow.pop %v1594
        %v1596 = vsel %vm887, %v1595, 0.0
        %1597 = vadd.xlane.f32.xlu0 %v1596
        %v1598 = vpop.xlane.xlu0 %1597
        %v1599 = vrcp.pop %v1598
        %v1600 = vmul.f32 %v1598, %v1599
        %v1601 = vsub.f32 1.0, %v1600
        %v1602 = vmul.f32 %v1599, %v1601
        %v1603 = vadd.f32 %v1599, %v1602
        %vm1604 = vweird.f32 %v1598
        %vm1605 = vweird.f32 %v1599
        %vm1606 = vmor %vm1604, %vm1605
        %v1607 = vsel %vm1606, %v1599, %v1603
        %v1608 = vand.u32 2147483647, %v1598
        %vm1609 = vcmp.eq.f32.partialorder %v1608, 8.507059e+37
        %v1610 = vand.u32 %v1598, 2147483648
        %v1611 = vor.u32 1.1754944e-38, %v1610
        %v1612 = vsel %vm1609, %v1611, %v1607
        %v1613 = vmul.f32 %v1595, %v1612
        %1614 = vrot.lane.b32.xlu0 %v1405, 112
        %v1615 = vpop.permute.xlu0 %1614
        %v1618 = vsel %vm887, %v1613, 0
        %1620 = vmatpush.msra.mxu0 0.0
        %1621 = vmatpush.msra.mxu0 0.0
        %1622 = vmatpush.msra.mxu0 0.0
        %1623 = vmatpush.msra.mxu0 0.0
        %1624 = vmatpush.msra.mxu0 0.0
        %1625 = vmatpush.msra.mxu0 0.0
        %1626 = vmatpush.msra.mxu0 0.0
        %1627 = vmatpush.msra.mxu0 0.0
        %1628 = vmatpush.msra.mxu0 0.0
        %1629 = vmatpush.msra.mxu0 0.0
        %1630 = vmatpush.msra.mxu0 0.0
        %1631 = vmatpush.msra.mxu0 0.0
        %1632 = vmatpush.msra.mxu0 0.0
        %1633 = vmatpush.msra.mxu0 0.0
        %1634 = vmatpush.msra.mxu0 0.0
        %1635 = vmatpush.msra.mxu0 %v1615
        %1636 = vmatmul.f32.gmra.mxu0 %v1618
        %v1637 = vpop.f32.mrf.mxu0
        %v1638 = vadd.f32 0.0, %v1637
        %1639 = vdwg.mxu0
        %1640 = vrot.lane.b32.xlu0 %v1342, 104
        %v1641 = vpop.permute.xlu0 %1640
        %1642 = vrot.lane.b32.xlu0 %v1375, 104
        %v1643 = vpop.permute.xlu0 %1642
        %v1644 = vsel %vm887, %v1641, 0
        %v1646 = vsel %vm887, %v1643, 0
        %1648 = vmatpush.xpose.msra.mxu0 0.0
        %1649 = vmatpush.xpose.msra.mxu0 0.0
        %1650 = vmatpush.xpose.msra.mxu0 0.0
        %1651 = vmatpush.xpose.msra.mxu0 0.0
        %1652 = vmatpush.xpose.msra.mxu0 0.0
        %1653 = vmatpush.xpose.msra.mxu0 0.0
        %1654 = vmatpush.xpose.msra.mxu0 0.0
        %1655 = vmatpush.xpose.msra.mxu0 0.0
        %1656 = vmatpush.xpose.msra.mxu0 0.0
        %1657 = vmatpush.xpose.msra.mxu0 0.0
        %1658 = vmatpush.xpose.msra.mxu0 0.0
        %1659 = vmatpush.xpose.msra.mxu0 0.0
        %1660 = vmatpush.xpose.msra.mxu0 0.0
        %1661 = vmatpush.xpose.msra.mxu0 0.0
        %1662 = vmatpush.xpose.msra.mxu0 0.0
        %1663 = vmatpush.xpose.msra.mxu0 %v1646
        %1664 = vmatmul.f32.gmra.mxu0 %v1644
        %v1665 = vpop.f32.mrf.mxu0
        %v1666 = vadd.f32 0.0, %v1665
        %1667 = vdwg.mxu0
        %v1668 = vmul.f32 %v1666, 0.17677669
        %v1669 = vsel %vm887, %v1668, -inf
        %1670 = vmax.xlane.f32.xlu0 %v1669
        %v1671 = vpop.xlane.xlu0 %1670
        %v1672 = vsub.f32 %v1668, %v1671
        %v1673 = vmul.f32 %v1672, 1.442695
        %v1674 = vpow.pop %v1673
        %v1675 = vsel %vm887, %v1674, 0.0
        %1676 = vadd.xlane.f32.xlu0 %v1675
        %v1677 = vpop.xlane.xlu0 %1676
        %v1678 = vrcp.pop %v1677
        %v1679 = vmul.f32 %v1677, %v1678
        %v1680 = vsub.f32 1.0, %v1679
        %v1681 = vmul.f32 %v1678, %v1680
        %v1682 = vadd.f32 %v1678, %v1681
        %vm1683 = vweird.f32 %v1677
        %vm1684 = vweird.f32 %v1678
        %vm1685 = vmor %vm1683, %vm1684
        %v1686 = vsel %vm1685, %v1678, %v1682
        %v1687 = vand.u32 2147483647, %v1677
        %vm1688 = vcmp.eq.f32.partialorder %v1687, 8.507059e+37
        %v1689 = vand.u32 %v1677, 2147483648
        %v1690 = vor.u32 1.1754944e-38, %v1689
        %v1691 = vsel %vm1688, %v1690, %v1686
        %v1692 = vmul.f32 %v1674, %v1691
        %1693 = vrot.lane.b32.xlu0 %v1405, 104
        %v1694 = vpop.permute.xlu0 %1693
        %v1697 = vsel %vm887, %v1692, 0
        %1699 = vmatpush.msra.mxu0 0.0
        %1700 = vmatpush.msra.mxu0 0.0
        %1701 = vmatpush.msra.mxu0 0.0
        %1702 = vmatpush.msra.mxu0 0.0
        %1703 = vmatpush.msra.mxu0 0.0
        %1704 = vmatpush.msra.mxu0 0.0
        %1705 = vmatpush.msra.mxu0 0.0
        %1706 = vmatpush.msra.mxu0 0.0
        %1707 = vmatpush.msra.mxu0 0.0
        %1708 = vmatpush.msra.mxu0 0.0
        %1709 = vmatpush.msra.mxu0 0.0
        %1710 = vmatpush.msra.mxu0 0.0
        %1711 = vmatpush.msra.mxu0 0.0
        %1712 = vmatpush.msra.mxu0 0.0
        %1713 = vmatpush.msra.mxu0 0.0
        %1714 = vmatpush.msra.mxu0 %v1694
        %1715 = vmatmul.f32.gmra.mxu0 %v1697
        %v1716 = vpop.f32.mrf.mxu0
        %v1717 = vadd.f32 0.0, %v1716
        %1718 = vdwg.mxu0
        %1720 = vrot.lane.b32.xlu0 %v1559, 8
        %v1721 = vpop.permute.xlu0 %1720
        %1724 = vrot.lane.b32.xlu0 %v1638, 16
        %v1725 = vpop.permute.xlu0 %1724
        %1728 = vrot.lane.b32.xlu0 %v1717, 24
        %v1729 = vpop.permute.xlu0 %1728
        %v1731 = vsel %vm887, %v1479, %v1721
        %v1732 = vsel %vm1213, %v1731, %v1725
        %v1733 = vsel %vm1215, %v1732, %v1729
        %s1734 = scalar_lea.vmem [#allocation14], 32
        %v1735 = vld [vmem:[%s1734] sm:$0xff]
        %v1736 = vld [vmem:[%s1734 + $0x8] sm:$0xff]
        %v1737 = vld [vmem:[%s1734 + $0x10] sm:$0xff]
        %v1738 = vld [vmem:[%s1734 + $0x18] sm:$0xff]
        %s1739 = scalar_lea.vmem %s9, 1
        %v1740 = vld [vmem:[%s1739] sm:$0x1]
        %v1742 = vperm.slane %v1740, 0
        %v1745 = vsel %vm807, %v1733, 0
        %1747 = vmatpush.msra.mxu0 0.0
        %1748 = vmatpush.msra.mxu0 0.0
        %1749 = vmatpush.msra.mxu0 0.0
        %1750 = vmatpush.msra.mxu0 0.0
        %1751 = vmatpush.msra.mxu0 0.0
        %1752 = vmatpush.msra.mxu0 0.0
        %1753 = vmatpush.msra.mxu0 0.0
        %1754 = vmatpush.msra.mxu0 0.0
        %1755 = vmatpush.msra.mxu0 0.0
        %1756 = vmatpush.msra.mxu0 0.0
        %1757 = vmatpush.msra.mxu0 0.0
        %1758 = vmatpush.msra.mxu0 0.0
        %1759 = vmatpush.msra.mxu0 %v1738
        %1760 = vmatpush.msra.mxu0 %v1737
        %1761 = vmatpush.msra.mxu0 %v1736
        %1762 = vmatpush.msra.mxu0 %v1735
        %1763 = vmatmul.f32.gmra.mxu0 %v1745
        %v1764 = vpop.f32.mrf.mxu0
        %v1765 = vadd.f32 %v1742, %v1764
        %1766 = vdwg.mxu0
        %v1767 = vadd.f32 %v797, %v1765
        %s1768 = scalar_lea.vmem [#allocation16], 32
        %v1769 = vld [vmem:[%s1768] sm:$0xff]
        %v1770 = vld [vmem:[%s1768 + $0x8] sm:$0xff]
        %v1771 = vld [vmem:[%s1768 + $0x10] sm:$0xff]
        %v1772 = vld [vmem:[%s1768 + $0x18] sm:$0xff]
        %s1773 = scalar_lea.vmem [#allocation17], 1
        %v1774 = vld [vmem:[%s1773] sm:$0x1]
        %v1776 = vperm.slane %v1774, 0
        %v1779 = vsel %vm807, %v1767, 0
        %1781 = vmatpush.msra.mxu0 0.0
        %1782 = vmatpush.msra.mxu0 0.0
        %1783 = vmatpush.msra.mxu0 0.0
        %1784 = vmatpush.msra.mxu0 0.0
        %1785 = vmatpush.msra.mxu0 0.0
        %1786 = vmatpush.msra.mxu0 0.0
        %1787 = vmatpush.msra.mxu0 0.0
        %1788 = vmatpush.msra.mxu0 0.0
        %1789 = vmatpush.msra.mxu0 0.0
        %1790 = vmatpush.msra.mxu0 0.0
        %1791 = vmatpush.msra.mxu0 0.0
        %1792 = vmatpush.msra.mxu0 0.0
        %1793 = vmatpush.msra.mxu0 %v1772
        %1794 = vmatpush.msra.mxu0 %v1771
        %1795 = vmatpush.msra.mxu0 %v1770
        %1796 = vmatpush.msra.mxu0 %v1769
        %1797 = vmatmul.f32.gmra.mxu0 %v1779
        %v1798 = vpop.f32.mrf.mxu0
        %v1799 = vadd.f32 %v1776, %v1798
        %1800 = vdwg.mxu0
        %v1801 = vmax.f32 %v1799, 0.0
        %s1802 = scalar_lea.vmem [#allocation19], 32
        %v1803 = vld [vmem:[%s1802] sm:$0xff]
        %v1804 = vld [vmem:[%s1802 + $0x8] sm:$0xff]
        %v1805 = vld [vmem:[%s1802 + $0x10] sm:$0xff]
        %v1806 = vld [vmem:[%s1802 + $0x18] sm:$0xff]
        %v1808 = vsel %vm807, %v1801, 0
        %1810 = vmatpush.msra.mxu0 0.0
        %1811 = vmatpush.msra.mxu0 0.0
        %1812 = vmatpush.msra.mxu0 0.0
        %1813 = vmatpush.msra.mxu0 0.0
        %1814 = vmatpush.msra.mxu0 0.0
        %1815 = vmatpush.msra.mxu0 0.0
        %1816 = vmatpush.msra.mxu0 0.0
        %1817 = vmatpush.msra.mxu0 0.0
        %1818 = vmatpush.msra.mxu0 0.0
        %1819 = vmatpush.msra.mxu0 0.0
        %1820 = vmatpush.msra.mxu0 0.0
        %1821 = vmatpush.msra.mxu0 0.0
        %1822 = vmatpush.msra.mxu0 %v1806
        %1823 = vmatpush.msra.mxu0 %v1805
        %1824 = vmatpush.msra.mxu0 %v1804
        %1825 = vmatpush.msra.mxu0 %v1803
        %1826 = vmatmul.f32.gmra.mxu0 %v1808
        %v1827 = vpop.f32.mrf.mxu0
        %v1828 = vadd.f32 0.0, %v1827
        %1829 = vdwg.mxu0
        %v1830 = vadd.f32 %v1767, %v1828
        %s1831 = scalar_lea.vmem %s13, 1
        %v1832 = vld [vmem:[%s1831] sm:$0x1]
        %v1834 = vperm.slane %v1832, 0
        %v1836 = vadd.f32 %v1830, %v1834
        %s1837 = scalar_lea.vmem [#allocation7], 64
        %v1838 = vld [vmem:[%s1837] sm:$0xff]
        %v1839 = vld [vmem:[%s1837 + $0x8] sm:$0xff]
        %v1840 = vld [vmem:[%s1837 + $0x10] sm:$0xff]
        %v1841 = vld [vmem:[%s1837 + $0x18] sm:$0xff]
        %s1842 = scalar_lea.vmem [#allocation8], 2
        %v1843 = vld [vmem:[%s1842] sm:$0x1]
        %v1845 = vperm.slane %v1843, 0
        %1847 = vmatpush.msra.mxu0 0.0
        %1848 = vmatpush.msra.mxu0 0.0
        %1849 = vmatpush.msra.mxu0 0.0
        %1850 = vmatpush.msra.mxu0 0.0
        %1851 = vmatpush.msra.mxu0 0.0
        %1852 = vmatpush.msra.mxu0 0.0
        %1853 = vmatpush.msra.mxu0 0.0
        %1854 = vmatpush.msra.mxu0 0.0
        %1855 = vmatpush.msra.mxu0 0.0
        %1856 = vmatpush.msra.mxu0 0.0
        %1857 = vmatpush.msra.mxu0 0.0
        %1858 = vmatpush.msra.mxu0 0.0
        %1859 = vmatpush.msra.mxu0 %v1841
        %1860 = vmatpush.msra.mxu0 %v1840
        %1861 = vmatpush.msra.mxu0 %v1839
        %1862 = vmatpush.msra.mxu0 %v1838
        %1863 = vmatmul.f32.gmra.mxu0 %v1355
        %v1864 = vpop.f32.mrf.mxu0
        %v1865 = vadd.f32 %v1845, %v1864
        %1866 = vdwg.mxu0
        %s1867 = scalar_lea.vmem [#allocation10], 64
        %v1868 = vld [vmem:[%s1867] sm:$0xff]
        %v1869 = vld [vmem:[%s1867 + $0x8] sm:$0xff]
        %v1870 = vld [vmem:[%s1867 + $0x10] sm:$0xff]
        %v1871 = vld [vmem:[%s1867 + $0x18] sm:$0xff]
        %s1872 = scalar_lea.vmem %s5, 2
        %v1873 = vld [vmem:[%s1872] sm:$0x1]
        %v1875 = vperm.slane %v1873, 0
        %1877 = vmatpush.msra.mxu0 0.0
        %1878 = vmatpush.msra.mxu0 0.0
        %1879 = vmatpush.msra.mxu0 0.0
        %1880 = vmatpush.msra.mxu0 0.0
        %1881 = vmatpush.msra.mxu0 0.0
        %1882 = vmatpush.msra.mxu0 0.0
        %1883 = vmatpush.msra.mxu0 0.0
        %1884 = vmatpush.msra.mxu0 0.0
        %1885 = vmatpush.msra.mxu0 0.0
        %1886 = vmatpush.msra.mxu0 0.0
        %1887 = vmatpush.msra.mxu0 0.0
        %1888 = vmatpush.msra.mxu0 0.0
        %1889 = vmatpush.msra.mxu0 %v1871
        %1890 = vmatpush.msra.mxu0 %v1870
        %1891 = vmatpush.msra.mxu0 %v1869
        %1892 = vmatpush.msra.mxu0 %v1868
        %1893 = vmatmul.f32.gmra.mxu0 %v809
        %v1894 = vpop.f32.mrf.mxu0
        %v1895 = vadd.f32 %v1875, %v1894
        %1896 = vdwg.mxu0
        %s1897 = scalar_lea.vmem [#allocation11], 64
        %v1898 = vld [vmem:[%s1897] sm:$0xff]
        %v1899 = vld [vmem:[%s1897 + $0x8] sm:$0xff]
        %v1900 = vld [vmem:[%s1897 + $0x10] sm:$0xff]
        %v1901 = vld [vmem:[%s1897 + $0x18] sm:$0xff]
        %s1902 = scalar_lea.vmem [#allocation13], 2
        %v1903 = vld [vmem:[%s1902] sm:$0x1]
        %v1905 = vperm.slane %v1903, 0
        %1907 = vmatpush.msra.mxu0 0.0
        %1908 = vmatpush.msra.mxu0 0.0
        %1909 = vmatpush.msra.mxu0 0.0
        %1910 = vmatpush.msra.mxu0 0.0
        %1911 = vmatpush.msra.mxu0 0.0
        %1912 = vmatpush.msra.mxu0 0.0
        %1913 = vmatpush.msra.mxu0 0.0
        %1914 = vmatpush.msra.mxu0 0.0
        %1915 = vmatpush.msra.mxu0 0.0
        %1916 = vmatpush.msra.mxu0 0.0
        %1917 = vmatpush.msra.mxu0 0.0
        %1918 = vmatpush.msra.mxu0 0.0
        %1919 = vmatpush.msra.mxu0 %v1901
        %1920 = vmatpush.msra.mxu0 %v1900
        %1921 = vmatpush.msra.mxu0 %v1899
        %1922 = vmatpush.msra.mxu0 %v1898
        %1923 = vmatmul.f32.gmra.mxu0 %v809
        %v1924 = vpop.f32.mrf.mxu0
        %v1925 = vadd.f32 %v1905, %v1924
        %1926 = vdwg.mxu0
        %v1928 = vsel %vm887, %v1865, 0
        %v1931 = vsel %vm887, %v1895, 0
        %1933 = vmatpush.xpose.msra.mxu0 0.0
        %1934 = vmatpush.xpose.msra.mxu0 0.0
        %1935 = vmatpush.xpose.msra.mxu0 0.0
        %1936 = vmatpush.xpose.msra.mxu0 0.0
        %1937 = vmatpush.xpose.msra.mxu0 0.0
        %1938 = vmatpush.xpose.msra.mxu0 0.0
        %1939 = vmatpush.xpose.msra.mxu0 0.0
        %1940 = vmatpush.xpose.msra.mxu0 0.0
        %1941 = vmatpush.xpose.msra.mxu0 0.0
        %1942 = vmatpush.xpose.msra.mxu0 0.0
        %1943 = vmatpush.xpose.msra.mxu0 0.0
        %1944 = vmatpush.xpose.msra.mxu0 0.0
        %1945 = vmatpush.xpose.msra.mxu0 0.0
        %1946 = vmatpush.xpose.msra.mxu0 0.0
        %1947 = vmatpush.xpose.msra.mxu0 0.0
        %1948 = vmatpush.xpose.msra.mxu0 %v1931
        %1949 = vmatmul.f32.gmra.mxu0 %v1928
        %v1950 = vpop.f32.mrf.mxu0
        %v1951 = vadd.f32 0.0, %v1950
        %1952 = vdwg.mxu0
        %v1953 = vmul.f32 %v1951, 0.17677669
        %v1954 = vsel %vm887, %v1953, -inf
        %1955 = vmax.xlane.f32.xlu0 %v1954
        %v1956 = vpop.xlane.xlu0 %1955
        %v1957 = vsub.f32 %v1953, %v1956
        %v1958 = vmul.f32 %v1957, 1.442695
        %v1959 = vpow.pop %v1958
        %v1960 = vsel %vm887, %v1959, 0.0
        %1961 = vadd.xlane.f32.xlu0 %v1960
        %v1962 = vpop.xlane.xlu0 %1961
        %v1963 = vrcp.pop %v1962
        %v1964 = vmul.f32 %v1962, %v1963
        %v1965 = vsub.f32 1.0, %v1964
        %v1966 = vmul.f32 %v1963, %v1965
        %v1967 = vadd.f32 %v1963, %v1966
        %vm1968 = vweird.f32 %v1962
        %vm1969 = vweird.f32 %v1963
        %vm1970 = vmor %vm1968, %vm1969
        %v1971 = vsel %vm1970, %v1963, %v1967
        %v1972 = vand.u32 2147483647, %v1962
        %vm1973 = vcmp.eq.f32.partialorder %v1972, 8.507059e+37
        %v1974 = vand.u32 %v1962, 2147483648
        %v1975 = vor.u32 1.1754944e-38, %v1974
        %v1976 = vsel %vm1973, %v1975, %v1971
        %v1977 = vmul.f32 %v1959, %v1976
        %v1979 = vsel %vm887, %v1977, 0
        %1981 = vmatpush.msra.mxu0 0.0
        %1982 = vmatpush.msra.mxu0 0.0
        %1983 = vmatpush.msra.mxu0 0.0
        %1984 = vmatpush.msra.mxu0 0.0
        %1985 = vmatpush.msra.mxu0 0.0
        %1986 = vmatpush.msra.mxu0 0.0
        %1987 = vmatpush.msra.mxu0 0.0
        %1988 = vmatpush.msra.mxu0 0.0
        %1989 = vmatpush.msra.mxu0 0.0
        %1990 = vmatpush.msra.mxu0 0.0
        %1991 = vmatpush.msra.mxu0 0.0
        %1992 = vmatpush.msra.mxu0 0.0
        %1993 = vmatpush.msra.mxu0 0.0
        %1994 = vmatpush.msra.mxu0 0.0
        %1995 = vmatpush.msra.mxu0 0.0
        %1996 = vmatpush.msra.mxu0 %v1925
        %1997 = vmatmul.f32.gmra.mxu0 %v1979
        %v1998 = vpop.f32.mrf.mxu0
        %v1999 = vadd.f32 0.0, %v1998
        %2000 = vdwg.mxu0
        %2001 = vrot.lane.b32.xlu0 %v1865, 120
        %v2002 = vpop.permute.xlu0 %2001
        %2003 = vrot.lane.b32.xlu0 %v1895, 120
        %v2004 = vpop.permute.xlu0 %2003
        %v2005 = vsel %vm887, %v2002, 0
        %v2007 = vsel %vm887, %v2004, 0
        %2009 = vmatpush.xpose.msra.mxu0 0.0
        %2010 = vmatpush.xpose.msra.mxu0 0.0
        %2011 = vmatpush.xpose.msra.mxu0 0.0
        %2012 = vmatpush.xpose.msra.mxu0 0.0
        %2013 = vmatpush.xpose.msra.mxu0 0.0
        %2014 = vmatpush.xpose.msra.mxu0 0.0
        %2015 = vmatpush.xpose.msra.mxu0 0.0
        %2016 = vmatpush.xpose.msra.mxu0 0.0
        %2017 = vmatpush.xpose.msra.mxu0 0.0
        %2018 = vmatpush.xpose.msra.mxu0 0.0
        %2019 = vmatpush.xpose.msra.mxu0 0.0
        %2020 = vmatpush.xpose.msra.mxu0 0.0
        %2021 = vmatpush.xpose.msra.mxu0 0.0
        %2022 = vmatpush.xpose.msra.mxu0 0.0
        %2023 = vmatpush.xpose.msra.mxu0 0.0
        %2024 = vmatpush.xpose.msra.mxu0 %v2007
        %2025 = vmatmul.f32.gmra.mxu0 %v2005
        %v2026 = vpop.f32.mrf.mxu0
        %v2027 = vadd.f32 0.0, %v2026
        %2028 = vdwg.mxu0
        %v2029 = vmul.f32 %v2027, 0.17677669
        %v2030 = vsel %vm887, %v2029, -inf
        %2031 = vmax.xlane.f32.xlu0 %v2030
        %v2032 = vpop.xlane.xlu0 %2031
        %v2033 = vsub.f32 %v2029, %v2032
        %v2034 = vmul.f32 %v2033, 1.442695
        %v2035 = vpow.pop %v2034
        %v2036 = vsel %vm887, %v2035, 0.0
        %2037 = vadd.xlane.f32.xlu0 %v2036
        %v2038 = vpop.xlane.xlu0 %2037
        %v2039 = vrcp.pop %v2038
        %v2040 = vmul.f32 %v2038, %v2039
        %v2041 = vsub.f32 1.0, %v2040
        %v2042 = vmul.f32 %v2039, %v2041
        %v2043 = vadd.f32 %v2039, %v2042
        %vm2044 = vweird.f32 %v2038
        %vm2045 = vweird.f32 %v2039
        %vm2046 = vmor %vm2044, %vm2045
        %v2047 = vsel %vm2046, %v2039, %v2043
        %v2048 = vand.u32 2147483647, %v2038
        %vm2049 = vcmp.eq.f32.partialorder %v2048, 8.507059e+37
        %v2050 = vand.u32 %v2038, 2147483648
        %v2051 = vor.u32 1.1754944e-38, %v2050
        %v2052 = vsel %vm2049, %v2051, %v2047
        %v2053 = vmul.f32 %v2035, %v2052
        %2055 = vrot.lane.b32.xlu0 %v1925, 120
        %v2056 = vpop.permute.xlu0 %2055
        %v2059 = vsel %vm887, %v2053, 0
        %2061 = vmatpush.msra.mxu0 0.0
        %2062 = vmatpush.msra.mxu0 0.0
        %2063 = vmatpush.msra.mxu0 0.0
        %2064 = vmatpush.msra.mxu0 0.0
        %2065 = vmatpush.msra.mxu0 0.0
        %2066 = vmatpush.msra.mxu0 0.0
        %2067 = vmatpush.msra.mxu0 0.0
        %2068 = vmatpush.msra.mxu0 0.0
        %2069 = vmatpush.msra.mxu0 0.0
        %2070 = vmatpush.msra.mxu0 0.0
        %2071 = vmatpush.msra.mxu0 0.0
        %2072 = vmatpush.msra.mxu0 0.0
        %2073 = vmatpush.msra.mxu0 0.0
        %2074 = vmatpush.msra.mxu0 0.0
        %2075 = vmatpush.msra.mxu0 0.0
        %2076 = vmatpush.msra.mxu0 %v2056
        %2077 = vmatmul.f32.gmra.mxu0 %v2059
        %v2078 = vpop.f32.mrf.mxu0
        %v2079 = vadd.f32 0.0, %v2078
        %2080 = vdwg.mxu0
        %2081 = vrot.lane.b32.xlu0 %v1865, 112
        %v2082 = vpop.permute.xlu0 %2081
        %2083 = vrot.lane.b32.xlu0 %v1895, 112
        %v2084 = vpop.permute.xlu0 %2083
        %v2085 = vsel %vm887, %v2082, 0
        %v2087 = vsel %vm887, %v2084, 0
        %2089 = vmatpush.xpose.msra.mxu0 0.0
        %2090 = vmatpush.xpose.msra.mxu0 0.0
        %2091 = vmatpush.xpose.msra.mxu0 0.0
        %2092 = vmatpush.xpose.msra.mxu0 0.0
        %2093 = vmatpush.xpose.msra.mxu0 0.0
        %2094 = vmatpush.xpose.msra.mxu0 0.0
        %2095 = vmatpush.xpose.msra.mxu0 0.0
        %2096 = vmatpush.xpose.msra.mxu0 0.0
        %2097 = vmatpush.xpose.msra.mxu0 0.0
        %2098 = vmatpush.xpose.msra.mxu0 0.0
        %2099 = vmatpush.xpose.msra.mxu0 0.0
        %2100 = vmatpush.xpose.msra.mxu0 0.0
        %2101 = vmatpush.xpose.msra.mxu0 0.0
        %2102 = vmatpush.xpose.msra.mxu0 0.0
        %2103 = vmatpush.xpose.msra.mxu0 0.0
        %2104 = vmatpush.xpose.msra.mxu0 %v2087
        %2105 = vmatmul.f32.gmra.mxu0 %v2085
        %v2106 = vpop.f32.mrf.mxu0
        %v2107 = vadd.f32 0.0, %v2106
        %2108 = vdwg.mxu0
        %v2109 = vmul.f32 %v2107, 0.17677669
        %v2110 = vsel %vm887, %v2109, -inf
        %2111 = vmax.xlane.f32.xlu0 %v2110
        %v2112 = vpop.xlane.xlu0 %2111
        %v2113 = vsub.f32 %v2109, %v2112
        %v2114 = vmul.f32 %v2113, 1.442695
        %v2115 = vpow.pop %v2114
        %v2116 = vsel %vm887, %v2115, 0.0
        %2117 = vadd.xlane.f32.xlu0 %v2116
        %v2118 = vpop.xlane.xlu0 %2117
        %v2119 = vrcp.pop %v2118
        %v2120 = vmul.f32 %v2118, %v2119
        %v2121 = vsub.f32 1.0, %v2120
        %v2122 = vmul.f32 %v2119, %v2121
        %v2123 = vadd.f32 %v2119, %v2122
        %vm2124 = vweird.f32 %v2118
        %vm2125 = vweird.f32 %v2119
        %vm2126 = vmor %vm2124, %vm2125
        %v2127 = vsel %vm2126, %v2119, %v2123
        %v2128 = vand.u32 2147483647, %v2118
        %vm2129 = vcmp.eq.f32.partialorder %v2128, 8.507059e+37
        %v2130 = vand.u32 %v2118, 2147483648
        %v2131 = vor.u32 1.1754944e-38, %v2130
        %v2132 = vsel %vm2129, %v2131, %v2127
        %v2133 = vmul.f32 %v2115, %v2132
        %2134 = vrot.lane.b32.xlu0 %v1925, 112
        %v2135 = vpop.permute.xlu0 %2134
        %v2138 = vsel %vm887, %v2133, 0
        %2140 = vmatpush.msra.mxu0 0.0
        %2141 = vmatpush.msra.mxu0 0.0
        %2142 = vmatpush.msra.mxu0 0.0
        %2143 = vmatpush.msra.mxu0 0.0
        %2144 = vmatpush.msra.mxu0 0.0
        %2145 = vmatpush.msra.mxu0 0.0
        %2146 = vmatpush.msra.mxu0 0.0
        %2147 = vmatpush.msra.mxu0 0.0
        %2148 = vmatpush.msra.mxu0 0.0
        %2149 = vmatpush.msra.mxu0 0.0
        %2150 = vmatpush.msra.mxu0 0.0
        %2151 = vmatpush.msra.mxu0 0.0
        %2152 = vmatpush.msra.mxu0 0.0
        %2153 = vmatpush.msra.mxu0 0.0
        %2154 = vmatpush.msra.mxu0 0.0
        %2155 = vmatpush.msra.mxu0 %v2135
        %2156 = vmatmul.f32.gmra.mxu0 %v2138
        %v2157 = vpop.f32.mrf.mxu0
        %v2158 = vadd.f32 0.0, %v2157
        %2159 = vdwg.mxu0
        %2160 = vrot.lane.b32.xlu0 %v1865, 104
        %v2161 = vpop.permute.xlu0 %2160
        %2162 = vrot.lane.b32.xlu0 %v1895, 104
        %v2163 = vpop.permute.xlu0 %2162
        %v2164 = vsel %vm887, %v2161, 0
        %v2166 = vsel %vm887, %v2163, 0
        %2168 = vmatpush.xpose.msra.mxu0 0.0
        %2169 = vmatpush.xpose.msra.mxu0 0.0
        %2170 = vmatpush.xpose.msra.mxu0 0.0
        %2171 = vmatpush.xpose.msra.mxu0 0.0
        %2172 = vmatpush.xpose.msra.mxu0 0.0
        %2173 = vmatpush.xpose.msra.mxu0 0.0
        %2174 = vmatpush.xpose.msra.mxu0 0.0
        %2175 = vmatpush.xpose.msra.mxu0 0.0
        %2176 = vmatpush.xpose.msra.mxu0 0.0
        %2177 = vmatpush.xpose.msra.mxu0 0.0
        %2178 = vmatpush.xpose.msra.mxu0 0.0
        %2179 = vmatpush.xpose.msra.mxu0 0.0
        %2180 = vmatpush.xpose.msra.mxu0 0.0
        %2181 = vmatpush.xpose.msra.mxu0 0.0
        %2182 = vmatpush.xpose.msra.mxu0 0.0
        %2183 = vmatpush.xpose.msra.mxu0 %v2166
        %2184 = vmatmul.f32.gmra.mxu0 %v2164
        %v2185 = vpop.f32.mrf.mxu0
        %v2186 = vadd.f32 0.0, %v2185
        %2187 = vdwg.mxu0
        %v2188 = vmul.f32 %v2186, 0.17677669
        %v2189 = vsel %vm887, %v2188, -inf
        %2190 = vmax.xlane.f32.xlu0 %v2189
        %v2191 = vpop.xlane.xlu0 %2190
        %v2192 = vsub.f32 %v2188, %v2191
        %v2193 = vmul.f32 %v2192, 1.442695
        %v2194 = vpow.pop %v2193
        %v2195 = vsel %vm887, %v2194, 0.0
        %2196 = vadd.xlane.f32.xlu0 %v2195
        %v2197 = vpop.xlane.xlu0 %2196
        %v2198 = vrcp.pop %v2197
        %v2199 = vmul.f32 %v2197, %v2198
        %v2200 = vsub.f32 1.0, %v2199
        %v2201 = vmul.f32 %v2198, %v2200
        %v2202 = vadd.f32 %v2198, %v2201
        %vm2203 = vweird.f32 %v2197
        %vm2204 = vweird.f32 %v2198
        %vm2205 = vmor %vm2203, %vm2204
        %v2206 = vsel %vm2205, %v2198, %v2202
        %v2207 = vand.u32 2147483647, %v2197
        %vm2208 = vcmp.eq.f32.partialorder %v2207, 8.507059e+37
        %v2209 = vand.u32 %v2197, 2147483648
        %v2210 = vor.u32 1.1754944e-38, %v2209
        %v2211 = vsel %vm2208, %v2210, %v2206
        %v2212 = vmul.f32 %v2194, %v2211
        %2213 = vrot.lane.b32.xlu0 %v1925, 104
        %v2214 = vpop.permute.xlu0 %2213
        %v2217 = vsel %vm887, %v2212, 0
        %2219 = vmatpush.msra.mxu0 0.0
        %2220 = vmatpush.msra.mxu0 0.0
        %2221 = vmatpush.msra.mxu0 0.0
        %2222 = vmatpush.msra.mxu0 0.0
        %2223 = vmatpush.msra.mxu0 0.0
        %2224 = vmatpush.msra.mxu0 0.0
        %2225 = vmatpush.msra.mxu0 0.0
        %2226 = vmatpush.msra.mxu0 0.0
        %2227 = vmatpush.msra.mxu0 0.0
        %2228 = vmatpush.msra.mxu0 0.0
        %2229 = vmatpush.msra.mxu0 0.0
        %2230 = vmatpush.msra.mxu0 0.0
        %2231 = vmatpush.msra.mxu0 0.0
        %2232 = vmatpush.msra.mxu0 0.0
        %2233 = vmatpush.msra.mxu0 0.0
        %2234 = vmatpush.msra.mxu0 %v2214
        %2235 = vmatmul.f32.gmra.mxu0 %v2217
        %v2236 = vpop.f32.mrf.mxu0
        %v2237 = vadd.f32 0.0, %v2236
        %2238 = vdwg.mxu0
        %2240 = vrot.lane.b32.xlu0 %v2079, 8
        %v2241 = vpop.permute.xlu0 %2240
        %2244 = vrot.lane.b32.xlu0 %v2158, 16
        %v2245 = vpop.permute.xlu0 %2244
        %2248 = vrot.lane.b32.xlu0 %v2237, 24
        %v2249 = vpop.permute.xlu0 %2248
        %v2251 = vsel %vm887, %v1999, %v2241
        %v2252 = vsel %vm1213, %v2251, %v2245
        %v2253 = vsel %vm1215, %v2252, %v2249
        %s2254 = scalar_lea.vmem [#allocation14], 64
        %v2255 = vld [vmem:[%s2254] sm:$0xff]
        %v2256 = vld [vmem:[%s2254 + $0x8] sm:$0xff]
        %v2257 = vld [vmem:[%s2254 + $0x10] sm:$0xff]
        %v2258 = vld [vmem:[%s2254 + $0x18] sm:$0xff]
        %s2259 = scalar_lea.vmem %s9, 2
        %v2260 = vld [vmem:[%s2259] sm:$0x1]
        %v2262 = vperm.slane %v2260, 0
        %v2265 = vsel %vm807, %v2253, 0
        %2267 = vmatpush.msra.mxu0 0.0
        %2268 = vmatpush.msra.mxu0 0.0
        %2269 = vmatpush.msra.mxu0 0.0
        %2270 = vmatpush.msra.mxu0 0.0
        %2271 = vmatpush.msra.mxu0 0.0
        %2272 = vmatpush.msra.mxu0 0.0
        %2273 = vmatpush.msra.mxu0 0.0
        %2274 = vmatpush.msra.mxu0 0.0
        %2275 = vmatpush.msra.mxu0 0.0
        %2276 = vmatpush.msra.mxu0 0.0
        %2277 = vmatpush.msra.mxu0 0.0
        %2278 = vmatpush.msra.mxu0 0.0
        %2279 = vmatpush.msra.mxu0 %v2258
        %2280 = vmatpush.msra.mxu0 %v2257
        %2281 = vmatpush.msra.mxu0 %v2256
        %2282 = vmatpush.msra.mxu0 %v2255
        %2283 = vmatmul.f32.gmra.mxu0 %v2265
        %v2284 = vpop.f32.mrf.mxu0
        %v2285 = vadd.f32 %v2262, %v2284
        %2286 = vdwg.mxu0
        %v2287 = vadd.f32 %v798, %v2285
        %s2288 = scalar_lea.vmem [#allocation16], 64
        %v2289 = vld [vmem:[%s2288] sm:$0xff]
        %v2290 = vld [vmem:[%s2288 + $0x8] sm:$0xff]
        %v2291 = vld [vmem:[%s2288 + $0x10] sm:$0xff]
        %v2292 = vld [vmem:[%s2288 + $0x18] sm:$0xff]
        %s2293 = scalar_lea.vmem [#allocation17], 2
        %v2294 = vld [vmem:[%s2293] sm:$0x1]
        %v2296 = vperm.slane %v2294, 0
        %v2299 = vsel %vm807, %v2287, 0
        %2301 = vmatpush.msra.mxu0 0.0
        %2302 = vmatpush.msra.mxu0 0.0
        %2303 = vmatpush.msra.mxu0 0.0
        %2304 = vmatpush.msra.mxu0 0.0
        %2305 = vmatpush.msra.mxu0 0.0
        %2306 = vmatpush.msra.mxu0 0.0
        %2307 = vmatpush.msra.mxu0 0.0
        %2308 = vmatpush.msra.mxu0 0.0
        %2309 = vmatpush.msra.mxu0 0.0
        %2310 = vmatpush.msra.mxu0 0.0
        %2311 = vmatpush.msra.mxu0 0.0
        %2312 = vmatpush.msra.mxu0 0.0
        %2313 = vmatpush.msra.mxu0 %v2292
        %2314 = vmatpush.msra.mxu0 %v2291
        %2315 = vmatpush.msra.mxu0 %v2290
        %2316 = vmatpush.msra.mxu0 %v2289
        %2317 = vmatmul.f32.gmra.mxu0 %v2299
        %v2318 = vpop.f32.mrf.mxu0
        %v2319 = vadd.f32 %v2296, %v2318
        %2320 = vdwg.mxu0
        %v2321 = vmax.f32 %v2319, 0.0
        %s2322 = scalar_lea.vmem [#allocation19], 64
        %v2323 = vld [vmem:[%s2322] sm:$0xff]
        %v2324 = vld [vmem:[%s2322 + $0x8] sm:$0xff]
        %v2325 = vld [vmem:[%s2322 + $0x10] sm:$0xff]
        %v2326 = vld [vmem:[%s2322 + $0x18] sm:$0xff]
        %v2328 = vsel %vm807, %v2321, 0
        %2330 = vmatpush.msra.mxu0 0.0
        %2331 = vmatpush.msra.mxu0 0.0
        %2332 = vmatpush.msra.mxu0 0.0
        %2333 = vmatpush.msra.mxu0 0.0
        %2334 = vmatpush.msra.mxu0 0.0
        %2335 = vmatpush.msra.mxu0 0.0
        %2336 = vmatpush.msra.mxu0 0.0
        %2337 = vmatpush.msra.mxu0 0.0
        %2338 = vmatpush.msra.mxu0 0.0
        %2339 = vmatpush.msra.mxu0 0.0
        %2340 = vmatpush.msra.mxu0 0.0
        %2341 = vmatpush.msra.mxu0 0.0
        %2342 = vmatpush.msra.mxu0 %v2326
        %2343 = vmatpush.msra.mxu0 %v2325
        %2344 = vmatpush.msra.mxu0 %v2324
        %2345 = vmatpush.msra.mxu0 %v2323
        %2346 = vmatmul.f32.gmra.mxu0 %v2328
        %v2347 = vpop.f32.mrf.mxu0
        %v2348 = vadd.f32 0.0, %v2347
        %2349 = vdwg.mxu0
        %v2350 = vadd.f32 %v2287, %v2348
        %s2351 = scalar_lea.vmem %s13, 2
        %v2352 = vld [vmem:[%s2351] sm:$0x1]
        %v2354 = vperm.slane %v2352, 0
        %v2356 = vadd.f32 %v2350, %v2354
        %s2357 = scalar_lea.vmem [#allocation7], 96
        %v2358 = vld [vmem:[%s2357] sm:$0xff]
        %v2359 = vld [vmem:[%s2357 + $0x8] sm:$0xff]
        %v2360 = vld [vmem:[%s2357 + $0x10] sm:$0xff]
        %v2361 = vld [vmem:[%s2357 + $0x18] sm:$0xff]
        %s2362 = scalar_lea.vmem [#allocation8], 3
        %v2363 = vld [vmem:[%s2362] sm:$0x1]
        %v2365 = vperm.slane %v2363, 0
        %2367 = vmatpush.msra.mxu0 0.0
        %2368 = vmatpush.msra.mxu0 0.0
        %2369 = vmatpush.msra.mxu0 0.0
        %2370 = vmatpush.msra.mxu0 0.0
        %2371 = vmatpush.msra.mxu0 0.0
        %2372 = vmatpush.msra.mxu0 0.0
        %2373 = vmatpush.msra.mxu0 0.0
        %2374 = vmatpush.msra.mxu0 0.0
        %2375 = vmatpush.msra.mxu0 0.0
        %2376 = vmatpush.msra.mxu0 0.0
        %2377 = vmatpush.msra.mxu0 0.0
        %2378 = vmatpush.msra.mxu0 0.0
        %2379 = vmatpush.msra.mxu0 %v2361
        %2380 = vmatpush.msra.mxu0 %v2360
        %2381 = vmatpush.msra.mxu0 %v2359
        %2382 = vmatpush.msra.mxu0 %v2358
        %2383 = vmatmul.f32.gmra.mxu0 %v1355
        %v2384 = vpop.f32.mrf.mxu0
        %v2385 = vadd.f32 %v2365, %v2384
        %2386 = vdwg.mxu0
        %s2387 = scalar_lea.vmem [#allocation10], 96
        %v2388 = vld [vmem:[%s2387] sm:$0xff]
        %v2389 = vld [vmem:[%s2387 + $0x8] sm:$0xff]
        %v2390 = vld [vmem:[%s2387 + $0x10] sm:$0xff]
        %v2391 = vld [vmem:[%s2387 + $0x18] sm:$0xff]
        %s2392 = scalar_lea.vmem %s5, 3
        %v2393 = vld [vmem:[%s2392] sm:$0x1]
        %v2395 = vperm.slane %v2393, 0
        %2397 = vmatpush.msra.mxu0 0.0
        %2398 = vmatpush.msra.mxu0 0.0
        %2399 = vmatpush.msra.mxu0 0.0
        %2400 = vmatpush.msra.mxu0 0.0
        %2401 = vmatpush.msra.mxu0 0.0
        %2402 = vmatpush.msra.mxu0 0.0
        %2403 = vmatpush.msra.mxu0 0.0
        %2404 = vmatpush.msra.mxu0 0.0
        %2405 = vmatpush.msra.mxu0 0.0
        %2406 = vmatpush.msra.mxu0 0.0
        %2407 = vmatpush.msra.mxu0 0.0
        %2408 = vmatpush.msra.mxu0 0.0
        %2409 = vmatpush.msra.mxu0 %v2391
        %2410 = vmatpush.msra.mxu0 %v2390
        %2411 = vmatpush.msra.mxu0 %v2389
        %2412 = vmatpush.msra.mxu0 %v2388
        %2413 = vmatmul.f32.gmra.mxu0 %v1355
        %v2414 = vpop.f32.mrf.mxu0
        %v2415 = vadd.f32 %v2395, %v2414
        %2416 = vdwg.mxu0
        %s2417 = scalar_lea.vmem [#allocation11], 96
        %v2418 = vld [vmem:[%s2417] sm:$0xff]
        %v2419 = vld [vmem:[%s2417 + $0x8] sm:$0xff]
        %v2420 = vld [vmem:[%s2417 + $0x10] sm:$0xff]
        %v2421 = vld [vmem:[%s2417 + $0x18] sm:$0xff]
        %s2422 = scalar_lea.vmem [#allocation13], 3
        %v2423 = vld [vmem:[%s2422] sm:$0x1]
        %v2425 = vperm.slane %v2423, 0
        %2427 = vmatpush.msra.mxu0 0.0
        %2428 = vmatpush.msra.mxu0 0.0
        %2429 = vmatpush.msra.mxu0 0.0
        %2430 = vmatpush.msra.mxu0 0.0
        %2431 = vmatpush.msra.mxu0 0.0
        %2432 = vmatpush.msra.mxu0 0.0
        %2433 = vmatpush.msra.mxu0 0.0
        %2434 = vmatpush.msra.mxu0 0.0
        %2435 = vmatpush.msra.mxu0 0.0
        %2436 = vmatpush.msra.mxu0 0.0
        %2437 = vmatpush.msra.mxu0 0.0
        %2438 = vmatpush.msra.mxu0 0.0
        %2439 = vmatpush.msra.mxu0 %v2421
        %2440 = vmatpush.msra.mxu0 %v2420
        %2441 = vmatpush.msra.mxu0 %v2419
        %2442 = vmatpush.msra.mxu0 %v2418
        %2443 = vmatmul.f32.gmra.mxu0 %v1355
        %v2444 = vpop.f32.mrf.mxu0
        %v2445 = vadd.f32 %v2425, %v2444
        %2446 = vdwg.mxu0
        %v2448 = vsel %vm887, %v2385, 0
        %v2451 = vsel %vm887, %v2415, 0
        %2453 = vmatpush.xpose.msra.mxu0 0.0
        %2454 = vmatpush.xpose.msra.mxu0 0.0
        %2455 = vmatpush.xpose.msra.mxu0 0.0
        %2456 = vmatpush.xpose.msra.mxu0 0.0
        %2457 = vmatpush.xpose.msra.mxu0 0.0
        %2458 = vmatpush.xpose.msra.mxu0 0.0
        %2459 = vmatpush.xpose.msra.mxu0 0.0
        %2460 = vmatpush.xpose.msra.mxu0 0.0
        %2461 = vmatpush.xpose.msra.mxu0 0.0
        %2462 = vmatpush.xpose.msra.mxu0 0.0
        %2463 = vmatpush.xpose.msra.mxu0 0.0
        %2464 = vmatpush.xpose.msra.mxu0 0.0
        %2465 = vmatpush.xpose.msra.mxu0 0.0
        %2466 = vmatpush.xpose.msra.mxu0 0.0
        %2467 = vmatpush.xpose.msra.mxu0 0.0
        %2468 = vmatpush.xpose.msra.mxu0 %v2451
        %2469 = vmatmul.f32.gmra.mxu0 %v2448
        %v2470 = vpop.f32.mrf.mxu0
        %v2471 = vadd.f32 0.0, %v2470
        %2472 = vdwg.mxu0
        %v2473 = vmul.f32 %v2471, 0.17677669
        %v2474 = vsel %vm887, %v2473, -inf
        %2475 = vmax.xlane.f32.xlu0 %v2474
        %v2476 = vpop.xlane.xlu0 %2475
        %v2477 = vsub.f32 %v2473, %v2476
        %v2478 = vmul.f32 %v2477, 1.442695
        %v2479 = vpow.pop %v2478
        %v2480 = vsel %vm887, %v2479, 0.0
        %2481 = vadd.xlane.f32.xlu0 %v2480
        %v2482 = vpop.xlane.xlu0 %2481
        %v2483 = vrcp.pop %v2482
        %v2484 = vmul.f32 %v2482, %v2483
        %v2485 = vsub.f32 1.0, %v2484
        %v2486 = vmul.f32 %v2483, %v2485
        %v2487 = vadd.f32 %v2483, %v2486
        %vm2488 = vweird.f32 %v2482
        %vm2489 = vweird.f32 %v2483
        %vm2490 = vmor %vm2488, %vm2489
        %v2491 = vsel %vm2490, %v2483, %v2487
        %v2492 = vand.u32 2147483647, %v2482
        %vm2493 = vcmp.eq.f32.partialorder %v2492, 8.507059e+37
        %v2494 = vand.u32 %v2482, 2147483648
        %v2495 = vor.u32 1.1754944e-38, %v2494
        %v2496 = vsel %vm2493, %v2495, %v2491
        %v2497 = vmul.f32 %v2479, %v2496
        %v2499 = vsel %vm887, %v2497, 0
        %2501 = vmatpush.msra.mxu0 0.0
        %2502 = vmatpush.msra.mxu0 0.0
        %2503 = vmatpush.msra.mxu0 0.0
        %2504 = vmatpush.msra.mxu0 0.0
        %2505 = vmatpush.msra.mxu0 0.0
        %2506 = vmatpush.msra.mxu0 0.0
        %2507 = vmatpush.msra.mxu0 0.0
        %2508 = vmatpush.msra.mxu0 0.0
        %2509 = vmatpush.msra.mxu0 0.0
        %2510 = vmatpush.msra.mxu0 0.0
        %2511 = vmatpush.msra.mxu0 0.0
        %2512 = vmatpush.msra.mxu0 0.0
        %2513 = vmatpush.msra.mxu0 0.0
        %2514 = vmatpush.msra.mxu0 0.0
        %2515 = vmatpush.msra.mxu0 0.0
        %2516 = vmatpush.msra.mxu0 %v2445
        %2517 = vmatmul.f32.gmra.mxu0 %v2499
        %v2518 = vpop.f32.mrf.mxu0
        %v2519 = vadd.f32 0.0, %v2518
        %2520 = vdwg.mxu0
        %2521 = vrot.lane.b32.xlu0 %v2385, 120
        %v2522 = vpop.permute.xlu0 %2521
        %2523 = vrot.lane.b32.xlu0 %v2415, 120
        %v2524 = vpop.permute.xlu0 %2523
        %v2525 = vsel %vm887, %v2522, 0
        %v2527 = vsel %vm887, %v2524, 0
        %2529 = vmatpush.xpose.msra.mxu0 0.0
        %2530 = vmatpush.xpose.msra.mxu0 0.0
        %2531 = vmatpush.xpose.msra.mxu0 0.0
        %2532 = vmatpush.xpose.msra.mxu0 0.0
        %2533 = vmatpush.xpose.msra.mxu0 0.0
        %2534 = vmatpush.xpose.msra.mxu0 0.0
        %2535 = vmatpush.xpose.msra.mxu0 0.0
        %2536 = vmatpush.xpose.msra.mxu0 0.0
        %2537 = vmatpush.xpose.msra.mxu0 0.0
        %2538 = vmatpush.xpose.msra.mxu0 0.0
        %2539 = vmatpush.xpose.msra.mxu0 0.0
        %2540 = vmatpush.xpose.msra.mxu0 0.0
        %2541 = vmatpush.xpose.msra.mxu0 0.0
        %2542 = vmatpush.xpose.msra.mxu0 0.0
        %2543 = vmatpush.xpose.msra.mxu0 0.0
        %2544 = vmatpush.xpose.msra.mxu0 %v2527
        %2545 = vmatmul.f32.gmra.mxu0 %v2525
        %v2546 = vpop.f32.mrf.mxu0
        %v2547 = vadd.f32 0.0, %v2546
        %2548 = vdwg.mxu0
        %v2549 = vmul.f32 %v2547, 0.17677669
        %v2550 = vsel %vm887, %v2549, -inf
        %2551 = vmax.xlane.f32.xlu0 %v2550
        %v2552 = vpop.xlane.xlu0 %2551
        %v2553 = vsub.f32 %v2549, %v2552
        %v2554 = vmul.f32 %v2553, 1.442695
        %v2555 = vpow.pop %v2554
        %v2556 = vsel %vm887, %v2555, 0.0
        %2557 = vadd.xlane.f32.xlu0 %v2556
        %v2558 = vpop.xlane.xlu0 %2557
        %v2559 = vrcp.pop %v2558
        %v2560 = vmul.f32 %v2558, %v2559
        %v2561 = vsub.f32 1.0, %v2560
        %v2562 = vmul.f32 %v2559, %v2561
        %v2563 = vadd.f32 %v2559, %v2562
        %vm2564 = vweird.f32 %v2558
        %vm2565 = vweird.f32 %v2559
        %vm2566 = vmor %vm2564, %vm2565
        %v2567 = vsel %vm2566, %v2559, %v2563
        %v2568 = vand.u32 2147483647, %v2558
        %vm2569 = vcmp.eq.f32.partialorder %v2568, 8.507059e+37
        %v2570 = vand.u32 %v2558, 2147483648
        %v2571 = vor.u32 1.1754944e-38, %v2570
        %v2572 = vsel %vm2569, %v2571, %v2567
        %v2573 = vmul.f32 %v2555, %v2572
        %2575 = vrot.lane.b32.xlu0 %v2445, 120
        %v2576 = vpop.permute.xlu0 %2575
        %v2579 = vsel %vm887, %v2573, 0
        %2581 = vmatpush.msra.mxu0 0.0
        %2582 = vmatpush.msra.mxu0 0.0
        %2583 = vmatpush.msra.mxu0 0.0
        %2584 = vmatpush.msra.mxu0 0.0
        %2585 = vmatpush.msra.mxu0 0.0
        %2586 = vmatpush.msra.mxu0 0.0
        %2587 = vmatpush.msra.mxu0 0.0
        %2588 = vmatpush.msra.mxu0 0.0
        %2589 = vmatpush.msra.mxu0 0.0
        %2590 = vmatpush.msra.mxu0 0.0
        %2591 = vmatpush.msra.mxu0 0.0
        %2592 = vmatpush.msra.mxu0 0.0
        %2593 = vmatpush.msra.mxu0 0.0
        %2594 = vmatpush.msra.mxu0 0.0
        %2595 = vmatpush.msra.mxu0 0.0
        %2596 = vmatpush.msra.mxu0 %v2576
        %2597 = vmatmul.f32.gmra.mxu0 %v2579
        %v2598 = vpop.f32.mrf.mxu0
        %v2599 = vadd.f32 0.0, %v2598
        %2600 = vdwg.mxu0
        %2601 = vrot.lane.b32.xlu0 %v2385, 112
        %v2602 = vpop.permute.xlu0 %2601
        %2603 = vrot.lane.b32.xlu0 %v2415, 112
        %v2604 = vpop.permute.xlu0 %2603
        %v2605 = vsel %vm887, %v2602, 0
        %v2607 = vsel %vm887, %v2604, 0
        %2609 = vmatpush.xpose.msra.mxu0 0.0
        %2610 = vmatpush.xpose.msra.mxu0 0.0
        %2611 = vmatpush.xpose.msra.mxu0 0.0
        %2612 = vmatpush.xpose.msra.mxu0 0.0
        %2613 = vmatpush.xpose.msra.mxu0 0.0
        %2614 = vmatpush.xpose.msra.mxu0 0.0
        %2615 = vmatpush.xpose.msra.mxu0 0.0
        %2616 = vmatpush.xpose.msra.mxu0 0.0
        %2617 = vmatpush.xpose.msra.mxu0 0.0
        %2618 = vmatpush.xpose.msra.mxu0 0.0
        %2619 = vmatpush.xpose.msra.mxu0 0.0
        %2620 = vmatpush.xpose.msra.mxu0 0.0
        %2621 = vmatpush.xpose.msra.mxu0 0.0
        %2622 = vmatpush.xpose.msra.mxu0 0.0
        %2623 = vmatpush.xpose.msra.mxu0 0.0
        %2624 = vmatpush.xpose.msra.mxu0 %v2607
        %2625 = vmatmul.f32.gmra.mxu0 %v2605
        %v2626 = vpop.f32.mrf.mxu0
        %v2627 = vadd.f32 0.0, %v2626
        %2628 = vdwg.mxu0
        %v2629 = vmul.f32 %v2627, 0.17677669
        %v2630 = vsel %vm887, %v2629, -inf
        %2631 = vmax.xlane.f32.xlu0 %v2630
        %v2632 = vpop.xlane.xlu0 %2631
        %v2633 = vsub.f32 %v2629, %v2632
        %v2634 = vmul.f32 %v2633, 1.442695
        %v2635 = vpow.pop %v2634
        %v2636 = vsel %vm887, %v2635, 0.0
        %2637 = vadd.xlane.f32.xlu0 %v2636
        %v2638 = vpop.xlane.xlu0 %2637
        %v2639 = vrcp.pop %v2638
        %v2640 = vmul.f32 %v2638, %v2639
        %v2641 = vsub.f32 1.0, %v2640
        %v2642 = vmul.f32 %v2639, %v2641
        %v2643 = vadd.f32 %v2639, %v2642
        %vm2644 = vweird.f32 %v2638
        %vm2645 = vweird.f32 %v2639
        %vm2646 = vmor %vm2644, %vm2645
        %v2647 = vsel %vm2646, %v2639, %v2643
        %v2648 = vand.u32 2147483647, %v2638
        %vm2649 = vcmp.eq.f32.partialorder %v2648, 8.507059e+37
        %v2650 = vand.u32 %v2638, 2147483648
        %v2651 = vor.u32 1.1754944e-38, %v2650
        %v2652 = vsel %vm2649, %v2651, %v2647
        %v2653 = vmul.f32 %v2635, %v2652
        %2654 = vrot.lane.b32.xlu0 %v2445, 112
        %v2655 = vpop.permute.xlu0 %2654
        %v2658 = vsel %vm887, %v2653, 0
        %2660 = vmatpush.msra.mxu0 0.0
        %2661 = vmatpush.msra.mxu0 0.0
        %2662 = vmatpush.msra.mxu0 0.0
        %2663 = vmatpush.msra.mxu0 0.0
        %2664 = vmatpush.msra.mxu0 0.0
        %2665 = vmatpush.msra.mxu0 0.0
        %2666 = vmatpush.msra.mxu0 0.0
        %2667 = vmatpush.msra.mxu0 0.0
        %2668 = vmatpush.msra.mxu0 0.0
        %2669 = vmatpush.msra.mxu0 0.0
        %2670 = vmatpush.msra.mxu0 0.0
        %2671 = vmatpush.msra.mxu0 0.0
        %2672 = vmatpush.msra.mxu0 0.0
        %2673 = vmatpush.msra.mxu0 0.0
        %2674 = vmatpush.msra.mxu0 0.0
        %2675 = vmatpush.msra.mxu0 %v2655
        %2676 = vmatmul.f32.gmra.mxu0 %v2658
        %v2677 = vpop.f32.mrf.mxu0
        %v2678 = vadd.f32 0.0, %v2677
        %2679 = vdwg.mxu0
        %2680 = vrot.lane.b32.xlu0 %v2385, 104
        %v2681 = vpop.permute.xlu0 %2680
        %2682 = vrot.lane.b32.xlu0 %v2415, 104
        %v2683 = vpop.permute.xlu0 %2682
        %v2684 = vsel %vm887, %v2681, 0
        %v2686 = vsel %vm887, %v2683, 0
        %2688 = vmatpush.xpose.msra.mxu0 0.0
        %2689 = vmatpush.xpose.msra.mxu0 0.0
        %2690 = vmatpush.xpose.msra.mxu0 0.0
        %2691 = vmatpush.xpose.msra.mxu0 0.0
        %2692 = vmatpush.xpose.msra.mxu0 0.0
        %2693 = vmatpush.xpose.msra.mxu0 0.0
        %2694 = vmatpush.xpose.msra.mxu0 0.0
        %2695 = vmatpush.xpose.msra.mxu0 0.0
        %2696 = vmatpush.xpose.msra.mxu0 0.0
        %2697 = vmatpush.xpose.msra.mxu0 0.0
        %2698 = vmatpush.xpose.msra.mxu0 0.0
        %2699 = vmatpush.xpose.msra.mxu0 0.0
        %2700 = vmatpush.xpose.msra.mxu0 0.0
        %2701 = vmatpush.xpose.msra.mxu0 0.0
        %2702 = vmatpush.xpose.msra.mxu0 0.0
        %2703 = vmatpush.xpose.msra.mxu0 %v2686
        %2704 = vmatmul.f32.gmra.mxu0 %v2684
        %v2705 = vpop.f32.mrf.mxu0
        %v2706 = vadd.f32 0.0, %v2705
        %2707 = vdwg.mxu0
        %v2708 = vmul.f32 %v2706, 0.17677669
        %v2709 = vsel %vm887, %v2708, -inf
        %2710 = vmax.xlane.f32.xlu0 %v2709
        %v2711 = vpop.xlane.xlu0 %2710
        %v2712 = vsub.f32 %v2708, %v2711
        %v2713 = vmul.f32 %v2712, 1.442695
        %v2714 = vpow.pop %v2713
        %v2715 = vsel %vm887, %v2714, 0.0
        %2716 = vadd.xlane.f32.xlu0 %v2715
        %v2717 = vpop.xlane.xlu0 %2716
        %v2718 = vrcp.pop %v2717
        %v2719 = vmul.f32 %v2717, %v2718
        %v2720 = vsub.f32 1.0, %v2719
        %v2721 = vmul.f32 %v2718, %v2720
        %v2722 = vadd.f32 %v2718, %v2721
        %vm2723 = vweird.f32 %v2717
        %vm2724 = vweird.f32 %v2718
        %vm2725 = vmor %vm2723, %vm2724
        %v2726 = vsel %vm2725, %v2718, %v2722
        %v2727 = vand.u32 2147483647, %v2717
        %vm2728 = vcmp.eq.f32.partialorder %v2727, 8.507059e+37
        %v2729 = vand.u32 %v2717, 2147483648
        %v2730 = vor.u32 1.1754944e-38, %v2729
        %v2731 = vsel %vm2728, %v2730, %v2726
        %v2732 = vmul.f32 %v2714, %v2731
        %2733 = vrot.lane.b32.xlu0 %v2445, 104
        %v2734 = vpop.permute.xlu0 %2733
        %v2737 = vsel %vm887, %v2732, 0
        %2739 = vmatpush.msra.mxu0 0.0
        %2740 = vmatpush.msra.mxu0 0.0
        %2741 = vmatpush.msra.mxu0 0.0
        %2742 = vmatpush.msra.mxu0 0.0
        %2743 = vmatpush.msra.mxu0 0.0
        %2744 = vmatpush.msra.mxu0 0.0
        %2745 = vmatpush.msra.mxu0 0.0
        %2746 = vmatpush.msra.mxu0 0.0
        %2747 = vmatpush.msra.mxu0 0.0
        %2748 = vmatpush.msra.mxu0 0.0
        %2749 = vmatpush.msra.mxu0 0.0
        %2750 = vmatpush.msra.mxu0 0.0
        %2751 = vmatpush.msra.mxu0 0.0
        %2752 = vmatpush.msra.mxu0 0.0
        %2753 = vmatpush.msra.mxu0 0.0
        %2754 = vmatpush.msra.mxu0 %v2734
        %2755 = vmatmul.f32.gmra.mxu0 %v2737
        %v2756 = vpop.f32.mrf.mxu0
        %v2757 = vadd.f32 0.0, %v2756
        %2758 = vdwg.mxu0
        %2760 = vrot.lane.b32.xlu0 %v2599, 8
        %v2761 = vpop.permute.xlu0 %2760
        %2764 = vrot.lane.b32.xlu0 %v2678, 16
        %v2765 = vpop.permute.xlu0 %2764
        %2768 = vrot.lane.b32.xlu0 %v2757, 24
        %v2769 = vpop.permute.xlu0 %2768
        %v2771 = vsel %vm887, %v2519, %v2761
        %v2772 = vsel %vm1213, %v2771, %v2765
        %v2773 = vsel %vm1215, %v2772, %v2769
        %s2774 = scalar_lea.vmem [#allocation14], 96
        %v2775 = vld [vmem:[%s2774] sm:$0xff]
        %v2776 = vld [vmem:[%s2774 + $0x8] sm:$0xff]
        %v2777 = vld [vmem:[%s2774 + $0x10] sm:$0xff]
        %v2778 = vld [vmem:[%s2774 + $0x18] sm:$0xff]
        %s2779 = scalar_lea.vmem %s9, 3
        %v2780 = vld [vmem:[%s2779] sm:$0x1]
        %v2782 = vperm.slane %v2780, 0
        %v2785 = vsel %vm807, %v2773, 0
        %2787 = vmatpush.msra.mxu0 0.0
        %2788 = vmatpush.msra.mxu0 0.0
        %2789 = vmatpush.msra.mxu0 0.0
        %2790 = vmatpush.msra.mxu0 0.0
        %2791 = vmatpush.msra.mxu0 0.0
        %2792 = vmatpush.msra.mxu0 0.0
        %2793 = vmatpush.msra.mxu0 0.0
        %2794 = vmatpush.msra.mxu0 0.0
        %2795 = vmatpush.msra.mxu0 0.0
        %2796 = vmatpush.msra.mxu0 0.0
        %2797 = vmatpush.msra.mxu0 0.0
        %2798 = vmatpush.msra.mxu0 0.0
        %2799 = vmatpush.msra.mxu0 %v2778
        %2800 = vmatpush.msra.mxu0 %v2777
        %2801 = vmatpush.msra.mxu0 %v2776
        %2802 = vmatpush.msra.mxu0 %v2775
        %2803 = vmatmul.f32.gmra.mxu0 %v2785
        %v2804 = vpop.f32.mrf.mxu0
        %v2805 = vadd.f32 %v2782, %v2804
        %2806 = vdwg.mxu0
        %v2807 = vadd.f32 %v798, %v2805
        %s2808 = scalar_lea.vmem [#allocation16], 96
        %v2809 = vld [vmem:[%s2808] sm:$0xff]
        %v2810 = vld [vmem:[%s2808 + $0x8] sm:$0xff]
        %v2811 = vld [vmem:[%s2808 + $0x10] sm:$0xff]
        %v2812 = vld [vmem:[%s2808 + $0x18] sm:$0xff]
        %s2813 = scalar_lea.vmem [#allocation17], 3
        %v2814 = vld [vmem:[%s2813] sm:$0x1]
        %v2816 = vperm.slane %v2814, 0
        %v2819 = vsel %vm807, %v2807, 0
        %2821 = vmatpush.msra.mxu0 0.0
        %2822 = vmatpush.msra.mxu0 0.0
        %2823 = vmatpush.msra.mxu0 0.0
        %2824 = vmatpush.msra.mxu0 0.0
        %2825 = vmatpush.msra.mxu0 0.0
        %2826 = vmatpush.msra.mxu0 0.0
        %2827 = vmatpush.msra.mxu0 0.0
        %2828 = vmatpush.msra.mxu0 0.0
        %2829 = vmatpush.msra.mxu0 0.0
        %2830 = vmatpush.msra.mxu0 0.0
        %2831 = vmatpush.msra.mxu0 0.0
        %2832 = vmatpush.msra.mxu0 0.0
        %2833 = vmatpush.msra.mxu0 %v2812
        %2834 = vmatpush.msra.mxu0 %v2811
        %2835 = vmatpush.msra.mxu0 %v2810
        %2836 = vmatpush.msra.mxu0 %v2809
        %2837 = vmatmul.f32.gmra.mxu0 %v2819
        %v2838 = vpop.f32.mrf.mxu0
        %v2839 = vadd.f32 %v2816, %v2838
        %2840 = vdwg.mxu0
        %v2841 = vmax.f32 %v2839, 0.0
        %s2842 = scalar_lea.vmem [#allocation19], 96
        %v2843 = vld [vmem:[%s2842] sm:$0xff]
        %v2844 = vld [vmem:[%s2842 + $0x8] sm:$0xff]
        %v2845 = vld [vmem:[%s2842 + $0x10] sm:$0xff]
        %v2846 = vld [vmem:[%s2842 + $0x18] sm:$0xff]
        %v2848 = vsel %vm807, %v2841, 0
        %2850 = vmatpush.msra.mxu0 0.0
        %2851 = vmatpush.msra.mxu0 0.0
        %2852 = vmatpush.msra.mxu0 0.0
        %2853 = vmatpush.msra.mxu0 0.0
        %2854 = vmatpush.msra.mxu0 0.0
        %2855 = vmatpush.msra.mxu0 0.0
        %2856 = vmatpush.msra.mxu0 0.0
        %2857 = vmatpush.msra.mxu0 0.0
        %2858 = vmatpush.msra.mxu0 0.0
        %2859 = vmatpush.msra.mxu0 0.0
        %2860 = vmatpush.msra.mxu0 0.0
        %2861 = vmatpush.msra.mxu0 0.0
        %2862 = vmatpush.msra.mxu0 %v2846
        %2863 = vmatpush.msra.mxu0 %v2845
        %2864 = vmatpush.msra.mxu0 %v2844
        %2865 = vmatpush.msra.mxu0 %v2843
        %2866 = vmatmul.f32.gmra.mxu0 %v2848
        %v2867 = vpop.f32.mrf.mxu0
        %v2868 = vadd.f32 0.0, %v2867
        %2869 = vdwg.mxu0
        %v2870 = vadd.f32 %v2807, %v2868
        %s2871 = scalar_lea.vmem %s13, 3
        %v2872 = vld [vmem:[%s2871] sm:$0x1]
        %v2874 = vperm.slane %v2872, 0
        %v2876 = vadd.f32 %v2870, %v2874
        %v2877 = vld [vmem:[#allocation20] sm:$0xff]
        %v2878 = vld [vmem:[#allocation20 + $0x8] sm:$0xff]
        %v2879 = vld [vmem:[#allocation20 + $0x10] sm:$0xff]
        %v2880 = vld [vmem:[#allocation20 + $0x18] sm:$0xff]
        %v2881 = vld [vmem:[#allocation22] sm:$0x1]
        %v2883 = vperm.slane %v2881, 0
        %v2886 = vsel %vm807, %v1313, 0
        %2888 = vmatpush.msra.mxu0 0.0
        %2889 = vmatpush.msra.mxu0 0.0
        %2890 = vmatpush.msra.mxu0 0.0
        %2891 = vmatpush.msra.mxu0 0.0
        %2892 = vmatpush.msra.mxu0 0.0
        %2893 = vmatpush.msra.mxu0 0.0
        %2894 = vmatpush.msra.mxu0 0.0
        %2895 = vmatpush.msra.mxu0 0.0
        %2896 = vmatpush.msra.mxu0 0.0
        %2897 = vmatpush.msra.mxu0 0.0
        %2898 = vmatpush.msra.mxu0 0.0
        %2899 = vmatpush.msra.mxu0 0.0
        %2900 = vmatpush.msra.mxu0 %v2880
        %2901 = vmatpush.msra.mxu0 %v2879
        %2902 = vmatpush.msra.mxu0 %v2878
        %2903 = vmatpush.msra.mxu0 %v2877
        %2904 = vmatmul.f32.gmra.mxu0 %v2886
        %v2905 = vpop.f32.mrf.mxu0
        %v2906 = vadd.f32 %v2883, %v2905
        %2907 = vdwg.mxu0
        %s2908 = scalar_lea.vmem [#allocation20], 32
        %v2909 = vld [vmem:[%s2908] sm:$0xff]
        %v2910 = vld [vmem:[%s2908 + $0x8] sm:$0xff]
        %v2911 = vld [vmem:[%s2908 + $0x10] sm:$0xff]
        %v2912 = vld [vmem:[%s2908 + $0x18] sm:$0xff]
        %s2913 = scalar_lea.vmem [#allocation22], 1
        %v2914 = vld [vmem:[%s2913] sm:$0x1]
        %v2916 = vperm.slane %v2914, 0
        %v2919 = vsel %vm807, %v1836, 0
        %2921 = vmatpush.msra.mxu0 0.0
        %2922 = vmatpush.msra.mxu0 0.0
        %2923 = vmatpush.msra.mxu0 0.0
        %2924 = vmatpush.msra.mxu0 0.0
        %2925 = vmatpush.msra.mxu0 0.0
        %2926 = vmatpush.msra.mxu0 0.0
        %2927 = vmatpush.msra.mxu0 0.0
        %2928 = vmatpush.msra.mxu0 0.0
        %2929 = vmatpush.msra.mxu0 0.0
        %2930 = vmatpush.msra.mxu0 0.0
        %2931 = vmatpush.msra.mxu0 0.0
        %2932 = vmatpush.msra.mxu0 0.0
        %2933 = vmatpush.msra.mxu0 %v2912
        %2934 = vmatpush.msra.mxu0 %v2911
        %2935 = vmatpush.msra.mxu0 %v2910
        %2936 = vmatpush.msra.mxu0 %v2909
        %2937 = vmatmul.f32.gmra.mxu0 %v2919
        %v2938 = vpop.f32.mrf.mxu0
        %v2939 = vadd.f32 %v2916, %v2938
        %2940 = vdwg.mxu0
        %v2941 = vadd.f32 %v2906, %v2939
        %s2942 = scalar_lea.vmem [#allocation20], 64
        %v2943 = vld [vmem:[%s2942] sm:$0xff]
        %v2944 = vld [vmem:[%s2942 + $0x8] sm:$0xff]
        %v2945 = vld [vmem:[%s2942 + $0x10] sm:$0xff]
        %v2946 = vld [vmem:[%s2942 + $0x18] sm:$0xff]
        %s2947 = scalar_lea.vmem [#allocation22], 2
        %v2948 = vld [vmem:[%s2947] sm:$0x1]
        %v2950 = vperm.slane %v2948, 0
        %v2953 = vsel %vm807, %v2356, 0
        %2955 = vmatpush.msra.mxu0 0.0
        %2956 = vmatpush.msra.mxu0 0.0
        %2957 = vmatpush.msra.mxu0 0.0
        %2958 = vmatpush.msra.mxu0 0.0
        %2959 = vmatpush.msra.mxu0 0.0
        %2960 = vmatpush.msra.mxu0 0.0
        %2961 = vmatpush.msra.mxu0 0.0
        %2962 = vmatpush.msra.mxu0 0.0
        %2963 = vmatpush.msra.mxu0 0.0
        %2964 = vmatpush.msra.mxu0 0.0
        %2965 = vmatpush.msra.mxu0 0.0
        %2966 = vmatpush.msra.mxu0 0.0
        %2967 = vmatpush.msra.mxu0 %v2946
        %2968 = vmatpush.msra.mxu0 %v2945
        %2969 = vmatpush.msra.mxu0 %v2944
        %2970 = vmatpush.msra.mxu0 %v2943
        %2971 = vmatmul.f32.gmra.mxu0 %v2953
        %v2972 = vpop.f32.mrf.mxu0
        %v2973 = vadd.f32 %v2950, %v2972
        %2974 = vdwg.mxu0
        %s2975 = scalar_lea.vmem [#allocation20], 96
        %v2976 = vld [vmem:[%s2975] sm:$0xff]
        %v2977 = vld [vmem:[%s2975 + $0x8] sm:$0xff]
        %v2978 = vld [vmem:[%s2975 + $0x10] sm:$0xff]
        %v2979 = vld [vmem:[%s2975 + $0x18] sm:$0xff]
        %s2980 = scalar_lea.vmem [#allocation22], 3
        %v2981 = vld [vmem:[%s2980] sm:$0x1]
        %v2983 = vperm.slane %v2981, 0
        %v2986 = vsel %vm807, %v2876, 0
        %2988 = vmatpush.msra.mxu0 0.0
        %2989 = vmatpush.msra.mxu0 0.0
        %2990 = vmatpush.msra.mxu0 0.0
        %2991 = vmatpush.msra.mxu0 0.0
        %2992 = vmatpush.msra.mxu0 0.0
        %2993 = vmatpush.msra.mxu0 0.0
        %2994 = vmatpush.msra.mxu0 0.0
        %2995 = vmatpush.msra.mxu0 0.0
        %2996 = vmatpush.msra.mxu0 0.0
        %2997 = vmatpush.msra.mxu0 0.0
        %2998 = vmatpush.msra.mxu0 0.0
        %2999 = vmatpush.msra.mxu0 0.0
        %3000 = vmatpush.msra.mxu0 %v2979
        %3001 = vmatpush.msra.mxu0 %v2978
        %3002 = vmatpush.msra.mxu0 %v2977
        %3003 = vmatpush.msra.mxu0 %v2976
        %3004 = vmatmul.f32.gmra.mxu0 %v2986
        %v3005 = vpop.f32.mrf.mxu0
        %v3006 = vadd.f32 %v2983, %v3005
        %3007 = vdwg.mxu0
        %v3008 = vadd.f32 %v2973, %v3006
        %v3009 = vadd.f32 %v797, %v2941
        %3010 = vst.msk [vmem:[%s789] sm:$0xff] %vm807, %v3009
        %v3011 = vadd.f32 %v798, %v3008
        %3012 = vst.msk [vmem:[%s796] sm:$0xff] %vm807, %v3011
        %s3013 = sand.u32 %s400, 1
        %s3014 = scalar_lea.sflag [#allocation4], %s3013
        %s3015 = sand.u32 %s400, 1
        %s3016 = smul.addr %s3015, 8
        %s3017 = scalar_lea.vmem [#allocation23], %s3016
        %s3018 = sand.u32 %s426, 1
        %s3019 = scalar_lea.sflag [#allocation25], %s3018
        %s3020 = sand.u32 %s426, 1
        %s3021 = smul.addr %s3020, 8
        %s3022 = scalar_lea.vmem [#allocation24], %s3021
        // Predicated region
        $region137: #{tpu_custom_call.1} parent=83 // pred_check
          %p3023 = pneg %p410
        $region138: #{tpu_custom_call.1} parent=83 // pred_check_branch
          %3025 = sbr.rel (%p3023) target = $region140
        $region139: #{tpu_custom_call.1} parent=83 // pred_region
          %3027 = vsyncadd %s3014, 0
          %s3028 = smul.addr %s46, 8
          %s3029 = scalar_lea.hbm %s16, %s3028
          %s3031 = sshll.u32 %s3017, 4
          %s3032 = int_to_ptr.vmem [resolvable:$true] %s3031
          %s3033 = sshll.u32 %s3029, 4
          %s3034 = int_to_ptr.hbm [resolvable:$true] %s3033
          %3036 = dma.vmem_to_hbm [thread:$0]  %s3032, 128, %s3034, %s3014
        $region140: #{tpu_custom_call.1} parent=83 // pred_fallthru
          _
        // Predicated region
        $region141: #{tpu_custom_call.1} parent=83 // pred_check
          %p3037 = pneg %p436
        $region142: #{tpu_custom_call.1} parent=83 // pred_check_branch
          %3039 = sbr.rel (%p3037) target = $region144
        $region143: #{tpu_custom_call.1} parent=83 // pred_region
          %3041 = vsyncadd %s3019, 0
          %s3042 = smul.addr %s46, 8
          %s3043 = scalar_lea.hbm %s17, %s3042
          %s3045 = sshll.u32 %s3022, 4
          %s3046 = int_to_ptr.vmem [resolvable:$true] %s3045
          %s3047 = sshll.u32 %s3043, 4
          %s3048 = int_to_ptr.hbm [resolvable:$true] %s3047
          %3050 = dma.vmem_to_hbm [thread:$0]  %s3046, 128, %s3048, %s3019
        $region144: #{tpu_custom_call.1} parent=83 // pred_fallthru
          _
      $region84: #{tpu_custom_call.1} parent=5 // pred_fallthru
        _
      %p3051 = scmp.le.s32.totalorder 2, %s41
      // Predicated region
      $region145: #{tpu_custom_call.1} parent=5 // pred_check
        %p3052 = pneg %p3051
      $region146: #{tpu_custom_call.1} parent=5 // pred_check_branch
        %3054 = sbr.rel (%p3052) target = $region148
      $region147: #{tpu_custom_call.1} parent=5 // pred_region
        %s3055 = ssub.s32 %s41, 2
        // Predicated region
        $region149: #{tpu_custom_call.1} parent=147 // pred_check
          %p3056 = pneg %p416
        $region150: #{tpu_custom_call.1} parent=147 // pred_check_branch
          %3058 = sbr.rel (%p3056) target = $region152
        $region151: #{tpu_custom_call.1} parent=147 // pred_region
          %s3059 = sand.u32 %s401, 1
          %s3060 = scalar_lea.sflag [#allocation4], %s3059
          %s3061 = sand.u32 %s401, 1
          %s3062 = smul.addr %s3061, 8
          %s3063 = scalar_lea.vmem [#allocation23], %s3062
          %3065 = dma.done %s3060, 128
        $region152: #{tpu_custom_call.1} parent=147 // pred_fallthru
          _
        // Predicated region
        $region153: #{tpu_custom_call.1} parent=147 // pred_check
          %p3066 = pneg %p442
        $region154: #{tpu_custom_call.1} parent=147 // pred_check_branch
          %3068 = sbr.rel (%p3066) target = $region156
        $region155: #{tpu_custom_call.1} parent=147 // pred_region
          %s3069 = sand.u32 %s427, 1
          %s3070 = scalar_lea.sflag [#allocation25], %s3069
          %s3071 = sand.u32 %s427, 1
          %s3072 = smul.addr %s3071, 8
          %s3073 = scalar_lea.vmem [#allocation24], %s3072
          %3075 = dma.done %s3070, 128
        $region156: #{tpu_custom_call.1} parent=147 // pred_fallthru
          _
      $region148: #{tpu_custom_call.1} parent=5 // pred_fallthru
        _
    $region6: #{tpu_custom_call.1} parent=1 // loop_footer
      %s45 = sadd.s32 1, %s41
    $region7: #{tpu_custom_call.1} parent=1 // loop_footer_branch
      %40 = sbr.rel target = $region3
    $region8: #{tpu_custom_call.1} parent=1 // loop_exit
      _
    %3076 = vsyncpa [#allocation3], 1
    %s3077 = scalar_lea.sflag [#allocation3], 1
    %3078 = vsyncpa %s3077, 1
    %3079 = vsyncpa [#allocation6], 1
    %s3080 = scalar_lea.sflag [#allocation6], 1
    %3081 = vsyncpa %s3080, 1
    %3082 = vsyncpa [#allocation9], 1
    %3083 = vsyncpa [#allocation12], 1
    %3084 = vsyncpa [#allocation15], 1
    %3085 = vsyncpa [#allocation18], 1
    %3086 = vsyncpa [#allocation21], 1
    %3087 = vsyncpa [#allocation4], 1
    %s3088 = scalar_lea.sflag [#allocation4], 1
    %3089 = vsyncpa %s3088, 1
    %3090 = vsyncpa [#allocation25], 1
    %s3091 = scalar_lea.sflag [#allocation25], 1
    %3092 = vsyncpa %s3091, 1

</llo_original>
